<compile_context>
chip_gen: v7x
topology: tpu7x:2x2x1
jax: 0.10.0
libtpu: 0.0.40
codegen_flags: <defaults>
</compile_context>

<pallas_src>
import jax
import jax.numpy as jnp
from jax.experimental import pallas as pl
from jax.experimental.pallas import tpu as pltpu


# ----------------------------- model config ---------------------------------
CLASSES = 10
CHANNELS = 1
IMG_SIZE = 28
LATENT_DIM = 100
IMG_SHAPE = (CHANNELS, IMG_SIZE, IMG_SIZE)
IMG_FLAT = CHANNELS * IMG_SIZE * IMG_SIZE          # 784
IMG_FLAT_PAD = 896                                 # 7 * 128 lane-dense padding
DISC_OUT_PAD = 128                                 # (B,1) -> (B,128) dense store

WEIGHT_DTYPE = jnp.bfloat16  # weights streamed as bf16; accumulation in f32

# ---- packed small-vector layouts (all offsets are multiples of 128) ----------
# generator: b0 | b1 g1 be1 | b2 g2 be2 | b3 g3 be3 | b4(padded)
G_B0 = 0                                            # 128
G_B1, G_G1, G_BE1 = 128, 384, 640                   # 256 each
G_B2, G_G2, G_BE2 = 896, 1408, 1920                 # 512 each
G_B3, G_G3, G_BE3 = 2432, 3456, 4480                # 1024 each
G_B4 = 5504                                         # 896
G_VEC_N = 6400

# discriminator: b0 | b1 | b2 | b34(padded)
D_B0, D_B1, D_B2, D_B34 = 0, 1024, 1536, 1792
D_VEC_N = 1920


# --------------------------- in-kernel helpers -------------------------------
def _leaky_relu(x):
    return jnp.where(x >= 0, x, 0.2 * x)


def _dotf32(x, w):
    # x: (B, fin) f32 -> cast to bf16 for the MXU, accumulate in f32
    return jnp.dot(x.astype(WEIGHT_DTYPE), w, preferred_element_type=jnp.float32)


def _batchnorm_train(h, gamma, beta):
    # BatchNorm1d in training mode: batch statistics, biased variance, eps=1e-5
    mean = jnp.mean(h, axis=0, keepdims=True)
    var = jnp.mean((h - mean) ** 2, axis=0, keepdims=True)
    return (h - mean) * jax.lax.rsqrt(var + 1e-5) * gamma + beta


# ------------------------------ fused kernels --------------------------------
def _generator_kernel(emb_ref, z_ref, w0e_ref, w0z_ref, w1_ref, w2_ref,
                      w3_hbm, w4_hbm, vec_ref,
                      o_ref,
                      w3_vmem, w4_vmem, sem):
    # Kick off streaming of the two big late-layer weights; they complete
    # under the layer-0..2 compute and BatchNorm reductions.
    cp3 = pltpu.make_async_copy(w3_hbm, w3_vmem, sem.at[0])
    cp4 = pltpu.make_async_copy(w4_hbm, w4_vmem, sem.at[1])
    cp3.start()
    cp4.start()

    # layer 0: Linear(110 -> 128) on split inputs (concat eliminated) + LeakyReLU
    h = (_dotf32(emb_ref[...], w0e_ref[...])
         + _dotf32(z_ref[...], w0z_ref[...])
         + vec_ref[:, G_B0:G_B0 + 128])
    h = _leaky_relu(h)

    # layer 1: Linear(128 -> 256) + BatchNorm1d(train) + LeakyReLU(0.2)
    h = _dotf32(h, w1_ref[...]) + vec_ref[:, G_B1:G_B1 + 256]
    h = _leaky_relu(_batchnorm_train(h, vec_ref[:, G_G1:G_G1 + 256],
                                     vec_ref[:, G_BE1:G_BE1 + 256]))

    # layer 2: Linear(256 -> 512) + BatchNorm1d(train) + LeakyReLU(0.2)
    h = _dotf32(h, w2_ref[...]) + vec_ref[:, G_B2:G_B2 + 512]
    h = _leaky_relu(_batchnorm_train(h, vec_ref[:, G_G2:G_G2 + 512],
                                     vec_ref[:, G_BE2:G_BE2 + 512]))

    # layer 3: Linear(512 -> 1024) (manually streamed weight) + BN + LeakyReLU
    cp3.wait()
    h = _dotf32(h, w3_vmem[...]) + vec_ref[:, G_B3:G_B3 + 1024]
    h = _leaky_relu(_batchnorm_train(h, vec_ref[:, G_G3:G_G3 + 1024],
                                     vec_ref[:, G_BE3:G_BE3 + 1024]))

    # layer 4: Linear(1024 -> 896(=784 padded)) + Tanh, lane-dense store
    cp4.wait()
    o_ref[...] = jnp.tanh(_dotf32(h, w4_vmem[...])
                          + vec_ref[:, G_B4:G_B4 + IMG_FLAT_PAD])


def _discriminator_kernel(img_ref, emb_ref, w0e_ref, w2_ref, w34_ref,
                          w0i_hbm, w1_hbm, vec_ref,
                          o_ref,
                          w0i_vmem, w1_vmem, sem):
    # Stream the two biggest weights; w1 hides under layer-0 compute.
    cp0 = pltpu.make_async_copy(w0i_hbm, w0i_vmem, sem.at[0])
    cp1 = pltpu.make_async_copy(w1_hbm, w1_vmem, sem.at[1])
    cp0.start()
    cp1.start()

    # layer 0: Linear(794 -> 1024) on split inputs + Dropout(identity) + LeakyReLU
    h_emb = _dotf32(emb_ref[...], w0e_ref[...])   # tiny matmul, overlaps w0i DMA
    cp0.wait()
    h = h_emb + _dotf32(img_ref[...], w0i_vmem[...]) + vec_ref[:, D_B0:D_B0 + 1024]
    h = _leaky_relu(h)

    # layer 1: Linear(1024 -> 512) + Dropout(identity) + LeakyReLU
    cp1.wait()
    h = _leaky_relu(_dotf32(h, w1_vmem[...]) + vec_ref[:, D_B1:D_B1 + 512])

    # layer 2: Linear(512 -> 256) + Dropout(identity) + LeakyReLU
    h = _leaky_relu(_dotf32(h, w2_ref[...]) + vec_ref[:, D_B2:D_B2 + 256])

    # layers 3+4 (no activation between them in the reference) folded offline:
    # Linear(256->128) o Linear(128->1)  ==  Linear(256->1), padded to 128 lanes.
    o_ref[...] = jax.nn.sigmoid(_dotf32(h, w34_ref[...])
                                + vec_ref[:, D_B34:D_B34 + DISC_OUT_PAD])


# ------------------------------- wrappers ------------------------------------
def _vmem_spec():
    return pl.BlockSpec(memory_space=pltpu.MemorySpace.VMEM)


def _any_spec():
    return pl.BlockSpec(memory_space=pl.ANY)


def generator_apply(params, z, emb):
    B = z.shape[0]
    out = pl.pallas_call(
        _generator_kernel,
        out_shape=jax.ShapeDtypeStruct((B, IMG_FLAT_PAD), jnp.float32),
        in_specs=[_vmem_spec()] * 6 + [_any_spec()] * 2 + [_vmem_spec()],
        out_specs=_vmem_spec(),
        scratch_shapes=[
            pltpu.VMEM((512, 1024), WEIGHT_DTYPE),
            pltpu.VMEM((1024, IMG_FLAT_PAD), WEIGHT_DTYPE),
            pltpu.SemaphoreType.DMA((2,)),
        ],
    )(emb, z,
      params["g_w0e"], params["g_w0z"], params["g_w1"], params["g_w2"],
      params["g_w3"], params["g_w4"], params["g_vec"])
    return out[:, :IMG_FLAT]


def discriminator_apply(params, img_flat, emb):
    B = img_flat.shape[0]
    out = pl.pallas_call(
        _discriminator_kernel,
        out_shape=jax.ShapeDtypeStruct((B, DISC_OUT_PAD), jnp.float32),
        in_specs=[_vmem_spec()] * 5 + [_any_spec()] * 2 + [_vmem_spec()],
        out_specs=_vmem_spec(),
        scratch_shapes=[
            pltpu.VMEM((IMG_FLAT, 1024), WEIGHT_DTYPE),
            pltpu.VMEM((1024, 512), WEIGHT_DTYPE),
            pltpu.SemaphoreType.DMA((2,)),
        ],
    )(img_flat, emb,
      params["d_w0e"], params["d_w2"], params["d_w34"],
      params["d_w0i"], params["d_w1"], params["d_vec"])
    return out[:, :1]


# --------------------------- parameter init ----------------------------------
def _init_linear_f32(key, fin, fout):
    # torch.nn.Linear default: U(-1/sqrt(fin), 1/sqrt(fin)) for W and b
    kw, kb = jax.random.split(key)
    bound = 1.0 / (fin ** 0.5)
    w = jax.random.uniform(kw, (fin, fout), jnp.float32, -bound, bound)
    b = jax.random.uniform(kb, (fout,), jnp.float32, -bound, bound)
    return w, b


def init_params(key):
    keys = jax.random.split(key, 16)
    params = {}
    # label embedding: torch.nn.Embedding default N(0, 1)
    params["emb"] = jax.random.normal(keys[0], (CLASSES, CLASSES), jnp.float32)

    # ---------------- generator: 110 -> 128 -> 256 -> 512 -> 1024 -> 784 ------
    w0, b0 = _init_linear_f32(keys[1], LATENT_DIM + CLASSES, 128)
    w1, b1 = _init_linear_f32(keys[2], 128, 256)
    w2, b2 = _init_linear_f32(keys[3], 256, 512)
    w3, b3 = _init_linear_f32(keys[4], 512, 1024)
    w4, b4 = _init_linear_f32(keys[5], 1024, IMG_FLAT)

    # first-layer weight split: rows [:CLASSES] -> embedding, rest -> latent z
    params["g_w0e"] = w0[:CLASSES].astype(WEIGHT_DTYPE)
    params["g_w0z"] = w0[CLASSES:].astype(WEIGHT_DTYPE)
    params["g_w1"] = w1.astype(WEIGHT_DTYPE)
    params["g_w2"] = w2.astype(WEIGHT_DTYPE)
    params["g_w3"] = w3.astype(WEIGHT_DTYPE)
    # pad fout 784 -> 896 (7x128) with zero columns for a lane-dense final store
    params["g_w4"] = jnp.pad(
        w4, ((0, 0), (0, IMG_FLAT_PAD - IMG_FLAT))).astype(WEIGHT_DTYPE)

    g_vec = jnp.concatenate([
        b0,
        b1, jnp.ones((256,), jnp.float32), jnp.zeros((256,), jnp.float32),
        b2, jnp.ones((512,), jnp.float32), jnp.zeros((512,), jnp.float32),
        b3, jnp.ones((1024,), jnp.float32), jnp.zeros((1024,), jnp.float32),
        jnp.pad(b4, (0, IMG_FLAT_PAD - IMG_FLAT)),
    ])
    assert g_vec.shape == (G_VEC_N,)
    params["g_vec"] = g_vec.reshape(1, G_VEC_N)

    # -------------- discriminator: 794 -> 1024 -> 512 -> 256 -> 128 -> 1 ------
    dw0, db0 = _init_linear_f32(keys[8], CLASSES + IMG_FLAT, 1024)
    dw1, db1 = _init_linear_f32(keys[9], 1024, 512)
    dw2, db2 = _init_linear_f32(keys[10], 512, 256)
    dw3, db3 = _init_linear_f32(keys[11], 256, 128)
    dw4, db4 = _init_linear_f32(keys[12], 128, 1)

    # first-layer weight split: rows [:IMG_FLAT] -> flattened image, rest -> emb
    params["d_w0i"] = dw0[:IMG_FLAT].astype(WEIGHT_DTYPE)
    params["d_w0e"] = dw0[IMG_FLAT:].astype(WEIGHT_DTYPE)
    params["d_w1"] = dw1.astype(WEIGHT_DTYPE)
    params["d_w2"] = dw2.astype(WEIGHT_DTYPE)

    # fold the activation-free tail (256->128)(128->1) into one Linear(256->1)
    w34 = dw3 @ dw4                      # (256, 1) f32
    b34 = db3 @ dw4 + db4                # (1,)     f32
    params["d_w34"] = jnp.pad(
        w34, ((0, 0), (0, DISC_OUT_PAD - 1))).astype(WEIGHT_DTYPE)

    d_vec = jnp.concatenate([db0, db1, db2, jnp.pad(b34, (0, DISC_OUT_PAD - 1))])
    assert d_vec.shape == (D_VEC_N,)
    params["d_vec"] = d_vec.reshape(1, D_VEC_N)
    return params


# ------------------------------ forward --------------------------------------
def cgan_forward(params, inp, labels):
    emb = params["emb"][labels]  # (B, CLASSES) embedding gather (glue, plain JAX)

    if inp.ndim == 2:
        # generator path: torch does z = cat(embedding(labels), input); the
        # concat is folded into the kernel via the split first-layer weight.
        out = generator_apply(params, inp, emb)
        return out.reshape(inp.shape[0], *IMG_SHAPE)  # NCHW

    elif inp.ndim == 4:
        # discriminator path: x = cat(input.view(B, -1), embedding(labels))
        B = inp.shape[0]
        return discriminator_apply(params, inp.reshape(B, -1), emb)  # (B, 1)

    raise ValueError("input must be 2-D (latent) or 4-D (image, NCHW)")


# -------------------------------- main ---------------------------------------
if __name__ == "__main__":
    key = jax.random.PRNGKey(0)
    k_params, k_z, k_lab, k_img = jax.random.split(key, 4)

    params = init_params(k_params)

    B = 4
    labels = jax.random.randint(k_lab, (B,), 0, CLASSES, dtype=jnp.int32)

    # generator branch: latent z of dim 100 -> image (B, 1, 28, 28)
    z = jax.random.normal(k_z, (B, LATENT_DIM), jnp.float32)
    gen_img = cgan_forward(params, z, labels)
    gen_img = jax.block_until_ready(gen_img)
    assert gen_img.shape == (B, *IMG_SHAPE), gen_img.shape
    assert bool(jnp.all(jnp.isfinite(gen_img)))
    assert bool(jnp.all((gen_img >= -1.0) & (gen_img <= 1.0)))

    # discriminator branch: image (B, 1, 28, 28) NCHW -> score (B, 1)
    img = jax.random.normal(k_img, (B, *IMG_SHAPE), jnp.float32)
    score = cgan_forward(params, img, labels)
    score = jax.block_until_ready(score)
    assert score.shape == (B, 1), score.shape
    assert bool(jnp.all((score >= 0.0) & (score <= 1.0)))

    print("KERNEL_OK")
</pallas_src>

<mosaic_0001>
module attributes {stable_mosaic.version = 11 : i64} {
  func.func @_generator_kernel(%arg0: memref<4x10xf32, #tpu.memory_space<vmem>>, %arg1: memref<4x100xf32, #tpu.memory_space<vmem>>, %arg2: memref<10x128xbf16, #tpu.memory_space<vmem>>, %arg3: memref<100x128xbf16, #tpu.memory_space<vmem>>, %arg4: memref<128x256xbf16, #tpu.memory_space<vmem>>, %arg5: memref<256x512xbf16, #tpu.memory_space<vmem>>, %arg6: memref<512x1024xbf16, #tpu.memory_space<any>>, %arg7: memref<1024x896xbf16, #tpu.memory_space<any>>, %arg8: memref<1x6400xf32, #tpu.memory_space<vmem>>, %arg9: memref<4x896xf32, #tpu.memory_space<vmem>>, %arg10: memref<512x1024xbf16, #tpu.memory_space<vmem>>, %arg11: memref<1024x896xbf16, #tpu.memory_space<vmem>>, %arg12: memref<2x!tpu.dma_semaphore, #tpu.memory_space<semaphore_mem>>) attributes {dimension_semantics = [], scalar_prefetch = 0 : i64, scratch_operands = 3 : i64, tpu.core_type = #tpu.core_type<tc>} {
    %c0_i32 = arith.constant 0 : i32
    %0 = tpu.memref_slice %arg12[%c0_i32] : memref<2x!tpu.dma_semaphore, #tpu.memory_space<semaphore_mem>> -> memref<1x!tpu.dma_semaphore, #tpu.memory_space<semaphore_mem>>
    %1 = tpu.memref_squeeze %0 : memref<1x!tpu.dma_semaphore, #tpu.memory_space<semaphore_mem>> -> memref<!tpu.dma_semaphore, #tpu.memory_space<semaphore_mem>>
    tpu.enqueue_dma source(%arg6 : memref<512x1024xbf16, #tpu.memory_space<any>>) target(%arg10 : memref<512x1024xbf16, #tpu.memory_space<vmem>>) target_semaphore(%1 : memref<!tpu.dma_semaphore, #tpu.memory_space<semaphore_mem>>)
    %c1_i32 = arith.constant 1 : i32
    %2 = tpu.memref_slice %arg12[%c1_i32] : memref<2x!tpu.dma_semaphore, #tpu.memory_space<semaphore_mem>> -> memref<1x!tpu.dma_semaphore, #tpu.memory_space<semaphore_mem>>
    %3 = tpu.memref_squeeze %2 : memref<1x!tpu.dma_semaphore, #tpu.memory_space<semaphore_mem>> -> memref<!tpu.dma_semaphore, #tpu.memory_space<semaphore_mem>>
    tpu.enqueue_dma source(%arg7 : memref<1024x896xbf16, #tpu.memory_space<any>>) target(%arg11 : memref<1024x896xbf16, #tpu.memory_space<vmem>>) target_semaphore(%3 : memref<!tpu.dma_semaphore, #tpu.memory_space<semaphore_mem>>)
    %c0 = arith.constant 0 : index
    %c0_0 = arith.constant 0 : index
    %4 = vector.load %arg0[%c0, %c0_0] : memref<4x10xf32, #tpu.memory_space<vmem>>, vector<4x10xf32>
    %c0_1 = arith.constant 0 : index
    %c0_2 = arith.constant 0 : index
    %5 = vector.load %arg2[%c0_1, %c0_2] : memref<10x128xbf16, #tpu.memory_space<vmem>>, vector<10x128xbf16>
    %6 = arith.truncf %4 : vector<4x10xf32> to vector<4x10xbf16>
    %cst = arith.constant dense<0.000000e+00> : vector<4x128xf32>
    %7 = tpu.matmul %6, %5, %cst {dimension_numbers = #tpu.dot_dimension_numbers<[1], [0], [0], [1], [0, 0, 1, 1], [], []>} : vector<4x10xbf16>, vector<10x128xbf16>, vector<4x128xf32> -> vector<4x128xf32>
    %c0_3 = arith.constant 0 : index
    %c0_4 = arith.constant 0 : index
    %8 = vector.load %arg1[%c0_3, %c0_4] : memref<4x100xf32, #tpu.memory_space<vmem>>, vector<4x100xf32>
    %c0_5 = arith.constant 0 : index
    %c0_6 = arith.constant 0 : index
    %9 = vector.load %arg3[%c0_5, %c0_6] : memref<100x128xbf16, #tpu.memory_space<vmem>>, vector<100x128xbf16>
    %10 = arith.truncf %8 : vector<4x100xf32> to vector<4x100xbf16>
    %cst_7 = arith.constant dense<0.000000e+00> : vector<4x128xf32>
    %11 = tpu.matmul %10, %9, %cst_7 {dimension_numbers = #tpu.dot_dimension_numbers<[1], [0], [0], [1], [0, 0, 1, 1], [], []>} : vector<4x100xbf16>, vector<100x128xbf16>, vector<4x128xf32> -> vector<4x128xf32>
    %12 = arith.addf %7, %11 : vector<4x128xf32>
    %c0_8 = arith.constant 0 : index
    %c0_9 = arith.constant 0 : index
    %13 = vector.load %arg8[%c0_8, %c0_9] : memref<1x6400xf32, #tpu.memory_space<vmem>>, vector<1x128xf32>
    %14 = vector.broadcast %13 : vector<1x128xf32> to vector<4x128xf32>
    %15 = arith.addf %12, %14 : vector<4x128xf32>
    %cst_10 = arith.constant 0.000000e+00 : f32
    %16 = vector.broadcast %cst_10 : f32 to vector<4x128xf32>
    %17 = arith.cmpf oge, %15, %16 : vector<4x128xf32>
    %cst_11 = arith.constant 2.000000e-01 : f32
    %18 = vector.broadcast %cst_11 : f32 to vector<4x128xf32>
    %19 = arith.mulf %18, %15 : vector<4x128xf32>
    %20 = arith.select %17, %15, %19 : vector<4x128xi1>, vector<4x128xf32>
    %c0_12 = arith.constant 0 : index
    %c0_13 = arith.constant 0 : index
    %21 = vector.load %arg4[%c0_12, %c0_13] : memref<128x256xbf16, #tpu.memory_space<vmem>>, vector<128x256xbf16>
    %22 = arith.truncf %20 : vector<4x128xf32> to vector<4x128xbf16>
    %cst_14 = arith.constant dense<0.000000e+00> : vector<4x256xf32>
    %23 = tpu.matmul %22, %21, %cst_14 {dimension_numbers = #tpu.dot_dimension_numbers<[1], [0], [0], [1], [0, 0, 1, 1], [], []>} : vector<4x128xbf16>, vector<128x256xbf16>, vector<4x256xf32> -> vector<4x256xf32>
    %c0_15 = arith.constant 0 : index
    %c128 = arith.constant 128 : index
    %24 = vector.load %arg8[%c0_15, %c128] : memref<1x6400xf32, #tpu.memory_space<vmem>>, vector<1x256xf32>
    %25 = vector.broadcast %24 : vector<1x256xf32> to vector<4x256xf32>
    %26 = arith.addf %23, %25 : vector<4x256xf32>
    %c0_16 = arith.constant 0 : index
    %c384 = arith.constant 384 : index
    %27 = vector.load %arg8[%c0_16, %c384] : memref<1x6400xf32, #tpu.memory_space<vmem>>, vector<1x256xf32>
    %c0_17 = arith.constant 0 : index
    %c640 = arith.constant 640 : index
    %28 = vector.load %arg8[%c0_17, %c640] : memref<1x6400xf32, #tpu.memory_space<vmem>>, vector<1x256xf32>
    %cst_18 = arith.constant dense<0.000000e+00> : vector<256xf32>
    %29 = vector.multi_reduction <add>, %26, %cst_18 [0] : vector<4x256xf32> to vector<256xf32>
    %30 = vector.shape_cast %29 : vector<256xf32> to vector<1x256xf32>
    %cst_19 = arith.constant 4.000000e+00 : f32
    %31 = vector.broadcast %cst_19 : f32 to vector<1x256xf32>
    %32 = arith.divf %30, %31 : vector<1x256xf32>
    %33 = vector.broadcast %32 : vector<1x256xf32> to vector<4x256xf32>
    %34 = arith.subf %26, %33 : vector<4x256xf32>
    %35 = arith.mulf %34, %34 : vector<4x256xf32>
    %cst_20 = arith.constant dense<0.000000e+00> : vector<256xf32>
    %36 = vector.multi_reduction <add>, %35, %cst_20 [0] : vector<4x256xf32> to vector<256xf32>
    %37 = vector.shape_cast %36 : vector<256xf32> to vector<1x256xf32>
    %cst_21 = arith.constant 4.000000e+00 : f32
    %38 = vector.broadcast %cst_21 : f32 to vector<1x256xf32>
    %39 = arith.divf %37, %38 : vector<1x256xf32>
    %40 = vector.broadcast %32 : vector<1x256xf32> to vector<4x256xf32>
    %41 = arith.subf %26, %40 : vector<4x256xf32>
    %cst_22 = arith.constant 9.99999974E-6 : f32
    %42 = vector.broadcast %cst_22 : f32 to vector<1x256xf32>
    %43 = arith.addf %39, %42 : vector<1x256xf32>
    %44 = math.rsqrt %43 : vector<1x256xf32>
    %45 = vector.broadcast %44 : vector<1x256xf32> to vector<4x256xf32>
    %46 = arith.mulf %41, %45 : vector<4x256xf32>
    %47 = vector.broadcast %27 : vector<1x256xf32> to vector<4x256xf32>
    %48 = arith.mulf %46, %47 : vector<4x256xf32>
    %49 = vector.broadcast %28 : vector<1x256xf32> to vector<4x256xf32>
    %50 = arith.addf %48, %49 : vector<4x256xf32>
    %cst_23 = arith.constant 0.000000e+00 : f32
    %51 = vector.broadcast %cst_23 : f32 to vector<4x256xf32>
    %52 = arith.cmpf oge, %50, %51 : vector<4x256xf32>
    %cst_24 = arith.constant 2.000000e-01 : f32
    %53 = vector.broadcast %cst_24 : f32 to vector<4x256xf32>
    %54 = arith.mulf %53, %50 : vector<4x256xf32>
    %55 = arith.select %52, %50, %54 : vector<4x256xi1>, vector<4x256xf32>
    %c0_25 = arith.constant 0 : index
    %c0_26 = arith.constant 0 : index
    %56 = vector.load %arg5[%c0_25, %c0_26] : memref<256x512xbf16, #tpu.memory_space<vmem>>, vector<256x512xbf16>
    %57 = arith.truncf %55 : vector<4x256xf32> to vector<4x256xbf16>
    %cst_27 = arith.constant dense<0.000000e+00> : vector<4x512xf32>
    %58 = tpu.matmul %57, %56, %cst_27 {dimension_numbers = #tpu.dot_dimension_numbers<[1], [0], [0], [1], [0, 0, 1, 1], [], []>} : vector<4x256xbf16>, vector<256x512xbf16>, vector<4x512xf32> -> vector<4x512xf32>
    %c0_28 = arith.constant 0 : index
    %c896 = arith.constant 896 : index
    %59 = vector.load %arg8[%c0_28, %c896] : memref<1x6400xf32, #tpu.memory_space<vmem>>, vector<1x512xf32>
    %60 = vector.broadcast %59 : vector<1x512xf32> to vector<4x512xf32>
    %61 = arith.addf %58, %60 : vector<4x512xf32>
    %c0_29 = arith.constant 0 : index
    %c1408 = arith.constant 1408 : index
    %62 = vector.load %arg8[%c0_29, %c1408] : memref<1x6400xf32, #tpu.memory_space<vmem>>, vector<1x512xf32>
    %c0_30 = arith.constant 0 : index
    %c1920 = arith.constant 1920 : index
    %63 = vector.load %arg8[%c0_30, %c1920] : memref<1x6400xf32, #tpu.memory_space<vmem>>, vector<1x512xf32>
    %cst_31 = arith.constant dense<0.000000e+00> : vector<512xf32>
    %64 = vector.multi_reduction <add>, %61, %cst_31 [0] : vector<4x512xf32> to vector<512xf32>
    %65 = vector.shape_cast %64 : vector<512xf32> to vector<1x512xf32>
    %cst_32 = arith.constant 4.000000e+00 : f32
    %66 = vector.broadcast %cst_32 : f32 to vector<1x512xf32>
    %67 = arith.divf %65, %66 : vector<1x512xf32>
    %68 = vector.broadcast %67 : vector<1x512xf32> to vector<4x512xf32>
    %69 = arith.subf %61, %68 : vector<4x512xf32>
    %70 = arith.mulf %69, %69 : vector<4x512xf32>
    %cst_33 = arith.constant dense<0.000000e+00> : vector<512xf32>
    %71 = vector.multi_reduction <add>, %70, %cst_33 [0] : vector<4x512xf32> to vector<512xf32>
    %72 = vector.shape_cast %71 : vector<512xf32> to vector<1x512xf32>
    %cst_34 = arith.constant 4.000000e+00 : f32
    %73 = vector.broadcast %cst_34 : f32 to vector<1x512xf32>
    %74 = arith.divf %72, %73 : vector<1x512xf32>
    %75 = vector.broadcast %67 : vector<1x512xf32> to vector<4x512xf32>
    %76 = arith.subf %61, %75 : vector<4x512xf32>
    %cst_35 = arith.constant 9.99999974E-6 : f32
    %77 = vector.broadcast %cst_35 : f32 to vector<1x512xf32>
    %78 = arith.addf %74, %77 : vector<1x512xf32>
    %79 = math.rsqrt %78 : vector<1x512xf32>
    %80 = vector.broadcast %79 : vector<1x512xf32> to vector<4x512xf32>
    %81 = arith.mulf %76, %80 : vector<4x512xf32>
    %82 = vector.broadcast %62 : vector<1x512xf32> to vector<4x512xf32>
    %83 = arith.mulf %81, %82 : vector<4x512xf32>
    %84 = vector.broadcast %63 : vector<1x512xf32> to vector<4x512xf32>
    %85 = arith.addf %83, %84 : vector<4x512xf32>
    %cst_36 = arith.constant 0.000000e+00 : f32
    %86 = vector.broadcast %cst_36 : f32 to vector<4x512xf32>
    %87 = arith.cmpf oge, %85, %86 : vector<4x512xf32>
    %cst_37 = arith.constant 2.000000e-01 : f32
    %88 = vector.broadcast %cst_37 : f32 to vector<4x512xf32>
    %89 = arith.mulf %88, %85 : vector<4x512xf32>
    %90 = arith.select %87, %85, %89 : vector<4x512xi1>, vector<4x512xf32>
    %c0_i32_38 = arith.constant 0 : i32
    %91 = tpu.memref_slice %arg12[%c0_i32_38] : memref<2x!tpu.dma_semaphore, #tpu.memory_space<semaphore_mem>> -> memref<1x!tpu.dma_semaphore, #tpu.memory_space<semaphore_mem>>
    %92 = tpu.memref_squeeze %91 : memref<1x!tpu.dma_semaphore, #tpu.memory_space<semaphore_mem>> -> memref<!tpu.dma_semaphore, #tpu.memory_space<semaphore_mem>>
    tpu.wait_dma2 semaphore(%92 : memref<!tpu.dma_semaphore, #tpu.memory_space<semaphore_mem>>) src(%arg6 : memref<512x1024xbf16, #tpu.memory_space<any>>) dst(%arg10 : memref<512x1024xbf16, #tpu.memory_space<vmem>>)
    %c0_39 = arith.constant 0 : index
    %c0_40 = arith.constant 0 : index
    %93 = vector.load %arg10[%c0_39, %c0_40] : memref<512x1024xbf16, #tpu.memory_space<vmem>>, vector<512x1024xbf16>
    %94 = arith.truncf %90 : vector<4x512xf32> to vector<4x512xbf16>
    %cst_41 = arith.constant dense<0.000000e+00> : vector<4x1024xf32>
    %95 = tpu.matmul %94, %93, %cst_41 {dimension_numbers = #tpu.dot_dimension_numbers<[1], [0], [0], [1], [0, 0, 1, 1], [], []>} : vector<4x512xbf16>, vector<512x1024xbf16>, vector<4x1024xf32> -> vector<4x1024xf32>
    %c0_42 = arith.constant 0 : index
    %c2432 = arith.constant 2432 : index
    %96 = vector.load %arg8[%c0_42, %c2432] : memref<1x6400xf32, #tpu.memory_space<vmem>>, vector<1x1024xf32>
    %97 = vector.broadcast %96 : vector<1x1024xf32> to vector<4x1024xf32>
    %98 = arith.addf %95, %97 : vector<4x1024xf32>
    %c0_43 = arith.constant 0 : index
    %c3456 = arith.constant 3456 : index
    %99 = vector.load %arg8[%c0_43, %c3456] : memref<1x6400xf32, #tpu.memory_space<vmem>>, vector<1x1024xf32>
    %c0_44 = arith.constant 0 : index
    %c4480 = arith.constant 4480 : index
    %100 = vector.load %arg8[%c0_44, %c4480] : memref<1x6400xf32, #tpu.memory_space<vmem>>, vector<1x1024xf32>
    %cst_45 = arith.constant dense<0.000000e+00> : vector<1024xf32>
    %101 = vector.multi_reduction <add>, %98, %cst_45 [0] : vector<4x1024xf32> to vector<1024xf32>
    %102 = vector.shape_cast %101 : vector<1024xf32> to vector<1x1024xf32>
    %cst_46 = arith.constant 4.000000e+00 : f32
    %103 = vector.broadcast %cst_46 : f32 to vector<1x1024xf32>
    %104 = arith.divf %102, %103 : vector<1x1024xf32>
    %105 = vector.broadcast %104 : vector<1x1024xf32> to vector<4x1024xf32>
    %106 = arith.subf %98, %105 : vector<4x1024xf32>
    %107 = arith.mulf %106, %106 : vector<4x1024xf32>
    %cst_47 = arith.constant dense<0.000000e+00> : vector<1024xf32>
    %108 = vector.multi_reduction <add>, %107, %cst_47 [0] : vector<4x1024xf32> to vector<1024xf32>
    %109 = vector.shape_cast %108 : vector<1024xf32> to vector<1x1024xf32>
    %cst_48 = arith.constant 4.000000e+00 : f32
    %110 = vector.broadcast %cst_48 : f32 to vector<1x1024xf32>
    %111 = arith.divf %109, %110 : vector<1x1024xf32>
    %112 = vector.broadcast %104 : vector<1x1024xf32> to vector<4x1024xf32>
    %113 = arith.subf %98, %112 : vector<4x1024xf32>
    %cst_49 = arith.constant 9.99999974E-6 : f32
    %114 = vector.broadcast %cst_49 : f32 to vector<1x1024xf32>
    %115 = arith.addf %111, %114 : vector<1x1024xf32>
    %116 = math.rsqrt %115 : vector<1x1024xf32>
    %117 = vector.broadcast %116 : vector<1x1024xf32> to vector<4x1024xf32>
    %118 = arith.mulf %113, %117 : vector<4x1024xf32>
    %119 = vector.broadcast %99 : vector<1x1024xf32> to vector<4x1024xf32>
    %120 = arith.mulf %118, %119 : vector<4x1024xf32>
    %121 = vector.broadcast %100 : vector<1x1024xf32> to vector<4x1024xf32>
    %122 = arith.addf %120, %121 : vector<4x1024xf32>
    %cst_50 = arith.constant 0.000000e+00 : f32
    %123 = vector.broadcast %cst_50 : f32 to vector<4x1024xf32>
    %124 = arith.cmpf oge, %122, %123 : vector<4x1024xf32>
    %cst_51 = arith.constant 2.000000e-01 : f32
    %125 = vector.broadcast %cst_51 : f32 to vector<4x1024xf32>
    %126 = arith.mulf %125, %122 : vector<4x1024xf32>
    %127 = arith.select %124, %122, %126 : vector<4x1024xi1>, vector<4x1024xf32>
    %c1_i32_52 = arith.constant 1 : i32
    %128 = tpu.memref_slice %arg12[%c1_i32_52] : memref<2x!tpu.dma_semaphore, #tpu.memory_space<semaphore_mem>> -> memref<1x!tpu.dma_semaphore, #tpu.memory_space<semaphore_mem>>
    %129 = tpu.memref_squeeze %128 : memref<1x!tpu.dma_semaphore, #tpu.memory_space<semaphore_mem>> -> memref<!tpu.dma_semaphore, #tpu.memory_space<semaphore_mem>>
    tpu.wait_dma2 semaphore(%129 : memref<!tpu.dma_semaphore, #tpu.memory_space<semaphore_mem>>) src(%arg7 : memref<1024x896xbf16, #tpu.memory_space<any>>) dst(%arg11 : memref<1024x896xbf16, #tpu.memory_space<vmem>>)
    %c0_53 = arith.constant 0 : index
    %c0_54 = arith.constant 0 : index
    %130 = vector.load %arg11[%c0_53, %c0_54] : memref<1024x896xbf16, #tpu.memory_space<vmem>>, vector<1024x896xbf16>
    %131 = arith.truncf %127 : vector<4x1024xf32> to vector<4x1024xbf16>
    %cst_55 = arith.constant dense<0.000000e+00> : vector<4x896xf32>
    %132 = tpu.matmul %131, %130, %cst_55 {dimension_numbers = #tpu.dot_dimension_numbers<[1], [0], [0], [1], [0, 0, 1, 1], [], []>} : vector<4x1024xbf16>, vector<1024x896xbf16>, vector<4x896xf32> -> vector<4x896xf32>
    %c0_56 = arith.constant 0 : index
    %c5504 = arith.constant 5504 : index
    %133 = vector.load %arg8[%c0_56, %c5504] : memref<1x6400xf32, #tpu.memory_space<vmem>>, vector<1x896xf32>
    %134 = vector.broadcast %133 : vector<1x896xf32> to vector<4x896xf32>
    %135 = arith.addf %132, %134 : vector<4x896xf32>
    %136 = math.tanh %135 : vector<4x896xf32>
    %c0_57 = arith.constant 0 : index
    %c0_58 = arith.constant 0 : index
    %137 = vector.load %arg9[%c0_57, %c0_58] : memref<4x896xf32, #tpu.memory_space<vmem>>, vector<4x896xf32>
    tpu.vector_store %arg9[%c0_57, %c0_58], %136 {strides = array<i32>} : memref<4x896xf32, #tpu.memory_space<vmem>>, vector<4x896xf32>,
    return
  }
}

</mosaic_0001>

<llo_original>
// kernel: tpu_custom_call.1
$region0: #{tpu_custom_call.1}
  #allocation0 [shape = 'u32[]', space=smem, size = 0x4, offset = 0x4, fixed_abs, tag = 'smem constant byte address 0x4 - core index']
  #allocation1 [shape = 'u32[144,128]{1,0:T(1,128)}', space=vmem, size = 0x12000, scoped, tag = 'internal scratch']
  #allocation2 [shape = 'bf16[512,1024]{1,0:T(16,128)(2,1)}', space=vmem, size = 0x100000, scoped, tag = 'scratch operand']
  #allocation3 [shape = 'bf16[1024,896]{1,0:T(16,128)(2,1)}', space=vmem, size = 0x1c0000, scoped, tag = 'scratch operand']
  #allocation4 [shape = 's32[2]{0}', space=sflag, size = 0x8, scoped, tag = 'scratch operand']
  #allocation18 [shape = 's32[]', space=sflag, size = 0x4, offset = 0, fixed_abs, tag = 'sflag constant byte address 0x0 - dummy sync flag']
  #allocation20 [shape = 's32[]', space=sflag, size = 0x4, offset = 0, fixed_abs, tag = 'sflag constant byte address 0x0 - dummy sync flag']
  %s0 = inlined_call_operand.hbm [shape: f32[4,10], index: 0, kind: input, shape index: {}]
  %s1 = inlined_call_operand.hbm [shape: f32[4,100], index: 1, kind: input, shape index: {}]
  %s2 = inlined_call_operand.hbm [shape: bf16[10,128], index: 2, kind: input, shape index: {}]
  %s3 = inlined_call_operand.hbm [shape: bf16[100,128], index: 3, kind: input, shape index: {}]
  %s4 = inlined_call_operand.hbm [shape: bf16[128,256], index: 4, kind: input, shape index: {}]
  %s5 = inlined_call_operand.hbm [shape: bf16[256,512], index: 5, kind: input, shape index: {}]
  %s6 = inlined_call_operand.hbm [shape: bf16[512,1024], index: 6, kind: input, shape index: {}]
  %s7 = inlined_call_operand.hbm [shape: bf16[1024,896], index: 7, kind: input, shape index: {}]
  %s8 = inlined_call_operand.hbm [shape: f32[1,6400], index: 8, kind: input, shape index: {}]
  %s9 = inlined_call_operand.hbm [shape: f32[4,896], index: 9, kind: output, shape index: {}]
  %s10 = sld [smem:[#allocation0]]
  $region66: #{tpu_custom_call.1} parent=0
    _
  %s12 = ssub.s32 1, %s10
  %s13 = scalar_select 0, %s12, %s10
  $region1: #{tpu_custom_call.1} parent=0
    #allocation5 [shape = 'u8[2048]{0}', space=vmem, size = 0x800, scoped, tag = 'input window, operand 0, single buffered']
    #allocation6 [shape = 's32[1]{0}', space=sflag, size = 0x4, scoped, tag = 'scoped memory for tpu_custom_call.1']
    #allocation7 [shape = 's32[1]{0}', space=sflag, size = 0x4, scoped, tag = 'scoped memory for tpu_custom_call.1']
    #allocation8 [shape = 'u8[2048]{0}', space=vmem, size = 0x800, scoped, tag = 'input window, operand 1, single buffered']
    #allocation9 [shape = 's32[1]{0}', space=sflag, size = 0x4, scoped, tag = 'scoped memory for tpu_custom_call.1']
    #allocation10 [shape = 'u8[4096]{0}', space=vmem, size = 0x1000, scoped, tag = 'input window, operand 2, single buffered']
    #allocation11 [shape = 'u8[26624]{0}', space=vmem, size = 0x6800, scoped, tag = 'input window, operand 3, single buffered']
    #allocation12 [shape = 's32[1]{0}', space=sflag, size = 0x4, scoped, tag = 'scoped memory for tpu_custom_call.1']
    #allocation13 [shape = 'u8[65536]{0}', space=vmem, size = 0x10000, scoped, tag = 'input window, operand 4, single buffered']
    #allocation14 [shape = 'u8[262144]{0}', space=vmem, size = 0x40000, scoped, tag = 'input window, operand 5, single buffered']
    #allocation15 [shape = 's32[1]{0}', space=sflag, size = 0x4, scoped, tag = 'scoped memory for tpu_custom_call.1']
    #allocation16 [shape = 'u8[25600]{0}', space=vmem, size = 0x6400, scoped, tag = 'input window, operand 8, single buffered']
    #allocation17 [shape = 'u8[14336]{0}', space=vmem, size = 0x3800, scoped, tag = 'output window, operand 0, single buffered']
    #allocation19 [shape = 'u32[9]{0}', space=smem, size = 0x24, scoped, tag = 'DMA stride descriptor']
    #allocation21 [shape = 'u32[9]{0}', space=smem, size = 0x24, scoped, tag = 'DMA stride descriptor']
    %14 = vsyncpa [#allocation6], 0
    %15 = vsyncpa [#allocation9], 0
    %16 = vsyncpa [#allocation12], 0
    %17 = vsyncpa [#allocation15], 0
    %18 = vsyncpa [#allocation7], 0
    // Predicated region
    $region2: #{tpu_custom_call.1} parent=1 // pred_check
      _
    $region3: #{tpu_custom_call.1} parent=1 // pred_check_branch
      %20 = sbr.rel (0) target = $region5
    $region4: #{tpu_custom_call.1} parent=1 // pred_region
      %s22 = ssub.s32 64, 64
      %23 = vsyncadd [#allocation6], %s22
      %s25 = sshll.u32 [#allocation5], 4
      %s26 = int_to_ptr.vmem [resolvable:$true] %s25
      %28 = dma.hbm_to_vmem [thread:$0]  %s0, 64, %s26, [#allocation6]
    $region5: #{tpu_custom_call.1} parent=1 // pred_fallthru
      _
    // Predicated region
    $region6: #{tpu_custom_call.1} parent=1 // pred_check
      _
    $region7: #{tpu_custom_call.1} parent=1 // pred_check_branch
      %30 = sbr.rel (0) target = $region9
    $region8: #{tpu_custom_call.1} parent=1 // pred_region
      %s32 = ssub.s32 64, 64
      %33 = vsyncadd [#allocation9], %s32
      %s35 = sshll.u32 [#allocation8], 4
      %s36 = int_to_ptr.vmem [resolvable:$true] %s35
      %38 = dma.hbm_to_vmem [thread:$0]  %s1, 64, %s36, [#allocation9]
    $region9: #{tpu_custom_call.1} parent=1 // pred_fallthru
      _
    // Predicated region
    $region10: #{tpu_custom_call.1} parent=1 // pred_check
      _
    $region11: #{tpu_custom_call.1} parent=1 // pred_check_branch
      %40 = sbr.rel (0) target = $region13
    $region12: #{tpu_custom_call.1} parent=1 // pred_region
      %s42 = ssub.s32 128, 128
      %43 = vsyncadd [#allocation9], %s42
      %s44 = sshll.u32 [#allocation10], 4
      %s45 = int_to_ptr.vmem [resolvable:$true] %s44
      %50 = dma.hbm_to_vmem [thread:$0]  %s2, 128, %s45, [#allocation9], 64, 64, 4
    $region13: #{tpu_custom_call.1} parent=1 // pred_fallthru
      _
    // Predicated region
    $region14: #{tpu_custom_call.1} parent=1 // pred_check
      _
    $region15: #{tpu_custom_call.1} parent=1 // pred_check_branch
      %52 = sbr.rel (0) target = $region17
    $region16: #{tpu_custom_call.1} parent=1 // pred_region
      %s54 = ssub.s32 832, 832
      %55 = vsyncadd [#allocation12], %s54
      %s56 = sshll.u32 [#allocation11], 4
      %s57 = int_to_ptr.vmem [resolvable:$true] %s56
      %62 = dma.hbm_to_vmem [thread:$0]  %s3, 832, %s57, [#allocation12], 64, 64, 4
    $region17: #{tpu_custom_call.1} parent=1 // pred_fallthru
      _
    // Predicated region
    $region18: #{tpu_custom_call.1} parent=1 // pred_check
      _
    $region19: #{tpu_custom_call.1} parent=1 // pred_check_branch
      %64 = sbr.rel (0) target = $region21
    $region20: #{tpu_custom_call.1} parent=1 // pred_region
      %s66 = ssub.s32 2048, 2048
      %67 = vsyncadd [#allocation12], %s66
      %s68 = sshll.u32 [#allocation13], 4
      %s69 = int_to_ptr.vmem [resolvable:$true] %s68
      %74 = dma.hbm_to_vmem [thread:$0]  %s4, 2048, %s69, [#allocation12], 128, 128, 8
    $region21: #{tpu_custom_call.1} parent=1 // pred_fallthru
      _
    // Predicated region
    $region22: #{tpu_custom_call.1} parent=1 // pred_check
      _
    $region23: #{tpu_custom_call.1} parent=1 // pred_check_branch
      %76 = sbr.rel (0) target = $region25
    $region24: #{tpu_custom_call.1} parent=1 // pred_region
      %s78 = ssub.s32 8192, 8192
      %79 = vsyncadd [#allocation15], %s78
      %s80 = sshll.u32 [#allocation14], 4
      %s81 = int_to_ptr.vmem [resolvable:$true] %s80
      %86 = dma.hbm_to_vmem [thread:$0]  %s5, 8192, %s81, [#allocation15], 256, 256, 16
    $region25: #{tpu_custom_call.1} parent=1 // pred_fallthru
      _
    // Predicated region
    $region26: #{tpu_custom_call.1} parent=1 // pred_check
      _
    $region27: #{tpu_custom_call.1} parent=1 // pred_check_branch
      %88 = sbr.rel (0) target = $region29
    $region28: #{tpu_custom_call.1} parent=1 // pred_region
      %s90 = ssub.s32 800, 800
      %91 = vsyncadd [#allocation15], %s90
      %s93 = sshll.u32 [#allocation16], 4
      %s94 = int_to_ptr.vmem [resolvable:$true] %s93
      %96 = dma.hbm_to_vmem [thread:$0]  %s8, 800, %s94, [#allocation15]
    $region29: #{tpu_custom_call.1} parent=1 // pred_fallthru
      _
    // Predicated region
    $region30: #{tpu_custom_call.1} parent=1 // pred_check
      _
    $region31: #{tpu_custom_call.1} parent=1 // pred_check_branch
      %98 = sbr.rel (0) target = $region33
    $region32: #{tpu_custom_call.1} parent=1 // pred_region
      %99 = dma.done [#allocation6], 64
    $region33: #{tpu_custom_call.1} parent=1 // pred_fallthru
      _
    // Predicated region
    $region34: #{tpu_custom_call.1} parent=1 // pred_check
      _
    $region35: #{tpu_custom_call.1} parent=1 // pred_check_branch
      %101 = sbr.rel (0) target = $region37
    $region36: #{tpu_custom_call.1} parent=1 // pred_region
      %102 = dma.done [#allocation9], 64
    $region37: #{tpu_custom_call.1} parent=1 // pred_fallthru
      _
    // Predicated region
    $region38: #{tpu_custom_call.1} parent=1 // pred_check
      _
    $region39: #{tpu_custom_call.1} parent=1 // pred_check_branch
      %104 = sbr.rel (0) target = $region41
    $region40: #{tpu_custom_call.1} parent=1 // pred_region
      %105 = dma.done [#allocation9], 128
    $region41: #{tpu_custom_call.1} parent=1 // pred_fallthru
      _
    // Predicated region
    $region42: #{tpu_custom_call.1} parent=1 // pred_check
      _
    $region43: #{tpu_custom_call.1} parent=1 // pred_check_branch
      %107 = sbr.rel (0) target = $region45
    $region44: #{tpu_custom_call.1} parent=1 // pred_region
      %108 = dma.done [#allocation12], 832
    $region45: #{tpu_custom_call.1} parent=1 // pred_fallthru
      _
    // Predicated region
    $region46: #{tpu_custom_call.1} parent=1 // pred_check
      _
    $region47: #{tpu_custom_call.1} parent=1 // pred_check_branch
      %110 = sbr.rel (0) target = $region49
    $region48: #{tpu_custom_call.1} parent=1 // pred_region
      %111 = dma.done [#allocation12], 2048
    $region49: #{tpu_custom_call.1} parent=1 // pred_fallthru
      _
    // Predicated region
    $region50: #{tpu_custom_call.1} parent=1 // pred_check
      _
    $region51: #{tpu_custom_call.1} parent=1 // pred_check_branch
      %113 = sbr.rel (0) target = $region53
    $region52: #{tpu_custom_call.1} parent=1 // pred_region
      %114 = dma.done [#allocation15], 8192
    $region53: #{tpu_custom_call.1} parent=1 // pred_fallthru
      _
    // Predicated region
    $region54: #{tpu_custom_call.1} parent=1 // pred_check
      _
    $region55: #{tpu_custom_call.1} parent=1 // pred_check_branch
      %116 = sbr.rel (0) target = $region57
    $region56: #{tpu_custom_call.1} parent=1 // pred_region
      %117 = dma.done [#allocation15], 800
    $region57: #{tpu_custom_call.1} parent=1 // pred_fallthru
      _
    %s120 = sshll.u32 1, 14
    %s121 = sxor.u32 4294967295, %s120
    %s123 = sld [smem:[#allocation0]]
    %s124 = sadd.s32 2, %s123
    %s126 = sshll.u32 7, 26
    %s127 = sxor.u32 4294967295, %s126
    %s128 = sand.u32 0, %s127
    %s129 = sshll.u32 %s124, 26
    %s130 = sor.u32 %s128, %s129
    %s131 = sshll.u32 [#allocation2], 4
    %s132 = int_to_ptr.vmem [resolvable:$true] %s131
    %135 = sst [smem:[#allocation19]] 1024
    %s136 = scalar_lea.smem [#allocation19], 1
    %137 = sst [smem:[%s136]] 1024
    %s138 = scalar_lea.smem [#allocation19], 2
    %139 = sst [smem:[%s138]] 8
    %s140 = scalar_lea.smem [#allocation19], 3
    %141 = sst [smem:[%s140]] 64
    %s142 = scalar_lea.smem [#allocation19], 4
    %143 = sst [smem:[%s142]] 128
    %s144 = scalar_lea.smem [#allocation19], 5
    %145 = sst [smem:[%s144]] 2
    %s146 = scalar_lea.smem [#allocation19], 6
    %147 = sst [smem:[%s146]] 512
    %s148 = scalar_lea.smem [#allocation19], 7
    %149 = sst [smem:[%s148]] 64
    %s150 = scalar_lea.smem [#allocation19], 8
    %151 = sst [smem:[%s150]] 4
    %153 = dma.general %s6, 32768, %s132, [#allocation4], [#allocation18], [#allocation19], %s130, 0
    %s154 = scalar_lea.sflag [#allocation4], 1
    %s156 = sshll.u32 1, 14
    %s157 = sxor.u32 4294967295, %s156
    %s159 = sadd.s32 2, %s123
    %s161 = sshll.u32 7, 26
    %s162 = sxor.u32 4294967295, %s161
    %s163 = sand.u32 0, %s162
    %s164 = sshll.u32 %s159, 26
    %s165 = sor.u32 %s163, %s164
    %s166 = sshll.u32 [#allocation3], 4
    %s167 = int_to_ptr.vmem [resolvable:$true] %s166
    %170 = sst [smem:[#allocation21]] 896
    %s171 = scalar_lea.smem [#allocation21], 1
    %172 = sst [smem:[%s171]] 896
    %s173 = scalar_lea.smem [#allocation21], 2
    %174 = sst [smem:[%s173]] 7
    %s175 = scalar_lea.smem [#allocation21], 3
    %176 = sst [smem:[%s175]] 64
    %s177 = scalar_lea.smem [#allocation21], 4
    %178 = sst [smem:[%s177]] 128
    %s179 = scalar_lea.smem [#allocation21], 5
    %180 = sst [smem:[%s179]] 2
    %s181 = scalar_lea.smem [#allocation21], 6
    %182 = sst [smem:[%s181]] 448
    %s183 = scalar_lea.smem [#allocation21], 7
    %184 = sst [smem:[%s183]] 64
    %s185 = scalar_lea.smem [#allocation21], 8
    %186 = sst [smem:[%s185]] 4
    %188 = dma.general %s7, 57344, %s167, %s154, [#allocation20], [#allocation21], %s165, 0
    %v189 = vld [vmem:[#allocation5] sm:$0xf]
    %v190 = vld [vmem:[#allocation10] sm:$0xf]
    %v191 = vld [vmem:[#allocation10 + $0x4] sm:$0x1]
    %v192 = vpack.c.bf16 %v189, %v189
    %v193 = vld [vmem:[#allocation8] sm:$0xf]
    %v194 = vld [vmem:[#allocation11] sm:$0xf]
    %v195 = vld [vmem:[#allocation11 + $0x4] sm:$0xf]
    %v196 = vld [vmem:[#allocation11 + $0x8] sm:$0xf]
    %v197 = vld [vmem:[#allocation11 + $0xc] sm:$0xf]
    %v198 = vld [vmem:[#allocation11 + $0x10] sm:$0xf]
    %v199 = vld [vmem:[#allocation11 + $0x14] sm:$0xf]
    %v200 = vld [vmem:[#allocation11 + $0x18] sm:$0xf]
    %v201 = vld [vmem:[#allocation11 + $0x1c] sm:$0xf]
    %v202 = vld [vmem:[#allocation11 + $0x20] sm:$0xf]
    %v203 = vld [vmem:[#allocation11 + $0x24] sm:$0xf]
    %v204 = vld [vmem:[#allocation11 + $0x28] sm:$0xf]
    %v205 = vld [vmem:[#allocation11 + $0x2c] sm:$0xf]
    %v206 = vld [vmem:[#allocation11 + $0x30] sm:$0x3]
    %v207 = vpack.c.bf16 %v193, %v193
    %v221 = vunpack.c.l.b16 %v194
    %v222 = vunpack.c.l.b16 %v195
    %v223 = vunpack.c.l.b16 %v196
    %v224 = vunpack.c.l.b16 %v197
    %v225 = vunpack.c.l.b16 %v198
    %v226 = vunpack.c.l.b16 %v199
    %v227 = vunpack.c.l.b16 %v200
    %v228 = vunpack.c.l.b16 %v201
    %v229 = vunpack.c.l.b16 %v202
    %v230 = vunpack.c.l.b16 %v203
    %v231 = vunpack.c.l.b16 %v204
    %v232 = vunpack.c.l.b16 %v205
    %v233 = vunpack.c.l.b16 %v206
    %v234 = vpack.c.b16 %v222, %v221
    %v235 = vpack.c.b16 %v224, %v223
    %v236 = vpack.c.b16 %v226, %v225
    %v237 = vpack.c.b16 %v228, %v227
    %v238 = vpack.c.b16 %v230, %v229
    %v239 = vpack.c.b16 %v232, %v231
    %v240 = vpack.c.b16 %v233, %v233
    %vm247 = vcmask 818176
    %v249 = vsel %vm247, %v207, 0
    %vm251 = vcmask 1041408
    %v253 = vsel %vm251, %v240, 0
    %255 = vmatprep.subr.bf16.mxu0 0
    %256 = vmatpush1.bf16.msra.mxu0 %v234
    %257 = vmatprep.subr.bf16.mxu0 0
    %258 = vmatpush1.bf16.msra.mxu0 %v235
    %259 = vmatprep.subr.bf16.mxu0 0
    %260 = vmatpush1.bf16.msra.mxu0 %v236
    %261 = vmatprep.subr.bf16.mxu0 0
    %262 = vmatpush1.bf16.msra.mxu0 %v237
    %263 = vmatprep.subr.bf16.mxu0 0
    %264 = vmatpush1.bf16.msra.mxu0 %v238
    %265 = vmatprep.subr.bf16.mxu0 0
    %266 = vmatpush1.bf16.msra.mxu0 %v239
    %267 = vmatprep.subr.bf16.mxu0 0
    %268 = vmatpush1.bf16.msra.mxu0 %v253
    %269 = vmatprep.subr.bf16.mxu0 0
    %270 = vmatpush1.bf16.msra.mxu0 0
    %271 = vmatprep.subr.bf16.mxu0 0
    %272 = vmatpush1.bf16.msra.mxu0 0
    %273 = vmatprep.subr.bf16.mxu0 0
    %274 = vmatpush1.bf16.msra.mxu0 0
    %275 = vmatprep.subr.bf16.mxu0 0
    %276 = vmatpush1.bf16.msra.mxu0 0
    %277 = vmatprep.subr.bf16.mxu0 0
    %278 = vmatpush1.bf16.msra.mxu0 0
    %279 = vmatprep.subr.bf16.mxu0 0
    %280 = vmatpush1.bf16.msra.mxu0 0
    %281 = vmatprep.subr.bf16.mxu0 0
    %282 = vmatpush1.bf16.msra.mxu0 0
    %283 = vmatprep.subr.bf16.mxu0 0
    %284 = vmatpush1.bf16.msra.mxu0 0
    %285 = vmatprep.subr.bf16.mxu0 0
    %286 = vmatpush1.bf16.msra.mxu0 0
    %287 = vmatprep.mubr.bf16.mxu0 0
    %288 = vmatmul.mubr.bf16.gmra.mrb[0].mxu0 %v249
    %v289 = vpop.f32.mrb[0].mxu0
    %v290 = vadd.f32 0.0, %v289
    %v291 = vpop.f32.mrb[0].mxu0
    %v292 = vpop.f32.mrb[0].mxu0
    %v293 = vpop.f32.mrb[0].mxu0
    %294 = vdwg.mxu0
    %v297 = vunpack.c.l.b16 %v190
    %v298 = vunpack.c.l.b16 %v191
    %v299 = vpack.c.b16 %v298, %v297
    %vm300 = vcmask 80896
    %v302 = vsel %vm300, %v192, 0
    %vm304 = vcmask 1044480
    %v306 = vsel %vm304, %v299, 0
    %308 = vmatprep.subr.bf16.mxu0 0
    %309 = vmatpush1.bf16.msra.mxu0 %v306
    %310 = vmatprep.subr.bf16.mxu0 0
    %311 = vmatpush1.bf16.msra.mxu0 0
    %312 = vmatprep.subr.bf16.mxu0 0
    %313 = vmatpush1.bf16.msra.mxu0 0
    %314 = vmatprep.subr.bf16.mxu0 0
    %315 = vmatpush1.bf16.msra.mxu0 0
    %316 = vmatprep.subr.bf16.mxu0 0
    %317 = vmatpush1.bf16.msra.mxu0 0
    %318 = vmatprep.subr.bf16.mxu0 0
    %319 = vmatpush1.bf16.msra.mxu0 0
    %320 = vmatprep.subr.bf16.mxu0 0
    %321 = vmatpush1.bf16.msra.mxu0 0
    %322 = vmatprep.subr.bf16.mxu0 0
    %323 = vmatpush1.bf16.msra.mxu0 0
    %324 = vmatprep.subr.bf16.mxu0 0
    %325 = vmatpush1.bf16.msra.mxu0 0
    %326 = vmatprep.subr.bf16.mxu0 0
    %327 = vmatpush1.bf16.msra.mxu0 0
    %328 = vmatprep.subr.bf16.mxu0 0
    %329 = vmatpush1.bf16.msra.mxu0 0
    %330 = vmatprep.subr.bf16.mxu0 0
    %331 = vmatpush1.bf16.msra.mxu0 0
    %332 = vmatprep.subr.bf16.mxu0 0
    %333 = vmatpush1.bf16.msra.mxu0 0
    %334 = vmatprep.subr.bf16.mxu0 0
    %335 = vmatpush1.bf16.msra.mxu0 0
    %336 = vmatprep.subr.bf16.mxu0 0
    %337 = vmatpush1.bf16.msra.mxu0 0
    %338 = vmatprep.subr.bf16.mxu0 0
    %339 = vmatpush1.bf16.msra.mxu0 0
    %340 = vmatprep.mubr.bf16.mxu0 0
    %341 = vmatmul.mubr.bf16.gmra.mrb[0].mxu0 %v302
    %v342 = vpop.f32.mrb[0].mxu0
    %v343 = vadd.f32 %v290, %v342
    %v344 = vpop.f32.mrb[0].mxu0
    %v345 = vpop.f32.mrb[0].mxu0
    %v346 = vpop.f32.mrb[0].mxu0
    %347 = vdwg.mxu0
    %v348 = vld [vmem:[#allocation16] sm:$0x1]
    %v350 = vlaneseq
    %v351 = vshrl.u32 %v350, 7
    %v352 = vsub.s32 0, %v351
    %v353 = vrot.slane %v348, %v352
    %v355 = vadd.f32 %v343, %v353
    %vm356 = vcmp.ge.f32.partialorder %v355, 0.0
    %v357 = vmul.f32 %v355, 0.2
    %v358 = vsel %vm356, %v355, %v357
    %v359 = vld [vmem:[#allocation13] sm:$0xff]
    %v360 = vld [vmem:[#allocation13 + $0x8] sm:$0xff]
    %v361 = vld [vmem:[#allocation13 + $0x10] sm:$0xff]
    %v362 = vld [vmem:[#allocation13 + $0x18] sm:$0xff]
    %v363 = vld [vmem:[#allocation13 + $0x20] sm:$0xff]
    %v364 = vld [vmem:[#allocation13 + $0x28] sm:$0xff]
    %v365 = vld [vmem:[#allocation13 + $0x30] sm:$0xff]
    %v366 = vld [vmem:[#allocation13 + $0x38] sm:$0xff]
    %v367 = vld [vmem:[#allocation13 + $0x40] sm:$0xff]
    %v368 = vld [vmem:[#allocation13 + $0x48] sm:$0xff]
    %v369 = vld [vmem:[#allocation13 + $0x50] sm:$0xff]
    %v370 = vld [vmem:[#allocation13 + $0x58] sm:$0xff]
    %v371 = vld [vmem:[#allocation13 + $0x60] sm:$0xff]
    %v372 = vld [vmem:[#allocation13 + $0x68] sm:$0xff]
    %v373 = vld [vmem:[#allocation13 + $0x70] sm:$0xff]
    %v374 = vld [vmem:[#allocation13 + $0x78] sm:$0xff]
    %v375 = vpack.c.bf16 %v358, %v358
    %v376 = vld [vmem:[#allocation16 + $0x1] sm:$0x3]
    %v378 = vlaneseq
    %v379 = vshrl.u32 %v378, 7
    %v380 = vsub.s32 0, %v379
    %v381 = vrot.slane %v376, %v380
    %v382 = vlaneseq
    %v383 = vshrl.u32 %v382, 7
    %v384 = vsub.s32 1, %v383
    %v385 = vrot.slane %v376, %v384
    %v404 = vunpack.c.l.b16 %v359
    %v405 = vunpack.c.h.b16 %v359
    %v406 = vunpack.c.l.b16 %v360
    %v407 = vunpack.c.h.b16 %v360
    %v408 = vunpack.c.l.b16 %v361
    %v409 = vunpack.c.h.b16 %v361
    %v410 = vunpack.c.l.b16 %v362
    %v411 = vunpack.c.h.b16 %v362
    %v412 = vunpack.c.l.b16 %v363
    %v413 = vunpack.c.h.b16 %v363
    %v414 = vunpack.c.l.b16 %v364
    %v415 = vunpack.c.h.b16 %v364
    %v416 = vunpack.c.l.b16 %v365
    %v417 = vunpack.c.h.b16 %v365
    %v418 = vunpack.c.l.b16 %v366
    %v419 = vunpack.c.h.b16 %v366
    %v420 = vunpack.c.l.b16 %v367
    %v421 = vunpack.c.h.b16 %v367
    %v422 = vunpack.c.l.b16 %v368
    %v423 = vunpack.c.h.b16 %v368
    %v424 = vunpack.c.l.b16 %v369
    %v425 = vunpack.c.h.b16 %v369
    %v426 = vunpack.c.l.b16 %v370
    %v427 = vunpack.c.h.b16 %v370
    %v428 = vunpack.c.l.b16 %v371
    %v429 = vunpack.c.h.b16 %v371
    %v430 = vunpack.c.l.b16 %v372
    %v431 = vunpack.c.h.b16 %v372
    %v432 = vunpack.c.l.b16 %v373
    %v433 = vunpack.c.h.b16 %v373
    %v434 = vunpack.c.l.b16 %v374
    %v435 = vunpack.c.h.b16 %v374
    %v436 = vpack.c.b16 %v406, %v404
    %v437 = vpack.c.b16 %v407, %v405
    %v438 = vpack.c.b16 %v410, %v408
    %v439 = vpack.c.b16 %v411, %v409
    %v440 = vpack.c.b16 %v414, %v412
    %v441 = vpack.c.b16 %v415, %v413
    %v442 = vpack.c.b16 %v418, %v416
    %v443 = vpack.c.b16 %v419, %v417
    %v444 = vpack.c.b16 %v422, %v420
    %v445 = vpack.c.b16 %v423, %v421
    %v446 = vpack.c.b16 %v426, %v424
    %v447 = vpack.c.b16 %v427, %v425
    %v448 = vpack.c.b16 %v430, %v428
    %v449 = vpack.c.b16 %v431, %v429
    %v450 = vpack.c.b16 %v434, %v432
    %v451 = vpack.c.b16 %v435, %v433
    %468 = vmatprep.subr.bf16.mxu0 %v437
    %469 = vmatpush1.bf16.msra.mxu0 %v436
    %470 = vmatprep.subr.bf16.mxu0 %v439
    %471 = vmatpush1.bf16.msra.mxu0 %v438
    %472 = vmatprep.subr.bf16.mxu0 %v441
    %473 = vmatpush1.bf16.msra.mxu0 %v440
    %474 = vmatprep.subr.bf16.mxu0 %v443
    %475 = vmatpush1.bf16.msra.mxu0 %v442
    %476 = vmatprep.subr.bf16.mxu0 %v445
    %477 = vmatpush1.bf16.msra.mxu0 %v444
    %478 = vmatprep.subr.bf16.mxu0 %v447
    %479 = vmatpush1.bf16.msra.mxu0 %v446
    %480 = vmatprep.subr.bf16.mxu0 %v449
    %481 = vmatpush1.bf16.msra.mxu0 %v448
    %482 = vmatprep.subr.bf16.mxu0 %v451
    %483 = vmatpush1.bf16.msra.mxu0 %v450
    %484 = vmatprep.subr.bf16.mxu0 0
    %485 = vmatpush1.bf16.msra.mxu0 0
    %486 = vmatprep.subr.bf16.mxu0 0
    %487 = vmatpush1.bf16.msra.mxu0 0
    %488 = vmatprep.subr.bf16.mxu0 0
    %489 = vmatpush1.bf16.msra.mxu0 0
    %490 = vmatprep.subr.bf16.mxu0 0
    %491 = vmatpush1.bf16.msra.mxu0 0
    %492 = vmatprep.subr.bf16.mxu0 0
    %493 = vmatpush1.bf16.msra.mxu0 0
    %494 = vmatprep.subr.bf16.mxu0 0
    %495 = vmatpush1.bf16.msra.mxu0 0
    %496 = vmatprep.subr.bf16.mxu0 0
    %497 = vmatpush1.bf16.msra.mxu0 0
    %498 = vmatprep.subr.bf16.mxu0 0
    %499 = vmatpush1.bf16.msra.mxu0 0
    %500 = vmatprep.mubr.bf16.mxu0 0
    %501 = vmatmul.mubr.bf16.gmra.mrb[0].mxu0 %v375
    %v502 = vpop.f32.mrb[0].mxu0
    %v503 = vadd.f32 %v381, %v502
    %v504 = vpop.f32.mrb[0].mxu0
    %v505 = vadd.f32 %v385, %v504
    %v506 = vpop.f32.mrb[0].mxu0
    %v507 = vpop.f32.mrb[0].mxu0
    %508 = vdwg.mxu0
    %v509 = vld [vmem:[#allocation16 + $0x3] sm:$0x3]
    %v510 = vld [vmem:[#allocation16 + $0x5] sm:$0x3]
    %vm511 = vcmask 1043456
    %v512 = vsel %vm511, %v503, 0.0
    %v513 = vrot.slane %v512, 4
    %v514 = vadd.f32 %v512, %v513
    %v515 = vrot.slane %v514, 2
    %v516 = vadd.f32 %v514, %v515
    %v517 = vrot.slane %v516, 1
    %v518 = vadd.f32 %v516, %v517
    %v519 = vsel %vm511, %v505, 0.0
    %v520 = vrot.slane %v519, 4
    %v521 = vadd.f32 %v519, %v520
    %v522 = vrot.slane %v521, 2
    %v523 = vadd.f32 %v521, %v522
    %v524 = vrot.slane %v523, 1
    %v525 = vadd.f32 %v523, %v524
    %v526 = vrcp.pop 4.0
    %v527 = vmul.f32 %v518, %v526
    %v528 = vmul.f32 %v525, %v526
    %v529 = vsub.f32 %v503, %v527
    %v530 = vsub.f32 %v505, %v528
    %v531 = vmul.f32 %v529, %v529
    %v532 = vmul.f32 %v530, %v530
    %v533 = vsel %vm511, %v531, 0.0
    %v534 = vrot.slane %v533, 4
    %v535 = vadd.f32 %v533, %v534
    %v536 = vrot.slane %v535, 2
    %v537 = vadd.f32 %v535, %v536
    %v538 = vrot.slane %v537, 1
    %v539 = vadd.f32 %v537, %v538
    %v540 = vsel %vm511, %v532, 0.0
    %v541 = vrot.slane %v540, 4
    %v542 = vadd.f32 %v540, %v541
    %v543 = vrot.slane %v542, 2
    %v544 = vadd.f32 %v542, %v543
    %v545 = vrot.slane %v544, 1
    %v546 = vadd.f32 %v544, %v545
    %v547 = vmul.f32 %v539, %v526
    %v548 = vmul.f32 %v546, %v526
    %v549 = vadd.f32 %v547, 1e-05
    %v550 = vadd.f32 %v548, 1e-05
    %v551 = vrsqrt.pop %v549
    %v552 = vrsqrt.pop %v550
    %v553 = vmul.f32 %v529, %v551
    %v554 = vmul.f32 %v530, %v552
    %v556 = vlaneseq
    %v557 = vshrl.u32 %v556, 7
    %v558 = vsub.s32 0, %v557
    %v559 = vrot.slane %v509, %v558
    %v560 = vlaneseq
    %v561 = vshrl.u32 %v560, 7
    %v562 = vsub.s32 1, %v561
    %v563 = vrot.slane %v509, %v562
    %v566 = vmul.f32 %v553, %v559
    %v567 = vmul.f32 %v554, %v563
    %v569 = vlaneseq
    %v570 = vshrl.u32 %v569, 7
    %v571 = vsub.s32 0, %v570
    %v572 = vrot.slane %v510, %v571
    %v573 = vlaneseq
    %v574 = vshrl.u32 %v573, 7
    %v575 = vsub.s32 1, %v574
    %v576 = vrot.slane %v510, %v575
    %v579 = vadd.f32 %v566, %v572
    %v580 = vadd.f32 %v567, %v576
    %vm581 = vcmp.ge.f32.partialorder %v579, 0.0
    %vm582 = vcmp.ge.f32.partialorder %v580, 0.0
    %v583 = vmul.f32 %v579, 0.2
    %v584 = vmul.f32 %v580, 0.2
    %v585 = vsel %vm581, %v579, %v583
    %v586 = vsel %vm582, %v580, %v584
    %v587 = vld [vmem:[#allocation14] sm:$0xff]
    %v588 = vld [vmem:[#allocation14 + $0x8] sm:$0xff]
    %v589 = vld [vmem:[#allocation14 + $0x10] sm:$0xff]
    %v590 = vld [vmem:[#allocation14 + $0x18] sm:$0xff]
    %v591 = vld [vmem:[#allocation14 + $0x20] sm:$0xff]
    %v592 = vld [vmem:[#allocation14 + $0x28] sm:$0xff]
    %v593 = vld [vmem:[#allocation14 + $0x30] sm:$0xff]
    %v594 = vld [vmem:[#allocation14 + $0x38] sm:$0xff]
    %v595 = vld [vmem:[#allocation14 + $0x40] sm:$0xff]
    %v596 = vld [vmem:[#allocation14 + $0x48] sm:$0xff]
    %v597 = vld [vmem:[#allocation14 + $0x50] sm:$0xff]
    %v598 = vld [vmem:[#allocation14 + $0x58] sm:$0xff]
    %v599 = vld [vmem:[#allocation14 + $0x60] sm:$0xff]
    %v600 = vld [vmem:[#allocation14 + $0x68] sm:$0xff]
    %v601 = vld [vmem:[#allocation14 + $0x70] sm:$0xff]
    %v602 = vld [vmem:[#allocation14 + $0x78] sm:$0xff]
    %v603 = vld [vmem:[#allocation14 + $0x80] sm:$0xff]
    %v604 = vld [vmem:[#allocation14 + $0x88] sm:$0xff]
    %v605 = vld [vmem:[#allocation14 + $0x90] sm:$0xff]
    %v606 = vld [vmem:[#allocation14 + $0x98] sm:$0xff]
    %v607 = vld [vmem:[#allocation14 + $0xa0] sm:$0xff]
    %v608 = vld [vmem:[#allocation14 + $0xa8] sm:$0xff]
    %v609 = vld [vmem:[#allocation14 + $0xb0] sm:$0xff]
    %v610 = vld [vmem:[#allocation14 + $0xb8] sm:$0xff]
    %v611 = vld [vmem:[#allocation14 + $0xc0] sm:$0xff]
    %v612 = vld [vmem:[#allocation14 + $0xc8] sm:$0xff]
    %v613 = vld [vmem:[#allocation14 + $0xd0] sm:$0xff]
    %v614 = vld [vmem:[#allocation14 + $0xd8] sm:$0xff]
    %v615 = vld [vmem:[#allocation14 + $0xe0] sm:$0xff]
    %v616 = vld [vmem:[#allocation14 + $0xe8] sm:$0xff]
    %v617 = vld [vmem:[#allocation14 + $0xf0] sm:$0xff]
    %v618 = vld [vmem:[#allocation14 + $0xf8] sm:$0xff]
    %v619 = vld [vmem:[#allocation14 + $0x100] sm:$0xff]
    %v620 = vld [vmem:[#allocation14 + $0x108] sm:$0xff]
    %v621 = vld [vmem:[#allocation14 + $0x110] sm:$0xff]
    %v622 = vld [vmem:[#allocation14 + $0x118] sm:$0xff]
    %v623 = vld [vmem:[#allocation14 + $0x120] sm:$0xff]
    %v624 = vld [vmem:[#allocation14 + $0x128] sm:$0xff]
    %v625 = vld [vmem:[#allocation14 + $0x130] sm:$0xff]
    %v626 = vld [vmem:[#allocation14 + $0x138] sm:$0xff]
    %v627 = vld [vmem:[#allocation14 + $0x140] sm:$0xff]
    %v628 = vld [vmem:[#allocation14 + $0x148] sm:$0xff]
    %v629 = vld [vmem:[#allocation14 + $0x150] sm:$0xff]
    %v630 = vld [vmem:[#allocation14 + $0x158] sm:$0xff]
    %v631 = vld [vmem:[#allocation14 + $0x160] sm:$0xff]
    %v632 = vld [vmem:[#allocation14 + $0x168] sm:$0xff]
    %v633 = vld [vmem:[#allocation14 + $0x170] sm:$0xff]
    %v634 = vld [vmem:[#allocation14 + $0x178] sm:$0xff]
    %v635 = vld [vmem:[#allocation14 + $0x180] sm:$0xff]
    %v636 = vld [vmem:[#allocation14 + $0x188] sm:$0xff]
    %v637 = vld [vmem:[#allocation14 + $0x190] sm:$0xff]
    %v638 = vld [vmem:[#allocation14 + $0x198] sm:$0xff]
    %v639 = vld [vmem:[#allocation14 + $0x1a0] sm:$0xff]
    %v640 = vld [vmem:[#allocation14 + $0x1a8] sm:$0xff]
    %v641 = vld [vmem:[#allocation14 + $0x1b0] sm:$0xff]
    %v642 = vld [vmem:[#allocation14 + $0x1b8] sm:$0xff]
    %v643 = vld [vmem:[#allocation14 + $0x1c0] sm:$0xff]
    %v644 = vld [vmem:[#allocation14 + $0x1c8] sm:$0xff]
    %v645 = vld [vmem:[#allocation14 + $0x1d0] sm:$0xff]
    %v646 = vld [vmem:[#allocation14 + $0x1d8] sm:$0xff]
    %v647 = vld [vmem:[#allocation14 + $0x1e0] sm:$0xff]
    %v648 = vld [vmem:[#allocation14 + $0x1e8] sm:$0xff]
    %v649 = vld [vmem:[#allocation14 + $0x1f0] sm:$0xff]
    %v650 = vld [vmem:[#allocation14 + $0x1f8] sm:$0xff]
    %v651 = vpack.c.bf16 %v585, %v585
    %v652 = vpack.c.bf16 %v586, %v586
    %v653 = vld [vmem:[#allocation16 + $0x7] sm:$0xf]
    %v655 = vlaneseq
    %v656 = vshrl.u32 %v655, 7
    %v657 = vsub.s32 0, %v656
    %v658 = vrot.slane %v653, %v657
    %v659 = vlaneseq
    %v660 = vshrl.u32 %v659, 7
    %v661 = vsub.s32 1, %v660
    %v662 = vrot.slane %v653, %v661
    %v663 = vlaneseq
    %v664 = vshrl.u32 %v663, 7
    %v665 = vsub.s32 2, %v664
    %v666 = vrot.slane %v653, %v665
    %v667 = vlaneseq
    %v668 = vshrl.u32 %v667, 7
    %v669 = vsub.s32 3, %v668
    %v670 = vrot.slane %v653, %v669
    %v739 = vunpack.c.l.b16 %v587
    %v740 = vunpack.c.h.b16 %v587
    %v741 = vunpack.c.l.b16 %v588
    %v742 = vunpack.c.h.b16 %v588
    %v743 = vunpack.c.l.b16 %v589
    %v744 = vunpack.c.h.b16 %v589
    %v745 = vunpack.c.l.b16 %v590
    %v746 = vunpack.c.h.b16 %v590
    %v747 = vunpack.c.l.b16 %v591
    %v748 = vunpack.c.h.b16 %v591
    %v749 = vunpack.c.l.b16 %v592
    %v750 = vunpack.c.h.b16 %v592
    %v751 = vunpack.c.l.b16 %v593
    %v752 = vunpack.c.h.b16 %v593
    %v753 = vunpack.c.l.b16 %v594
    %v754 = vunpack.c.h.b16 %v594
    %v755 = vunpack.c.l.b16 %v595
    %v756 = vunpack.c.h.b16 %v595
    %v757 = vunpack.c.l.b16 %v596
    %v758 = vunpack.c.h.b16 %v596
    %v759 = vunpack.c.l.b16 %v597
    %v760 = vunpack.c.h.b16 %v597
    %v761 = vunpack.c.l.b16 %v598
    %v762 = vunpack.c.h.b16 %v598
    %v763 = vunpack.c.l.b16 %v599
    %v764 = vunpack.c.h.b16 %v599
    %v765 = vunpack.c.l.b16 %v600
    %v766 = vunpack.c.h.b16 %v600
    %v767 = vunpack.c.l.b16 %v601
    %v768 = vunpack.c.h.b16 %v601
    %v769 = vunpack.c.l.b16 %v602
    %v770 = vunpack.c.h.b16 %v602
    %v771 = vunpack.c.l.b16 %v603
    %v772 = vunpack.c.h.b16 %v603
    %v773 = vunpack.c.l.b16 %v604
    %v774 = vunpack.c.h.b16 %v604
    %v775 = vunpack.c.l.b16 %v605
    %v776 = vunpack.c.h.b16 %v605
    %v777 = vunpack.c.l.b16 %v606
    %v778 = vunpack.c.h.b16 %v606
    %v779 = vunpack.c.l.b16 %v607
    %v780 = vunpack.c.h.b16 %v607
    %v781 = vunpack.c.l.b16 %v608
    %v782 = vunpack.c.h.b16 %v608
    %v783 = vunpack.c.l.b16 %v609
    %v784 = vunpack.c.h.b16 %v609
    %v785 = vunpack.c.l.b16 %v610
    %v786 = vunpack.c.h.b16 %v610
    %v787 = vunpack.c.l.b16 %v611
    %v788 = vunpack.c.h.b16 %v611
    %v789 = vunpack.c.l.b16 %v612
    %v790 = vunpack.c.h.b16 %v612
    %v791 = vunpack.c.l.b16 %v613
    %v792 = vunpack.c.h.b16 %v613
    %v793 = vunpack.c.l.b16 %v614
    %v794 = vunpack.c.h.b16 %v614
    %v795 = vunpack.c.l.b16 %v615
    %v796 = vunpack.c.h.b16 %v615
    %v797 = vunpack.c.l.b16 %v616
    %v798 = vunpack.c.h.b16 %v616
    %v799 = vunpack.c.l.b16 %v617
    %v800 = vunpack.c.h.b16 %v617
    %v801 = vunpack.c.l.b16 %v618
    %v802 = vunpack.c.h.b16 %v618
    %v803 = vunpack.c.l.b16 %v619
    %v804 = vunpack.c.h.b16 %v619
    %v805 = vunpack.c.l.b16 %v620
    %v806 = vunpack.c.h.b16 %v620
    %v807 = vunpack.c.l.b16 %v621
    %v808 = vunpack.c.h.b16 %v621
    %v809 = vunpack.c.l.b16 %v622
    %v810 = vunpack.c.h.b16 %v622
    %v811 = vunpack.c.l.b16 %v623
    %v812 = vunpack.c.h.b16 %v623
    %v813 = vunpack.c.l.b16 %v624
    %v814 = vunpack.c.h.b16 %v624
    %v815 = vunpack.c.l.b16 %v625
    %v816 = vunpack.c.h.b16 %v625
    %v817 = vunpack.c.l.b16 %v626
    %v818 = vunpack.c.h.b16 %v626
    %v819 = vunpack.c.l.b16 %v627
    %v820 = vunpack.c.h.b16 %v627
    %v821 = vunpack.c.l.b16 %v628
    %v822 = vunpack.c.h.b16 %v628
    %v823 = vunpack.c.l.b16 %v629
    %v824 = vunpack.c.h.b16 %v629
    %v825 = vunpack.c.l.b16 %v630
    %v826 = vunpack.c.h.b16 %v630
    %v827 = vunpack.c.l.b16 %v631
    %v828 = vunpack.c.h.b16 %v631
    %v829 = vunpack.c.l.b16 %v632
    %v830 = vunpack.c.h.b16 %v632
    %v831 = vunpack.c.l.b16 %v633
    %v832 = vunpack.c.h.b16 %v633
    %v833 = vunpack.c.l.b16 %v634
    %v834 = vunpack.c.h.b16 %v634
    %v835 = vunpack.c.l.b16 %v635
    %v836 = vunpack.c.h.b16 %v635
    %v837 = vunpack.c.l.b16 %v636
    %v838 = vunpack.c.h.b16 %v636
    %v839 = vunpack.c.l.b16 %v637
    %v840 = vunpack.c.h.b16 %v637
    %v841 = vunpack.c.l.b16 %v638
    %v842 = vunpack.c.h.b16 %v638
    %v843 = vunpack.c.l.b16 %v639
    %v844 = vunpack.c.h.b16 %v639
    %v845 = vunpack.c.l.b16 %v640
    %v846 = vunpack.c.h.b16 %v640
    %v847 = vunpack.c.l.b16 %v641
    %v848 = vunpack.c.h.b16 %v641
    %v849 = vunpack.c.l.b16 %v642
    %v850 = vunpack.c.h.b16 %v642
    %v851 = vunpack.c.l.b16 %v643
    %v852 = vunpack.c.h.b16 %v643
    %v853 = vunpack.c.l.b16 %v644
    %v854 = vunpack.c.h.b16 %v644
    %v855 = vunpack.c.l.b16 %v645
    %v856 = vunpack.c.h.b16 %v645
    %v857 = vunpack.c.l.b16 %v646
    %v858 = vunpack.c.h.b16 %v646
    %v859 = vunpack.c.l.b16 %v647
    %v860 = vunpack.c.h.b16 %v647
    %v861 = vunpack.c.l.b16 %v648
    %v862 = vunpack.c.h.b16 %v648
    %v863 = vunpack.c.l.b16 %v649
    %v864 = vunpack.c.h.b16 %v649
    %v865 = vunpack.c.l.b16 %v650
    %v866 = vunpack.c.h.b16 %v650
    %v867 = vpack.c.b16 %v743, %v739
    %v868 = vpack.c.b16 %v744, %v740
    %v869 = vpack.c.b16 %v745, %v741
    %v870 = vpack.c.b16 %v746, %v742
    %v871 = vpack.c.b16 %v751, %v747
    %v872 = vpack.c.b16 %v752, %v748
    %v873 = vpack.c.b16 %v753, %v749
    %v874 = vpack.c.b16 %v754, %v750
    %v875 = vpack.c.b16 %v759, %v755
    %v876 = vpack.c.b16 %v760, %v756
    %v877 = vpack.c.b16 %v761, %v757
    %v878 = vpack.c.b16 %v762, %v758
    %v879 = vpack.c.b16 %v767, %v763
    %v880 = vpack.c.b16 %v768, %v764
    %v881 = vpack.c.b16 %v769, %v765
    %v882 = vpack.c.b16 %v770, %v766
    %v883 = vpack.c.b16 %v775, %v771
    %v884 = vpack.c.b16 %v776, %v772
    %v885 = vpack.c.b16 %v777, %v773
    %v886 = vpack.c.b16 %v778, %v774
    %v887 = vpack.c.b16 %v783, %v779
    %v888 = vpack.c.b16 %v784, %v780
    %v889 = vpack.c.b16 %v785, %v781
    %v890 = vpack.c.b16 %v786, %v782
    %v891 = vpack.c.b16 %v791, %v787
    %v892 = vpack.c.b16 %v792, %v788
    %v893 = vpack.c.b16 %v793, %v789
    %v894 = vpack.c.b16 %v794, %v790
    %v895 = vpack.c.b16 %v799, %v795
    %v896 = vpack.c.b16 %v800, %v796
    %v897 = vpack.c.b16 %v801, %v797
    %v898 = vpack.c.b16 %v802, %v798
    %v899 = vpack.c.b16 %v807, %v803
    %v900 = vpack.c.b16 %v808, %v804
    %v901 = vpack.c.b16 %v809, %v805
    %v902 = vpack.c.b16 %v810, %v806
    %v903 = vpack.c.b16 %v815, %v811
    %v904 = vpack.c.b16 %v816, %v812
    %v905 = vpack.c.b16 %v817, %v813
    %v906 = vpack.c.b16 %v818, %v814
    %v907 = vpack.c.b16 %v823, %v819
    %v908 = vpack.c.b16 %v824, %v820
    %v909 = vpack.c.b16 %v825, %v821
    %v910 = vpack.c.b16 %v826, %v822
    %v911 = vpack.c.b16 %v831, %v827
    %v912 = vpack.c.b16 %v832, %v828
    %v913 = vpack.c.b16 %v833, %v829
    %v914 = vpack.c.b16 %v834, %v830
    %v915 = vpack.c.b16 %v839, %v835
    %v916 = vpack.c.b16 %v840, %v836
    %v917 = vpack.c.b16 %v841, %v837
    %v918 = vpack.c.b16 %v842, %v838
    %v919 = vpack.c.b16 %v847, %v843
    %v920 = vpack.c.b16 %v848, %v844
    %v921 = vpack.c.b16 %v849, %v845
    %v922 = vpack.c.b16 %v850, %v846
    %v923 = vpack.c.b16 %v855, %v851
    %v924 = vpack.c.b16 %v856, %v852
    %v925 = vpack.c.b16 %v857, %v853
    %v926 = vpack.c.b16 %v858, %v854
    %v927 = vpack.c.b16 %v863, %v859
    %v928 = vpack.c.b16 %v864, %v860
    %v929 = vpack.c.b16 %v865, %v861
    %v930 = vpack.c.b16 %v866, %v862
    %995 = vmatprep.subr.bf16.mxu0 %v868
    %996 = vmatpush1.bf16.msra.mxu0 %v867
    %997 = vmatprep.subr.bf16.mxu0 %v872
    %998 = vmatpush1.bf16.msra.mxu0 %v871
    %999 = vmatprep.subr.bf16.mxu0 %v876
    %1000 = vmatpush1.bf16.msra.mxu0 %v875
    %1001 = vmatprep.subr.bf16.mxu0 %v880
    %1002 = vmatpush1.bf16.msra.mxu0 %v879
    %1003 = vmatprep.subr.bf16.mxu0 %v884
    %1004 = vmatpush1.bf16.msra.mxu0 %v883
    %1005 = vmatprep.subr.bf16.mxu0 %v888
    %1006 = vmatpush1.bf16.msra.mxu0 %v887
    %1007 = vmatprep.subr.bf16.mxu0 %v892
    %1008 = vmatpush1.bf16.msra.mxu0 %v891
    %1009 = vmatprep.subr.bf16.mxu0 %v896
    %1010 = vmatpush1.bf16.msra.mxu0 %v895
    %1011 = vmatprep.subr.bf16.mxu0 %v900
    %1012 = vmatpush1.bf16.msra.mxu0 %v899
    %1013 = vmatprep.subr.bf16.mxu0 %v904
    %1014 = vmatpush1.bf16.msra.mxu0 %v903
    %1015 = vmatprep.subr.bf16.mxu0 %v908
    %1016 = vmatpush1.bf16.msra.mxu0 %v907
    %1017 = vmatprep.subr.bf16.mxu0 %v912
    %1018 = vmatpush1.bf16.msra.mxu0 %v911
    %1019 = vmatprep.subr.bf16.mxu0 %v916
    %1020 = vmatpush1.bf16.msra.mxu0 %v915
    %1021 = vmatprep.subr.bf16.mxu0 %v920
    %1022 = vmatpush1.bf16.msra.mxu0 %v919
    %1023 = vmatprep.subr.bf16.mxu0 %v924
    %1024 = vmatpush1.bf16.msra.mxu0 %v923
    %1025 = vmatprep.subr.bf16.mxu0 %v928
    %1026 = vmatpush1.bf16.msra.mxu0 %v927
    %1027 = vmatprep.mubr.bf16.mxu0 %v652
    %1028 = vmatmul.mubr.bf16.gmra.mrb[0].mxu0 %v651
    %v1029 = vpop.f32.mrb[0].mxu0
    %v1030 = vadd.f32 %v658, %v1029
    %v1031 = vpop.f32.mrb[0].mxu0
    %v1032 = vadd.f32 %v662, %v1031
    %v1033 = vpop.f32.mrb[0].mxu0
    %v1034 = vpop.f32.mrb[0].mxu0
    %1035 = vdwg.mxu0
    %1036 = vmatprep.subr.bf16.mxu0 %v870
    %1037 = vmatpush1.bf16.msra.mxu0 %v869
    %1038 = vmatprep.subr.bf16.mxu0 %v874
    %1039 = vmatpush1.bf16.msra.mxu0 %v873
    %1040 = vmatprep.subr.bf16.mxu0 %v878
    %1041 = vmatpush1.bf16.msra.mxu0 %v877
    %1042 = vmatprep.subr.bf16.mxu0 %v882
    %1043 = vmatpush1.bf16.msra.mxu0 %v881
    %1044 = vmatprep.subr.bf16.mxu0 %v886
    %1045 = vmatpush1.bf16.msra.mxu0 %v885
    %1046 = vmatprep.subr.bf16.mxu0 %v890
    %1047 = vmatpush1.bf16.msra.mxu0 %v889
    %1048 = vmatprep.subr.bf16.mxu0 %v894
    %1049 = vmatpush1.bf16.msra.mxu0 %v893
    %1050 = vmatprep.subr.bf16.mxu0 %v898
    %1051 = vmatpush1.bf16.msra.mxu0 %v897
    %1052 = vmatprep.subr.bf16.mxu0 %v902
    %1053 = vmatpush1.bf16.msra.mxu0 %v901
    %1054 = vmatprep.subr.bf16.mxu0 %v906
    %1055 = vmatpush1.bf16.msra.mxu0 %v905
    %1056 = vmatprep.subr.bf16.mxu0 %v910
    %1057 = vmatpush1.bf16.msra.mxu0 %v909
    %1058 = vmatprep.subr.bf16.mxu0 %v914
    %1059 = vmatpush1.bf16.msra.mxu0 %v913
    %1060 = vmatprep.subr.bf16.mxu0 %v918
    %1061 = vmatpush1.bf16.msra.mxu0 %v917
    %1062 = vmatprep.subr.bf16.mxu0 %v922
    %1063 = vmatpush1.bf16.msra.mxu0 %v921
    %1064 = vmatprep.subr.bf16.mxu0 %v926
    %1065 = vmatpush1.bf16.msra.mxu0 %v925
    %1066 = vmatprep.subr.bf16.mxu0 %v930
    %1067 = vmatpush1.bf16.msra.mxu0 %v929
    %1068 = vmatprep.mubr.bf16.mxu0 %v652
    %1069 = vmatmul.mubr.bf16.gmra.mrb[0].mxu0 %v651
    %v1070 = vpop.f32.mrb[0].mxu0
    %v1071 = vadd.f32 %v666, %v1070
    %v1072 = vpop.f32.mrb[0].mxu0
    %v1073 = vadd.f32 %v670, %v1072
    %v1074 = vpop.f32.mrb[0].mxu0
    %v1075 = vpop.f32.mrb[0].mxu0
    %1076 = vdwg.mxu0
    %v1077 = vld [vmem:[#allocation16 + $0xb] sm:$0xf]
    %v1078 = vld [vmem:[#allocation16 + $0xf] sm:$0xf]
    %v1079 = vsel %vm511, %v1030, 0.0
    %v1080 = vrot.slane %v1079, 4
    %v1081 = vadd.f32 %v1079, %v1080
    %v1082 = vrot.slane %v1081, 2
    %v1083 = vadd.f32 %v1081, %v1082
    %v1084 = vrot.slane %v1083, 1
    %v1085 = vadd.f32 %v1083, %v1084
    %v1086 = vsel %vm511, %v1032, 0.0
    %v1087 = vrot.slane %v1086, 4
    %v1088 = vadd.f32 %v1086, %v1087
    %v1089 = vrot.slane %v1088, 2
    %v1090 = vadd.f32 %v1088, %v1089
    %v1091 = vrot.slane %v1090, 1
    %v1092 = vadd.f32 %v1090, %v1091
    %v1093 = vsel %vm511, %v1071, 0.0
    %v1094 = vrot.slane %v1093, 4
    %v1095 = vadd.f32 %v1093, %v1094
    %v1096 = vrot.slane %v1095, 2
    %v1097 = vadd.f32 %v1095, %v1096
    %v1098 = vrot.slane %v1097, 1
    %v1099 = vadd.f32 %v1097, %v1098
    %v1100 = vsel %vm511, %v1073, 0.0
    %v1101 = vrot.slane %v1100, 4
    %v1102 = vadd.f32 %v1100, %v1101
    %v1103 = vrot.slane %v1102, 2
    %v1104 = vadd.f32 %v1102, %v1103
    %v1105 = vrot.slane %v1104, 1
    %v1106 = vadd.f32 %v1104, %v1105
    %v1107 = vmul.f32 %v1085, %v526
    %v1108 = vmul.f32 %v1092, %v526
    %v1109 = vmul.f32 %v1099, %v526
    %v1110 = vmul.f32 %v1106, %v526
    %v1111 = vsub.f32 %v1030, %v1107
    %v1112 = vsub.f32 %v1032, %v1108
    %v1113 = vsub.f32 %v1071, %v1109
    %v1114 = vsub.f32 %v1073, %v1110
    %v1115 = vmul.f32 %v1111, %v1111
    %v1116 = vmul.f32 %v1112, %v1112
    %v1117 = vmul.f32 %v1113, %v1113
    %v1118 = vmul.f32 %v1114, %v1114
    %v1119 = vsel %vm511, %v1115, 0.0
    %v1120 = vrot.slane %v1119, 4
    %v1121 = vadd.f32 %v1119, %v1120
    %v1122 = vrot.slane %v1121, 2
    %v1123 = vadd.f32 %v1121, %v1122
    %v1124 = vrot.slane %v1123, 1
    %v1125 = vadd.f32 %v1123, %v1124
    %v1126 = vsel %vm511, %v1116, 0.0
    %v1127 = vrot.slane %v1126, 4
    %v1128 = vadd.f32 %v1126, %v1127
    %v1129 = vrot.slane %v1128, 2
    %v1130 = vadd.f32 %v1128, %v1129
    %v1131 = vrot.slane %v1130, 1
    %v1132 = vadd.f32 %v1130, %v1131
    %v1133 = vsel %vm511, %v1117, 0.0
    %v1134 = vrot.slane %v1133, 4
    %v1135 = vadd.f32 %v1133, %v1134
    %v1136 = vrot.slane %v1135, 2
    %v1137 = vadd.f32 %v1135, %v1136
    %v1138 = vrot.slane %v1137, 1
    %v1139 = vadd.f32 %v1137, %v1138
    %v1140 = vsel %vm511, %v1118, 0.0
    %v1141 = vrot.slane %v1140, 4
    %v1142 = vadd.f32 %v1140, %v1141
    %v1143 = vrot.slane %v1142, 2
    %v1144 = vadd.f32 %v1142, %v1143
    %v1145 = vrot.slane %v1144, 1
    %v1146 = vadd.f32 %v1144, %v1145
    %v1147 = vmul.f32 %v1125, %v526
    %v1148 = vmul.f32 %v1132, %v526
    %v1149 = vmul.f32 %v1139, %v526
    %v1150 = vmul.f32 %v1146, %v526
    %v1151 = vadd.f32 %v1147, 1e-05
    %v1152 = vadd.f32 %v1148, 1e-05
    %v1153 = vadd.f32 %v1149, 1e-05
    %v1154 = vadd.f32 %v1150, 1e-05
    %v1155 = vrsqrt.pop %v1151
    %v1156 = vrsqrt.pop %v1152
    %v1157 = vrsqrt.pop %v1153
    %v1158 = vrsqrt.pop %v1154
    %v1159 = vmul.f32 %v1111, %v1155
    %v1160 = vmul.f32 %v1112, %v1156
    %v1161 = vmul.f32 %v1113, %v1157
    %v1162 = vmul.f32 %v1114, %v1158
    %v1164 = vlaneseq
    %v1165 = vshrl.u32 %v1164, 7
    %v1166 = vsub.s32 0, %v1165
    %v1167 = vrot.slane %v1077, %v1166
    %v1168 = vlaneseq
    %v1169 = vshrl.u32 %v1168, 7
    %v1170 = vsub.s32 1, %v1169
    %v1171 = vrot.slane %v1077, %v1170
    %v1172 = vlaneseq
    %v1173 = vshrl.u32 %v1172, 7
    %v1174 = vsub.s32 2, %v1173
    %v1175 = vrot.slane %v1077, %v1174
    %v1176 = vlaneseq
    %v1177 = vshrl.u32 %v1176, 7
    %v1178 = vsub.s32 3, %v1177
    %v1179 = vrot.slane %v1077, %v1178
    %v1184 = vmul.f32 %v1159, %v1167
    %v1185 = vmul.f32 %v1160, %v1171
    %v1186 = vmul.f32 %v1161, %v1175
    %v1187 = vmul.f32 %v1162, %v1179
    %v1189 = vlaneseq
    %v1190 = vshrl.u32 %v1189, 7
    %v1191 = vsub.s32 0, %v1190
    %v1192 = vrot.slane %v1078, %v1191
    %v1193 = vlaneseq
    %v1194 = vshrl.u32 %v1193, 7
    %v1195 = vsub.s32 1, %v1194
    %v1196 = vrot.slane %v1078, %v1195
    %v1197 = vlaneseq
    %v1198 = vshrl.u32 %v1197, 7
    %v1199 = vsub.s32 2, %v1198
    %v1200 = vrot.slane %v1078, %v1199
    %v1201 = vlaneseq
    %v1202 = vshrl.u32 %v1201, 7
    %v1203 = vsub.s32 3, %v1202
    %v1204 = vrot.slane %v1078, %v1203
    %v1209 = vadd.f32 %v1184, %v1192
    %v1210 = vadd.f32 %v1185, %v1196
    %v1211 = vadd.f32 %v1186, %v1200
    %v1212 = vadd.f32 %v1187, %v1204
    %vm1213 = vcmp.ge.f32.partialorder %v1209, 0.0
    %vm1214 = vcmp.ge.f32.partialorder %v1210, 0.0
    %vm1215 = vcmp.ge.f32.partialorder %v1211, 0.0
    %vm1216 = vcmp.ge.f32.partialorder %v1212, 0.0
    %v1217 = vmul.f32 %v1209, 0.2
    %v1218 = vmul.f32 %v1210, 0.2
    %v1219 = vmul.f32 %v1211, 0.2
    %v1220 = vmul.f32 %v1212, 0.2
    %v1221 = vsel %vm1213, %v1209, %v1217
    %v1222 = vsel %vm1214, %v1210, %v1218
    %v1223 = vsel %vm1215, %v1211, %v1219
    %v1224 = vsel %vm1216, %v1212, %v1220
    %s1225 = smul.u32 4, 64
    %s1226 = smul.u32 %s1225, 8
    %s1227 = sshll.u32 %s1226, 4
    %1228 = dma.done [#allocation4], %s1227
    %v1229 = vld [vmem:[#allocation2] sm:$0xff]
    %v1230 = vld [vmem:[#allocation2 + $0x8] sm:$0xff]
    %v1231 = vld [vmem:[#allocation2 + $0x10] sm:$0xff]
    %v1232 = vld [vmem:[#allocation2 + $0x18] sm:$0xff]
    %v1233 = vld [vmem:[#allocation2 + $0x20] sm:$0xff]
    %v1234 = vld [vmem:[#allocation2 + $0x28] sm:$0xff]
    %v1235 = vld [vmem:[#allocation2 + $0x30] sm:$0xff]
    %v1236 = vld [vmem:[#allocation2 + $0x38] sm:$0xff]
    %v1237 = vld [vmem:[#allocation2 + $0x40] sm:$0xff]
    %v1238 = vld [vmem:[#allocation2 + $0x48] sm:$0xff]
    %v1239 = vld [vmem:[#allocation2 + $0x50] sm:$0xff]
    %v1240 = vld [vmem:[#allocation2 + $0x58] sm:$0xff]
    %v1241 = vld [vmem:[#allocation2 + $0x60] sm:$0xff]
    %v1242 = vld [vmem:[#allocation2 + $0x68] sm:$0xff]
    %v1243 = vld [vmem:[#allocation2 + $0x70] sm:$0xff]
    %v1244 = vld [vmem:[#allocation2 + $0x78] sm:$0xff]
    %v1245 = vld [vmem:[#allocation2 + $0x80] sm:$0xff]
    %v1246 = vld [vmem:[#allocation2 + $0x88] sm:$0xff]
    %v1247 = vld [vmem:[#allocation2 + $0x90] sm:$0xff]
    %v1248 = vld [vmem:[#allocation2 + $0x98] sm:$0xff]
    %v1249 = vld [vmem:[#allocation2 + $0xa0] sm:$0xff]
    %v1250 = vld [vmem:[#allocation2 + $0xa8] sm:$0xff]
    %v1251 = vld [vmem:[#allocation2 + $0xb0] sm:$0xff]
    %v1252 = vld [vmem:[#allocation2 + $0xb8] sm:$0xff]
    %v1253 = vld [vmem:[#allocation2 + $0xc0] sm:$0xff]
    %v1254 = vld [vmem:[#allocation2 + $0xc8] sm:$0xff]
    %v1255 = vld [vmem:[#allocation2 + $0xd0] sm:$0xff]
    %v1256 = vld [vmem:[#allocation2 + $0xd8] sm:$0xff]
    %v1257 = vld [vmem:[#allocation2 + $0xe0] sm:$0xff]
    %v1258 = vld [vmem:[#allocation2 + $0xe8] sm:$0xff]
    %v1259 = vld [vmem:[#allocation2 + $0xf0] sm:$0xff]
    %v1260 = vld [vmem:[#allocation2 + $0xf8] sm:$0xff]
    %v1261 = vld [vmem:[#allocation2 + $0x100] sm:$0xff]
    %v1262 = vld [vmem:[#allocation2 + $0x108] sm:$0xff]
    %v1263 = vld [vmem:[#allocation2 + $0x110] sm:$0xff]
    %v1264 = vld [vmem:[#allocation2 + $0x118] sm:$0xff]
    %v1265 = vld [vmem:[#allocation2 + $0x120] sm:$0xff]
    %v1266 = vld [vmem:[#allocation2 + $0x128] sm:$0xff]
    %v1267 = vld [vmem:[#allocation2 + $0x130] sm:$0xff]
    %v1268 = vld [vmem:[#allocation2 + $0x138] sm:$0xff]
    %v1269 = vld [vmem:[#allocation2 + $0x140] sm:$0xff]
    %v1270 = vld [vmem:[#allocation2 + $0x148] sm:$0xff]
    %v1271 = vld [vmem:[#allocation2 + $0x150] sm:$0xff]
    %v1272 = vld [vmem:[#allocation2 + $0x158] sm:$0xff]
    %v1273 = vld [vmem:[#allocation2 + $0x160] sm:$0xff]
    %v1274 = vld [vmem:[#allocation2 + $0x168] sm:$0xff]
    %v1275 = vld [vmem:[#allocation2 + $0x170] sm:$0xff]
    %v1276 = vld [vmem:[#allocation2 + $0x178] sm:$0xff]
    %v1277 = vld [vmem:[#allocation2 + $0x180] sm:$0xff]
    %v1278 = vld [vmem:[#allocation2 + $0x188] sm:$0xff]
    %v1279 = vld [vmem:[#allocation2 + $0x190] sm:$0xff]
    %v1280 = vld [vmem:[#allocation2 + $0x198] sm:$0xff]
    %v1281 = vld [vmem:[#allocation2 + $0x1a0] sm:$0xff]
    %v1282 = vld [vmem:[#allocation2 + $0x1a8] sm:$0xff]
    %v1283 = vld [vmem:[#allocation2 + $0x1b0] sm:$0xff]
    %v1284 = vld [vmem:[#allocation2 + $0x1b8] sm:$0xff]
    %v1285 = vld [vmem:[#allocation2 + $0x1c0] sm:$0xff]
    %v1286 = vld [vmem:[#allocation2 + $0x1c8] sm:$0xff]
    %v1287 = vld [vmem:[#allocation2 + $0x1d0] sm:$0xff]
    %v1288 = vld [vmem:[#allocation2 + $0x1d8] sm:$0xff]
    %v1289 = vld [vmem:[#allocation2 + $0x1e0] sm:$0xff]
    %v1290 = vld [vmem:[#allocation2 + $0x1e8] sm:$0xff]
    %v1291 = vld [vmem:[#allocation2 + $0x1f0] sm:$0xff]
    %v1292 = vld [vmem:[#allocation2 + $0x1f8] sm:$0xff]
    %v1293 = vld [vmem:[#allocation2 + $0x200] sm:$0xff]
    %v1294 = vld [vmem:[#allocation2 + $0x208] sm:$0xff]
    %v1295 = vld [vmem:[#allocation2 + $0x210] sm:$0xff]
    %v1296 = vld [vmem:[#allocation2 + $0x218] sm:$0xff]
    %v1297 = vld [vmem:[#allocation2 + $0x220] sm:$0xff]
    %v1298 = vld [vmem:[#allocation2 + $0x228] sm:$0xff]
    %v1299 = vld [vmem:[#allocation2 + $0x230] sm:$0xff]
    %v1300 = vld [vmem:[#allocation2 + $0x238] sm:$0xff]
    %v1301 = vld [vmem:[#allocation2 + $0x240] sm:$0xff]
    %v1302 = vld [vmem:[#allocation2 + $0x248] sm:$0xff]
    %v1303 = vld [vmem:[#allocation2 + $0x250] sm:$0xff]
    %v1304 = vld [vmem:[#allocation2 + $0x258] sm:$0xff]
    %v1305 = vld [vmem:[#allocation2 + $0x260] sm:$0xff]
    %v1306 = vld [vmem:[#allocation2 + $0x268] sm:$0xff]
    %v1307 = vld [vmem:[#allocation2 + $0x270] sm:$0xff]
    %v1308 = vld [vmem:[#allocation2 + $0x278] sm:$0xff]
    %v1309 = vld [vmem:[#allocation2 + $0x280] sm:$0xff]
    %v1310 = vld [vmem:[#allocation2 + $0x288] sm:$0xff]
    %v1311 = vld [vmem:[#allocation2 + $0x290] sm:$0xff]
    %v1312 = vld [vmem:[#allocation2 + $0x298] sm:$0xff]
    %v1313 = vld [vmem:[#allocation2 + $0x2a0] sm:$0xff]
    %v1314 = vld [vmem:[#allocation2 + $0x2a8] sm:$0xff]
    %v1315 = vld [vmem:[#allocation2 + $0x2b0] sm:$0xff]
    %v1316 = vld [vmem:[#allocation2 + $0x2b8] sm:$0xff]
    %v1317 = vld [vmem:[#allocation2 + $0x2c0] sm:$0xff]
    %v1318 = vld [vmem:[#allocation2 + $0x2c8] sm:$0xff]
    %v1319 = vld [vmem:[#allocation2 + $0x2d0] sm:$0xff]
    %v1320 = vld [vmem:[#allocation2 + $0x2d8] sm:$0xff]
    %v1321 = vld [vmem:[#allocation2 + $0x2e0] sm:$0xff]
    %v1322 = vld [vmem:[#allocation2 + $0x2e8] sm:$0xff]
    %v1323 = vld [vmem:[#allocation2 + $0x2f0] sm:$0xff]
    %v1324 = vld [vmem:[#allocation2 + $0x2f8] sm:$0xff]
    %v1325 = vld [vmem:[#allocation2 + $0x300] sm:$0xff]
    %v1326 = vld [vmem:[#allocation2 + $0x308] sm:$0xff]
    %v1327 = vld [vmem:[#allocation2 + $0x310] sm:$0xff]
    %v1328 = vld [vmem:[#allocation2 + $0x318] sm:$0xff]
    %v1329 = vld [vmem:[#allocation2 + $0x320] sm:$0xff]
    %v1330 = vld [vmem:[#allocation2 + $0x328] sm:$0xff]
    %v1331 = vld [vmem:[#allocation2 + $0x330] sm:$0xff]
    %v1332 = vld [vmem:[#allocation2 + $0x338] sm:$0xff]
    %v1333 = vld [vmem:[#allocation2 + $0x340] sm:$0xff]
    %v1334 = vld [vmem:[#allocation2 + $0x348] sm:$0xff]
    %v1335 = vld [vmem:[#allocation2 + $0x350] sm:$0xff]
    %v1336 = vld [vmem:[#allocation2 + $0x358] sm:$0xff]
    %v1337 = vld [vmem:[#allocation2 + $0x360] sm:$0xff]
    %v1338 = vld [vmem:[#allocation2 + $0x368] sm:$0xff]
    %v1339 = vld [vmem:[#allocation2 + $0x370] sm:$0xff]
    %v1340 = vld [vmem:[#allocation2 + $0x378] sm:$0xff]
    %v1341 = vld [vmem:[#allocation2 + $0x380] sm:$0xff]
    %v1342 = vld [vmem:[#allocation2 + $0x388] sm:$0xff]
    %v1343 = vld [vmem:[#allocation2 + $0x390] sm:$0xff]
    %v1344 = vld [vmem:[#allocation2 + $0x398] sm:$0xff]
    %v1345 = vld [vmem:[#allocation2 + $0x3a0] sm:$0xff]
    %v1346 = vld [vmem:[#allocation2 + $0x3a8] sm:$0xff]
    %v1347 = vld [vmem:[#allocation2 + $0x3b0] sm:$0xff]
    %v1348 = vld [vmem:[#allocation2 + $0x3b8] sm:$0xff]
    %v1349 = vld [vmem:[#allocation2 + $0x3c0] sm:$0xff]
    %v1350 = vld [vmem:[#allocation2 + $0x3c8] sm:$0xff]
    %v1351 = vld [vmem:[#allocation2 + $0x3d0] sm:$0xff]
    %v1352 = vld [vmem:[#allocation2 + $0x3d8] sm:$0xff]
    %v1353 = vld [vmem:[#allocation2 + $0x3e0] sm:$0xff]
    %v1354 = vld [vmem:[#allocation2 + $0x3e8] sm:$0xff]
    %v1355 = vld [vmem:[#allocation2 + $0x3f0] sm:$0xff]
    %v1356 = vld [vmem:[#allocation2 + $0x3f8] sm:$0xff]
    %v1357 = vld [vmem:[#allocation2 + $0x400] sm:$0xff]
    %v1358 = vld [vmem:[#allocation2 + $0x408] sm:$0xff]
    %v1359 = vld [vmem:[#allocation2 + $0x410] sm:$0xff]
    %v1360 = vld [vmem:[#allocation2 + $0x418] sm:$0xff]
    %v1361 = vld [vmem:[#allocation2 + $0x420] sm:$0xff]
    %v1362 = vld [vmem:[#allocation2 + $0x428] sm:$0xff]
    %v1363 = vld [vmem:[#allocation2 + $0x430] sm:$0xff]
    %v1364 = vld [vmem:[#allocation2 + $0x438] sm:$0xff]
    %v1365 = vld [vmem:[#allocation2 + $0x440] sm:$0xff]
    %v1366 = vld [vmem:[#allocation2 + $0x448] sm:$0xff]
    %v1367 = vld [vmem:[#allocation2 + $0x450] sm:$0xff]
    %v1368 = vld [vmem:[#allocation2 + $0x458] sm:$0xff]
    %v1369 = vld [vmem:[#allocation2 + $0x460] sm:$0xff]
    %v1370 = vld [vmem:[#allocation2 + $0x468] sm:$0xff]
    %v1371 = vld [vmem:[#allocation2 + $0x470] sm:$0xff]
    %v1372 = vld [vmem:[#allocation2 + $0x478] sm:$0xff]
    %v1373 = vld [vmem:[#allocation2 + $0x480] sm:$0xff]
    %v1374 = vld [vmem:[#allocation2 + $0x488] sm:$0xff]
    %v1375 = vld [vmem:[#allocation2 + $0x490] sm:$0xff]
    %v1376 = vld [vmem:[#allocation2 + $0x498] sm:$0xff]
    %v1377 = vld [vmem:[#allocation2 + $0x4a0] sm:$0xff]
    %v1378 = vld [vmem:[#allocation2 + $0x4a8] sm:$0xff]
    %v1379 = vld [vmem:[#allocation2 + $0x4b0] sm:$0xff]
    %v1380 = vld [vmem:[#allocation2 + $0x4b8] sm:$0xff]
    %v1381 = vld [vmem:[#allocation2 + $0x4c0] sm:$0xff]
    %v1382 = vld [vmem:[#allocation2 + $0x4c8] sm:$0xff]
    %v1383 = vld [vmem:[#allocation2 + $0x4d0] sm:$0xff]
    %v1384 = vld [vmem:[#allocation2 + $0x4d8] sm:$0xff]
    %v1385 = vld [vmem:[#allocation2 + $0x4e0] sm:$0xff]
    %v1386 = vld [vmem:[#allocation2 + $0x4e8] sm:$0xff]
    %v1387 = vld [vmem:[#allocation2 + $0x4f0] sm:$0xff]
    %v1388 = vld [vmem:[#allocation2 + $0x4f8] sm:$0xff]
    %v1389 = vld [vmem:[#allocation2 + $0x500] sm:$0xff]
    %v1390 = vld [vmem:[#allocation2 + $0x508] sm:$0xff]
    %v1391 = vld [vmem:[#allocation2 + $0x510] sm:$0xff]
    %v1392 = vld [vmem:[#allocation2 + $0x518] sm:$0xff]
    %v1393 = vld [vmem:[#allocation2 + $0x520] sm:$0xff]
    %v1394 = vld [vmem:[#allocation2 + $0x528] sm:$0xff]
    %v1395 = vld [vmem:[#allocation2 + $0x530] sm:$0xff]
    %v1396 = vld [vmem:[#allocation2 + $0x538] sm:$0xff]
    %v1397 = vld [vmem:[#allocation2 + $0x540] sm:$0xff]
    %v1398 = vld [vmem:[#allocation2 + $0x548] sm:$0xff]
    %v1399 = vld [vmem:[#allocation2 + $0x550] sm:$0xff]
    %v1400 = vld [vmem:[#allocation2 + $0x558] sm:$0xff]
    %v1401 = vld [vmem:[#allocation2 + $0x560] sm:$0xff]
    %v1402 = vld [vmem:[#allocation2 + $0x568] sm:$0xff]
    %v1403 = vld [vmem:[#allocation2 + $0x570] sm:$0xff]
    %v1404 = vld [vmem:[#allocation2 + $0x578] sm:$0xff]
    %v1405 = vld [vmem:[#allocation2 + $0x580] sm:$0xff]
    %v1406 = vld [vmem:[#allocation2 + $0x588] sm:$0xff]
    %v1407 = vld [vmem:[#allocation2 + $0x590] sm:$0xff]
    %v1408 = vld [vmem:[#allocation2 + $0x598] sm:$0xff]
    %v1409 = vld [vmem:[#allocation2 + $0x5a0] sm:$0xff]
    %v1410 = vld [vmem:[#allocation2 + $0x5a8] sm:$0xff]
    %v1411 = vld [vmem:[#allocation2 + $0x5b0] sm:$0xff]
    %v1412 = vld [vmem:[#allocation2 + $0x5b8] sm:$0xff]
    %v1413 = vld [vmem:[#allocation2 + $0x5c0] sm:$0xff]
    %v1414 = vld [vmem:[#allocation2 + $0x5c8] sm:$0xff]
    %v1415 = vld [vmem:[#allocation2 + $0x5d0] sm:$0xff]
    %v1416 = vld [vmem:[#allocation2 + $0x5d8] sm:$0xff]
    %v1417 = vld [vmem:[#allocation2 + $0x5e0] sm:$0xff]
    %v1418 = vld [vmem:[#allocation2 + $0x5e8] sm:$0xff]
    %v1419 = vld [vmem:[#allocation2 + $0x5f0] sm:$0xff]
    %v1420 = vld [vmem:[#allocation2 + $0x5f8] sm:$0xff]
    %v1421 = vld [vmem:[#allocation2 + $0x600] sm:$0xff]
    %v1422 = vld [vmem:[#allocation2 + $0x608] sm:$0xff]
    %v1423 = vld [vmem:[#allocation2 + $0x610] sm:$0xff]
    %v1424 = vld [vmem:[#allocation2 + $0x618] sm:$0xff]
    %v1425 = vld [vmem:[#allocation2 + $0x620] sm:$0xff]
    %v1426 = vld [vmem:[#allocation2 + $0x628] sm:$0xff]
    %v1427 = vld [vmem:[#allocation2 + $0x630] sm:$0xff]
    %v1428 = vld [vmem:[#allocation2 + $0x638] sm:$0xff]
    %v1429 = vld [vmem:[#allocation2 + $0x640] sm:$0xff]
    %v1430 = vld [vmem:[#allocation2 + $0x648] sm:$0xff]
    %v1431 = vld [vmem:[#allocation2 + $0x650] sm:$0xff]
    %v1432 = vld [vmem:[#allocation2 + $0x658] sm:$0xff]
    %v1433 = vld [vmem:[#allocation2 + $0x660] sm:$0xff]
    %v1434 = vld [vmem:[#allocation2 + $0x668] sm:$0xff]
    %v1435 = vld [vmem:[#allocation2 + $0x670] sm:$0xff]
    %v1436 = vld [vmem:[#allocation2 + $0x678] sm:$0xff]
    %v1437 = vld [vmem:[#allocation2 + $0x680] sm:$0xff]
    %v1438 = vld [vmem:[#allocation2 + $0x688] sm:$0xff]
    %v1439 = vld [vmem:[#allocation2 + $0x690] sm:$0xff]
    %v1440 = vld [vmem:[#allocation2 + $0x698] sm:$0xff]
    %v1441 = vld [vmem:[#allocation2 + $0x6a0] sm:$0xff]
    %v1442 = vld [vmem:[#allocation2 + $0x6a8] sm:$0xff]
    %v1443 = vld [vmem:[#allocation2 + $0x6b0] sm:$0xff]
    %v1444 = vld [vmem:[#allocation2 + $0x6b8] sm:$0xff]
    %v1445 = vld [vmem:[#allocation2 + $0x6c0] sm:$0xff]
    %v1446 = vld [vmem:[#allocation2 + $0x6c8] sm:$0xff]
    %v1447 = vld [vmem:[#allocation2 + $0x6d0] sm:$0xff]
    %v1448 = vld [vmem:[#allocation2 + $0x6d8] sm:$0xff]
    %v1449 = vld [vmem:[#allocation2 + $0x6e0] sm:$0xff]
    %v1450 = vld [vmem:[#allocation2 + $0x6e8] sm:$0xff]
    %v1451 = vld [vmem:[#allocation2 + $0x6f0] sm:$0xff]
    %v1452 = vld [vmem:[#allocation2 + $0x6f8] sm:$0xff]
    %v1453 = vld [vmem:[#allocation2 + $0x700] sm:$0xff]
    %v1454 = vld [vmem:[#allocation2 + $0x708] sm:$0xff]
    %v1455 = vld [vmem:[#allocation2 + $0x710] sm:$0xff]
    %v1456 = vld [vmem:[#allocation2 + $0x718] sm:$0xff]
    %v1457 = vld [vmem:[#allocation2 + $0x720] sm:$0xff]
    %v1458 = vld [vmem:[#allocation2 + $0x728] sm:$0xff]
    %v1459 = vld [vmem:[#allocation2 + $0x730] sm:$0xff]
    %v1460 = vld [vmem:[#allocation2 + $0x738] sm:$0xff]
    %v1461 = vld [vmem:[#allocation2 + $0x740] sm:$0xff]
    %v1462 = vld [vmem:[#allocation2 + $0x748] sm:$0xff]
    %v1463 = vld [vmem:[#allocation2 + $0x750] sm:$0xff]
    %v1464 = vld [vmem:[#allocation2 + $0x758] sm:$0xff]
    %v1465 = vld [vmem:[#allocation2 + $0x760] sm:$0xff]
    %v1466 = vld [vmem:[#allocation2 + $0x768] sm:$0xff]
    %v1467 = vld [vmem:[#allocation2 + $0x770] sm:$0xff]
    %v1468 = vld [vmem:[#allocation2 + $0x778] sm:$0xff]
    %v1469 = vld [vmem:[#allocation2 + $0x780] sm:$0xff]
    %v1470 = vld [vmem:[#allocation2 + $0x788] sm:$0xff]
    %v1471 = vld [vmem:[#allocation2 + $0x790] sm:$0xff]
    %v1472 = vld [vmem:[#allocation2 + $0x798] sm:$0xff]
    %v1473 = vld [vmem:[#allocation2 + $0x7a0] sm:$0xff]
    %v1474 = vld [vmem:[#allocation2 + $0x7a8] sm:$0xff]
    %v1475 = vld [vmem:[#allocation2 + $0x7b0] sm:$0xff]
    %v1476 = vld [vmem:[#allocation2 + $0x7b8] sm:$0xff]
    %v1477 = vld [vmem:[#allocation2 + $0x7c0] sm:$0xff]
    %v1478 = vld [vmem:[#allocation2 + $0x7c8] sm:$0xff]
    %v1479 = vld [vmem:[#allocation2 + $0x7d0] sm:$0xff]
    %v1480 = vld [vmem:[#allocation2 + $0x7d8] sm:$0xff]
    %v1481 = vld [vmem:[#allocation2 + $0x7e0] sm:$0xff]
    %v1482 = vld [vmem:[#allocation2 + $0x7e8] sm:$0xff]
    %v1483 = vld [vmem:[#allocation2 + $0x7f0] sm:$0xff]
    %v1484 = vld [vmem:[#allocation2 + $0x7f8] sm:$0xff]
    %v1485 = vpack.c.bf16 %v1221, %v1221
    %v1486 = vpack.c.bf16 %v1222, %v1222
    %v1487 = vpack.c.bf16 %v1223, %v1223
    %v1488 = vpack.c.bf16 %v1224, %v1224
    %v1489 = vld [vmem:[#allocation16 + $0x13] sm:$0xff]
    %v1491 = vlaneseq
    %v1492 = vshrl.u32 %v1491, 7
    %v1493 = vsub.s32 0, %v1492
    %v1494 = vrot.slane %v1489, %v1493
    %v1495 = vlaneseq
    %v1496 = vshrl.u32 %v1495, 7
    %v1497 = vsub.s32 1, %v1496
    %v1498 = vrot.slane %v1489, %v1497
    %v1499 = vlaneseq
    %v1500 = vshrl.u32 %v1499, 7
    %v1501 = vsub.s32 2, %v1500
    %v1502 = vrot.slane %v1489, %v1501
    %v1503 = vlaneseq
    %v1504 = vshrl.u32 %v1503, 7
    %v1505 = vsub.s32 3, %v1504
    %v1506 = vrot.slane %v1489, %v1505
    %v1507 = vlaneseq
    %v1508 = vshrl.u32 %v1507, 7
    %v1509 = vsub.s32 4, %v1508
    %v1510 = vrot.slane %v1489, %v1509
    %v1511 = vlaneseq
    %v1512 = vshrl.u32 %v1511, 7
    %v1513 = vsub.s32 5, %v1512
    %v1514 = vrot.slane %v1489, %v1513
    %v1515 = vlaneseq
    %v1516 = vshrl.u32 %v1515, 7
    %v1517 = vsub.s32 6, %v1516
    %v1518 = vrot.slane %v1489, %v1517
    %v1519 = vlaneseq
    %v1520 = vshrl.u32 %v1519, 7
    %v1521 = vsub.s32 7, %v1520
    %v1522 = vrot.slane %v1489, %v1521
    %1531 = vmatprep.subr.bf16.mxu0 %v1230
    %1532 = vmatpush1.bf16.msra.mxu0 %v1229
    %1533 = vmatprep.subr.bf16.mxu0 %v1238
    %1534 = vmatpush1.bf16.msra.mxu0 %v1237
    %1535 = vmatprep.subr.bf16.mxu0 %v1246
    %1536 = vmatpush1.bf16.msra.mxu0 %v1245
    %1537 = vmatprep.subr.bf16.mxu0 %v1254
    %1538 = vmatpush1.bf16.msra.mxu0 %v1253
    %1539 = vmatprep.subr.bf16.mxu0 %v1262
    %1540 = vmatpush1.bf16.msra.mxu0 %v1261
    %1541 = vmatprep.subr.bf16.mxu0 %v1270
    %1542 = vmatpush1.bf16.msra.mxu0 %v1269
    %1543 = vmatprep.subr.bf16.mxu0 %v1278
    %1544 = vmatpush1.bf16.msra.mxu0 %v1277
    %1545 = vmatprep.subr.bf16.mxu0 %v1286
    %1546 = vmatpush1.bf16.msra.mxu0 %v1285
    %1547 = vmatprep.subr.bf16.mxu0 %v1294
    %1548 = vmatpush1.bf16.msra.mxu0 %v1293
    %1549 = vmatprep.subr.bf16.mxu0 %v1302
    %1550 = vmatpush1.bf16.msra.mxu0 %v1301
    %1551 = vmatprep.subr.bf16.mxu0 %v1310
    %1552 = vmatpush1.bf16.msra.mxu0 %v1309
    %1553 = vmatprep.subr.bf16.mxu0 %v1318
    %1554 = vmatpush1.bf16.msra.mxu0 %v1317
    %1555 = vmatprep.subr.bf16.mxu0 %v1326
    %1556 = vmatpush1.bf16.msra.mxu0 %v1325
    %1557 = vmatprep.subr.bf16.mxu0 %v1334
    %1558 = vmatpush1.bf16.msra.mxu0 %v1333
    %1559 = vmatprep.subr.bf16.mxu0 %v1342
    %1560 = vmatpush1.bf16.msra.mxu0 %v1341
    %1561 = vmatprep.subr.bf16.mxu0 %v1350
    %1562 = vmatpush1.bf16.msra.mxu0 %v1349
    %1563 = vmatprep.mubr.bf16.mxu0 %v1486
    %1564 = vmatmul.mubr.bf16.gmra.mrb[0].mxu0 %v1485
    %v1565 = vpop.f32.mrb[0].mxu0
    %v1566 = vadd.f32 %v1494, %v1565
    %v1567 = vpop.f32.mrb[0].mxu0
    %v1568 = vadd.f32 %v1498, %v1567
    %v1569 = vpop.f32.mrb[0].mxu0
    %v1570 = vpop.f32.mrb[0].mxu0
    %1571 = vdwg.mxu0
    %1572 = vmatprep.subr.bf16.mxu0 %v1358
    %1573 = vmatpush1.bf16.msra.mxu0 %v1357
    %1574 = vmatprep.subr.bf16.mxu0 %v1366
    %1575 = vmatpush1.bf16.msra.mxu0 %v1365
    %1576 = vmatprep.subr.bf16.mxu0 %v1374
    %1577 = vmatpush1.bf16.msra.mxu0 %v1373
    %1578 = vmatprep.subr.bf16.mxu0 %v1382
    %1579 = vmatpush1.bf16.msra.mxu0 %v1381
    %1580 = vmatprep.subr.bf16.mxu0 %v1390
    %1581 = vmatpush1.bf16.msra.mxu0 %v1389
    %1582 = vmatprep.subr.bf16.mxu0 %v1398
    %1583 = vmatpush1.bf16.msra.mxu0 %v1397
    %1584 = vmatprep.subr.bf16.mxu0 %v1406
    %1585 = vmatpush1.bf16.msra.mxu0 %v1405
    %1586 = vmatprep.subr.bf16.mxu0 %v1414
    %1587 = vmatpush1.bf16.msra.mxu0 %v1413
    %1588 = vmatprep.subr.bf16.mxu0 %v1422
    %1589 = vmatpush1.bf16.msra.mxu0 %v1421
    %1590 = vmatprep.subr.bf16.mxu0 %v1430
    %1591 = vmatpush1.bf16.msra.mxu0 %v1429
    %1592 = vmatprep.subr.bf16.mxu0 %v1438
    %1593 = vmatpush1.bf16.msra.mxu0 %v1437
    %1594 = vmatprep.subr.bf16.mxu0 %v1446
    %1595 = vmatpush1.bf16.msra.mxu0 %v1445
    %1596 = vmatprep.subr.bf16.mxu0 %v1454
    %1597 = vmatpush1.bf16.msra.mxu0 %v1453
    %1598 = vmatprep.subr.bf16.mxu0 %v1462
    %1599 = vmatpush1.bf16.msra.mxu0 %v1461
    %1600 = vmatprep.subr.bf16.mxu0 %v1470
    %1601 = vmatpush1.bf16.msra.mxu0 %v1469
    %1602 = vmatprep.subr.bf16.mxu0 %v1478
    %1603 = vmatpush1.bf16.msra.mxu0 %v1477
    %1604 = vmatprep.mubr.bf16.mxu0 %v1488
    %1605 = vmatmul.mubr.bf16.gmra.mrb[0].mxu0 %v1487
    %v1606 = vpop.f32.mrb[0].mxu0
    %v1607 = vadd.f32 %v1566, %v1606
    %v1608 = vpop.f32.mrb[0].mxu0
    %v1609 = vadd.f32 %v1568, %v1608
    %v1610 = vpop.f32.mrb[0].mxu0
    %v1611 = vpop.f32.mrb[0].mxu0
    %1612 = vdwg.mxu0
    %1613 = vmatprep.subr.bf16.mxu0 %v1232
    %1614 = vmatpush1.bf16.msra.mxu0 %v1231
    %1615 = vmatprep.subr.bf16.mxu0 %v1240
    %1616 = vmatpush1.bf16.msra.mxu0 %v1239
    %1617 = vmatprep.subr.bf16.mxu0 %v1248
    %1618 = vmatpush1.bf16.msra.mxu0 %v1247
    %1619 = vmatprep.subr.bf16.mxu0 %v1256
    %1620 = vmatpush1.bf16.msra.mxu0 %v1255
    %1621 = vmatprep.subr.bf16.mxu0 %v1264
    %1622 = vmatpush1.bf16.msra.mxu0 %v1263
    %1623 = vmatprep.subr.bf16.mxu0 %v1272
    %1624 = vmatpush1.bf16.msra.mxu0 %v1271
    %1625 = vmatprep.subr.bf16.mxu0 %v1280
    %1626 = vmatpush1.bf16.msra.mxu0 %v1279
    %1627 = vmatprep.subr.bf16.mxu0 %v1288
    %1628 = vmatpush1.bf16.msra.mxu0 %v1287
    %1629 = vmatprep.subr.bf16.mxu0 %v1296
    %1630 = vmatpush1.bf16.msra.mxu0 %v1295
    %1631 = vmatprep.subr.bf16.mxu0 %v1304
    %1632 = vmatpush1.bf16.msra.mxu0 %v1303
    %1633 = vmatprep.subr.bf16.mxu0 %v1312
    %1634 = vmatpush1.bf16.msra.mxu0 %v1311
    %1635 = vmatprep.subr.bf16.mxu0 %v1320
    %1636 = vmatpush1.bf16.msra.mxu0 %v1319
    %1637 = vmatprep.subr.bf16.mxu0 %v1328
    %1638 = vmatpush1.bf16.msra.mxu0 %v1327
    %1639 = vmatprep.subr.bf16.mxu0 %v1336
    %1640 = vmatpush1.bf16.msra.mxu0 %v1335
    %1641 = vmatprep.subr.bf16.mxu0 %v1344
    %1642 = vmatpush1.bf16.msra.mxu0 %v1343
    %1643 = vmatprep.subr.bf16.mxu0 %v1352
    %1644 = vmatpush1.bf16.msra.mxu0 %v1351
    %1645 = vmatprep.mubr.bf16.mxu0 %v1486
    %1646 = vmatmul.mubr.bf16.gmra.mrb[0].mxu0 %v1485
    %v1647 = vpop.f32.mrb[0].mxu0
    %v1648 = vadd.f32 %v1502, %v1647
    %v1649 = vpop.f32.mrb[0].mxu0
    %v1650 = vadd.f32 %v1506, %v1649
    %v1651 = vpop.f32.mrb[0].mxu0
    %v1652 = vpop.f32.mrb[0].mxu0
    %1653 = vdwg.mxu0
    %1654 = vmatprep.subr.bf16.mxu0 %v1360
    %1655 = vmatpush1.bf16.msra.mxu0 %v1359
    %1656 = vmatprep.subr.bf16.mxu0 %v1368
    %1657 = vmatpush1.bf16.msra.mxu0 %v1367
    %1658 = vmatprep.subr.bf16.mxu0 %v1376
    %1659 = vmatpush1.bf16.msra.mxu0 %v1375
    %1660 = vmatprep.subr.bf16.mxu0 %v1384
    %1661 = vmatpush1.bf16.msra.mxu0 %v1383
    %1662 = vmatprep.subr.bf16.mxu0 %v1392
    %1663 = vmatpush1.bf16.msra.mxu0 %v1391
    %1664 = vmatprep.subr.bf16.mxu0 %v1400
    %1665 = vmatpush1.bf16.msra.mxu0 %v1399
    %1666 = vmatprep.subr.bf16.mxu0 %v1408
    %1667 = vmatpush1.bf16.msra.mxu0 %v1407
    %1668 = vmatprep.subr.bf16.mxu0 %v1416
    %1669 = vmatpush1.bf16.msra.mxu0 %v1415
    %1670 = vmatprep.subr.bf16.mxu0 %v1424
    %1671 = vmatpush1.bf16.msra.mxu0 %v1423
    %1672 = vmatprep.subr.bf16.mxu0 %v1432
    %1673 = vmatpush1.bf16.msra.mxu0 %v1431
    %1674 = vmatprep.subr.bf16.mxu0 %v1440
    %1675 = vmatpush1.bf16.msra.mxu0 %v1439
    %1676 = vmatprep.subr.bf16.mxu0 %v1448
    %1677 = vmatpush1.bf16.msra.mxu0 %v1447
    %1678 = vmatprep.subr.bf16.mxu0 %v1456
    %1679 = vmatpush1.bf16.msra.mxu0 %v1455
    %1680 = vmatprep.subr.bf16.mxu0 %v1464
    %1681 = vmatpush1.bf16.msra.mxu0 %v1463
    %1682 = vmatprep.subr.bf16.mxu0 %v1472
    %1683 = vmatpush1.bf16.msra.mxu0 %v1471
    %1684 = vmatprep.subr.bf16.mxu0 %v1480
    %1685 = vmatpush1.bf16.msra.mxu0 %v1479
    %1686 = vmatprep.mubr.bf16.mxu0 %v1488
    %1687 = vmatmul.mubr.bf16.gmra.mrb[0].mxu0 %v1487
    %v1688 = vpop.f32.mrb[0].mxu0
    %v1689 = vadd.f32 %v1648, %v1688
    %v1690 = vpop.f32.mrb[0].mxu0
    %v1691 = vadd.f32 %v1650, %v1690
    %v1692 = vpop.f32.mrb[0].mxu0
    %v1693 = vpop.f32.mrb[0].mxu0
    %1694 = vdwg.mxu0
    %1695 = vmatprep.subr.bf16.mxu0 %v1234
    %1696 = vmatpush1.bf16.msra.mxu0 %v1233
    %1697 = vmatprep.subr.bf16.mxu0 %v1242
    %1698 = vmatpush1.bf16.msra.mxu0 %v1241
    %1699 = vmatprep.subr.bf16.mxu0 %v1250
    %1700 = vmatpush1.bf16.msra.mxu0 %v1249
    %1701 = vmatprep.subr.bf16.mxu0 %v1258
    %1702 = vmatpush1.bf16.msra.mxu0 %v1257
    %1703 = vmatprep.subr.bf16.mxu0 %v1266
    %1704 = vmatpush1.bf16.msra.mxu0 %v1265
    %1705 = vmatprep.subr.bf16.mxu0 %v1274
    %1706 = vmatpush1.bf16.msra.mxu0 %v1273
    %1707 = vmatprep.subr.bf16.mxu0 %v1282
    %1708 = vmatpush1.bf16.msra.mxu0 %v1281
    %1709 = vmatprep.subr.bf16.mxu0 %v1290
    %1710 = vmatpush1.bf16.msra.mxu0 %v1289
    %1711 = vmatprep.subr.bf16.mxu0 %v1298
    %1712 = vmatpush1.bf16.msra.mxu0 %v1297
    %1713 = vmatprep.subr.bf16.mxu0 %v1306
    %1714 = vmatpush1.bf16.msra.mxu0 %v1305
    %1715 = vmatprep.subr.bf16.mxu0 %v1314
    %1716 = vmatpush1.bf16.msra.mxu0 %v1313
    %1717 = vmatprep.subr.bf16.mxu0 %v1322
    %1718 = vmatpush1.bf16.msra.mxu0 %v1321
    %1719 = vmatprep.subr.bf16.mxu0 %v1330
    %1720 = vmatpush1.bf16.msra.mxu0 %v1329
    %1721 = vmatprep.subr.bf16.mxu0 %v1338
    %1722 = vmatpush1.bf16.msra.mxu0 %v1337
    %1723 = vmatprep.subr.bf16.mxu0 %v1346
    %1724 = vmatpush1.bf16.msra.mxu0 %v1345
    %1725 = vmatprep.subr.bf16.mxu0 %v1354
    %1726 = vmatpush1.bf16.msra.mxu0 %v1353
    %1727 = vmatprep.mubr.bf16.mxu0 %v1486
    %1728 = vmatmul.mubr.bf16.gmra.mrb[0].mxu0 %v1485
    %v1729 = vpop.f32.mrb[0].mxu0
    %v1730 = vadd.f32 %v1510, %v1729
    %v1731 = vpop.f32.mrb[0].mxu0
    %v1732 = vadd.f32 %v1514, %v1731
    %v1733 = vpop.f32.mrb[0].mxu0
    %v1734 = vpop.f32.mrb[0].mxu0
    %1735 = vdwg.mxu0
    %1736 = vmatprep.subr.bf16.mxu0 %v1362
    %1737 = vmatpush1.bf16.msra.mxu0 %v1361
    %1738 = vmatprep.subr.bf16.mxu0 %v1370
    %1739 = vmatpush1.bf16.msra.mxu0 %v1369
    %1740 = vmatprep.subr.bf16.mxu0 %v1378
    %1741 = vmatpush1.bf16.msra.mxu0 %v1377
    %1742 = vmatprep.subr.bf16.mxu0 %v1386
    %1743 = vmatpush1.bf16.msra.mxu0 %v1385
    %1744 = vmatprep.subr.bf16.mxu0 %v1394
    %1745 = vmatpush1.bf16.msra.mxu0 %v1393
    %1746 = vmatprep.subr.bf16.mxu0 %v1402
    %1747 = vmatpush1.bf16.msra.mxu0 %v1401
    %1748 = vmatprep.subr.bf16.mxu0 %v1410
    %1749 = vmatpush1.bf16.msra.mxu0 %v1409
    %1750 = vmatprep.subr.bf16.mxu0 %v1418
    %1751 = vmatpush1.bf16.msra.mxu0 %v1417
    %1752 = vmatprep.subr.bf16.mxu0 %v1426
    %1753 = vmatpush1.bf16.msra.mxu0 %v1425
    %1754 = vmatprep.subr.bf16.mxu0 %v1434
    %1755 = vmatpush1.bf16.msra.mxu0 %v1433
    %1756 = vmatprep.subr.bf16.mxu0 %v1442
    %1757 = vmatpush1.bf16.msra.mxu0 %v1441
    %1758 = vmatprep.subr.bf16.mxu0 %v1450
    %1759 = vmatpush1.bf16.msra.mxu0 %v1449
    %1760 = vmatprep.subr.bf16.mxu0 %v1458
    %1761 = vmatpush1.bf16.msra.mxu0 %v1457
    %1762 = vmatprep.subr.bf16.mxu0 %v1466
    %1763 = vmatpush1.bf16.msra.mxu0 %v1465
    %1764 = vmatprep.subr.bf16.mxu0 %v1474
    %1765 = vmatpush1.bf16.msra.mxu0 %v1473
    %1766 = vmatprep.subr.bf16.mxu0 %v1482
    %1767 = vmatpush1.bf16.msra.mxu0 %v1481
    %1768 = vmatprep.mubr.bf16.mxu0 %v1488
    %1769 = vmatmul.mubr.bf16.gmra.mrb[0].mxu0 %v1487
    %v1770 = vpop.f32.mrb[0].mxu0
    %v1771 = vadd.f32 %v1730, %v1770
    %v1772 = vpop.f32.mrb[0].mxu0
    %v1773 = vadd.f32 %v1732, %v1772
    %v1774 = vpop.f32.mrb[0].mxu0
    %v1775 = vpop.f32.mrb[0].mxu0
    %1776 = vdwg.mxu0
    %1777 = vmatprep.subr.bf16.mxu0 %v1236
    %1778 = vmatpush1.bf16.msra.mxu0 %v1235
    %1779 = vmatprep.subr.bf16.mxu0 %v1244
    %1780 = vmatpush1.bf16.msra.mxu0 %v1243
    %1781 = vmatprep.subr.bf16.mxu0 %v1252
    %1782 = vmatpush1.bf16.msra.mxu0 %v1251
    %1783 = vmatprep.subr.bf16.mxu0 %v1260
    %1784 = vmatpush1.bf16.msra.mxu0 %v1259
    %1785 = vmatprep.subr.bf16.mxu0 %v1268
    %1786 = vmatpush1.bf16.msra.mxu0 %v1267
    %1787 = vmatprep.subr.bf16.mxu0 %v1276
    %1788 = vmatpush1.bf16.msra.mxu0 %v1275
    %1789 = vmatprep.subr.bf16.mxu0 %v1284
    %1790 = vmatpush1.bf16.msra.mxu0 %v1283
    %1791 = vmatprep.subr.bf16.mxu0 %v1292
    %1792 = vmatpush1.bf16.msra.mxu0 %v1291
    %1793 = vmatprep.subr.bf16.mxu0 %v1300
    %1794 = vmatpush1.bf16.msra.mxu0 %v1299
    %1795 = vmatprep.subr.bf16.mxu0 %v1308
    %1796 = vmatpush1.bf16.msra.mxu0 %v1307
    %1797 = vmatprep.subr.bf16.mxu0 %v1316
    %1798 = vmatpush1.bf16.msra.mxu0 %v1315
    %1799 = vmatprep.subr.bf16.mxu0 %v1324
    %1800 = vmatpush1.bf16.msra.mxu0 %v1323
    %1801 = vmatprep.subr.bf16.mxu0 %v1332
    %1802 = vmatpush1.bf16.msra.mxu0 %v1331
    %1803 = vmatprep.subr.bf16.mxu0 %v1340
    %1804 = vmatpush1.bf16.msra.mxu0 %v1339
    %1805 = vmatprep.subr.bf16.mxu0 %v1348
    %1806 = vmatpush1.bf16.msra.mxu0 %v1347
    %1807 = vmatprep.subr.bf16.mxu0 %v1356
    %1808 = vmatpush1.bf16.msra.mxu0 %v1355
    %1809 = vmatprep.mubr.bf16.mxu0 %v1486
    %1810 = vmatmul.mubr.bf16.gmra.mrb[0].mxu0 %v1485
    %v1811 = vpop.f32.mrb[0].mxu0
    %v1812 = vadd.f32 %v1518, %v1811
    %v1813 = vpop.f32.mrb[0].mxu0
    %v1814 = vadd.f32 %v1522, %v1813
    %v1815 = vpop.f32.mrb[0].mxu0
    %v1816 = vpop.f32.mrb[0].mxu0
    %1817 = vdwg.mxu0
    %1818 = vmatprep.subr.bf16.mxu0 %v1364
    %1819 = vmatpush1.bf16.msra.mxu0 %v1363
    %1820 = vmatprep.subr.bf16.mxu0 %v1372
    %1821 = vmatpush1.bf16.msra.mxu0 %v1371
    %1822 = vmatprep.subr.bf16.mxu0 %v1380
    %1823 = vmatpush1.bf16.msra.mxu0 %v1379
    %1824 = vmatprep.subr.bf16.mxu0 %v1388
    %1825 = vmatpush1.bf16.msra.mxu0 %v1387
    %1826 = vmatprep.subr.bf16.mxu0 %v1396
    %1827 = vmatpush1.bf16.msra.mxu0 %v1395
    %1828 = vmatprep.subr.bf16.mxu0 %v1404
    %1829 = vmatpush1.bf16.msra.mxu0 %v1403
    %1830 = vmatprep.subr.bf16.mxu0 %v1412
    %1831 = vmatpush1.bf16.msra.mxu0 %v1411
    %1832 = vmatprep.subr.bf16.mxu0 %v1420
    %1833 = vmatpush1.bf16.msra.mxu0 %v1419
    %1834 = vmatprep.subr.bf16.mxu0 %v1428
    %1835 = vmatpush1.bf16.msra.mxu0 %v1427
    %1836 = vmatprep.subr.bf16.mxu0 %v1436
    %1837 = vmatpush1.bf16.msra.mxu0 %v1435
    %1838 = vmatprep.subr.bf16.mxu0 %v1444
    %1839 = vmatpush1.bf16.msra.mxu0 %v1443
    %1840 = vmatprep.subr.bf16.mxu0 %v1452
    %1841 = vmatpush1.bf16.msra.mxu0 %v1451
    %1842 = vmatprep.subr.bf16.mxu0 %v1460
    %1843 = vmatpush1.bf16.msra.mxu0 %v1459
    %1844 = vmatprep.subr.bf16.mxu0 %v1468
    %1845 = vmatpush1.bf16.msra.mxu0 %v1467
    %1846 = vmatprep.subr.bf16.mxu0 %v1476
    %1847 = vmatpush1.bf16.msra.mxu0 %v1475
    %1848 = vmatprep.subr.bf16.mxu0 %v1484
    %1849 = vmatpush1.bf16.msra.mxu0 %v1483
    %1850 = vmatprep.mubr.bf16.mxu0 %v1488
    %1851 = vmatmul.mubr.bf16.gmra.mrb[0].mxu0 %v1487
    %v1852 = vpop.f32.mrb[0].mxu0
    %v1853 = vadd.f32 %v1812, %v1852
    %v1854 = vpop.f32.mrb[0].mxu0
    %v1855 = vadd.f32 %v1814, %v1854
    %v1856 = vpop.f32.mrb[0].mxu0
    %v1857 = vpop.f32.mrb[0].mxu0
    %1858 = vdwg.mxu0
    %v1859 = vld [vmem:[#allocation16 + $0x1b] sm:$0xff]
    %v1860 = vld [vmem:[#allocation16 + $0x23] sm:$0xff]
    %v1861 = vsel %vm511, %v1607, 0.0
    %v1862 = vrot.slane %v1861, 4
    %v1863 = vadd.f32 %v1861, %v1862
    %v1864 = vrot.slane %v1863, 2
    %v1865 = vadd.f32 %v1863, %v1864
    %v1866 = vrot.slane %v1865, 1
    %v1867 = vadd.f32 %v1865, %v1866
    %v1868 = vsel %vm511, %v1609, 0.0
    %v1869 = vrot.slane %v1868, 4
    %v1870 = vadd.f32 %v1868, %v1869
    %v1871 = vrot.slane %v1870, 2
    %v1872 = vadd.f32 %v1870, %v1871
    %v1873 = vrot.slane %v1872, 1
    %v1874 = vadd.f32 %v1872, %v1873
    %v1875 = vsel %vm511, %v1689, 0.0
    %v1876 = vrot.slane %v1875, 4
    %v1877 = vadd.f32 %v1875, %v1876
    %v1878 = vrot.slane %v1877, 2
    %v1879 = vadd.f32 %v1877, %v1878
    %v1880 = vrot.slane %v1879, 1
    %v1881 = vadd.f32 %v1879, %v1880
    %v1882 = vsel %vm511, %v1691, 0.0
    %v1883 = vrot.slane %v1882, 4
    %v1884 = vadd.f32 %v1882, %v1883
    %v1885 = vrot.slane %v1884, 2
    %v1886 = vadd.f32 %v1884, %v1885
    %v1887 = vrot.slane %v1886, 1
    %v1888 = vadd.f32 %v1886, %v1887
    %v1889 = vsel %vm511, %v1771, 0.0
    %v1890 = vrot.slane %v1889, 4
    %v1891 = vadd.f32 %v1889, %v1890
    %v1892 = vrot.slane %v1891, 2
    %v1893 = vadd.f32 %v1891, %v1892
    %v1894 = vrot.slane %v1893, 1
    %v1895 = vadd.f32 %v1893, %v1894
    %v1896 = vsel %vm511, %v1773, 0.0
    %v1897 = vrot.slane %v1896, 4
    %v1898 = vadd.f32 %v1896, %v1897
    %v1899 = vrot.slane %v1898, 2
    %v1900 = vadd.f32 %v1898, %v1899
    %v1901 = vrot.slane %v1900, 1
    %v1902 = vadd.f32 %v1900, %v1901
    %v1903 = vsel %vm511, %v1853, 0.0
    %v1904 = vrot.slane %v1903, 4
    %v1905 = vadd.f32 %v1903, %v1904
    %v1906 = vrot.slane %v1905, 2
    %v1907 = vadd.f32 %v1905, %v1906
    %v1908 = vrot.slane %v1907, 1
    %v1909 = vadd.f32 %v1907, %v1908
    %v1910 = vsel %vm511, %v1855, 0.0
    %v1911 = vrot.slane %v1910, 4
    %v1912 = vadd.f32 %v1910, %v1911
    %v1913 = vrot.slane %v1912, 2
    %v1914 = vadd.f32 %v1912, %v1913
    %v1915 = vrot.slane %v1914, 1
    %v1916 = vadd.f32 %v1914, %v1915
    %v1917 = vmul.f32 %v1867, %v526
    %v1918 = vmul.f32 %v1874, %v526
    %v1919 = vmul.f32 %v1881, %v526
    %v1920 = vmul.f32 %v1888, %v526
    %v1921 = vmul.f32 %v1895, %v526
    %v1922 = vmul.f32 %v1902, %v526
    %v1923 = vmul.f32 %v1909, %v526
    %v1924 = vmul.f32 %v1916, %v526
    %v1925 = vsub.f32 %v1607, %v1917
    %v1926 = vsub.f32 %v1609, %v1918
    %v1927 = vsub.f32 %v1689, %v1919
    %v1928 = vsub.f32 %v1691, %v1920
    %v1929 = vsub.f32 %v1771, %v1921
    %v1930 = vsub.f32 %v1773, %v1922
    %v1931 = vsub.f32 %v1853, %v1923
    %v1932 = vsub.f32 %v1855, %v1924
    %v1933 = vmul.f32 %v1925, %v1925
    %v1934 = vmul.f32 %v1926, %v1926
    %v1935 = vmul.f32 %v1927, %v1927
    %v1936 = vmul.f32 %v1928, %v1928
    %v1937 = vmul.f32 %v1929, %v1929
    %v1938 = vmul.f32 %v1930, %v1930
    %v1939 = vmul.f32 %v1931, %v1931
    %v1940 = vmul.f32 %v1932, %v1932
    %v1941 = vsel %vm511, %v1933, 0.0
    %v1942 = vrot.slane %v1941, 4
    %v1943 = vadd.f32 %v1941, %v1942
    %v1944 = vrot.slane %v1943, 2
    %v1945 = vadd.f32 %v1943, %v1944
    %v1946 = vrot.slane %v1945, 1
    %v1947 = vadd.f32 %v1945, %v1946
    %v1948 = vsel %vm511, %v1934, 0.0
    %v1949 = vrot.slane %v1948, 4
    %v1950 = vadd.f32 %v1948, %v1949
    %v1951 = vrot.slane %v1950, 2
    %v1952 = vadd.f32 %v1950, %v1951
    %v1953 = vrot.slane %v1952, 1
    %v1954 = vadd.f32 %v1952, %v1953
    %v1955 = vsel %vm511, %v1935, 0.0
    %v1956 = vrot.slane %v1955, 4
    %v1957 = vadd.f32 %v1955, %v1956
    %v1958 = vrot.slane %v1957, 2
    %v1959 = vadd.f32 %v1957, %v1958
    %v1960 = vrot.slane %v1959, 1
    %v1961 = vadd.f32 %v1959, %v1960
    %v1962 = vsel %vm511, %v1936, 0.0
    %v1963 = vrot.slane %v1962, 4
    %v1964 = vadd.f32 %v1962, %v1963
    %v1965 = vrot.slane %v1964, 2
    %v1966 = vadd.f32 %v1964, %v1965
    %v1967 = vrot.slane %v1966, 1
    %v1968 = vadd.f32 %v1966, %v1967
    %v1969 = vsel %vm511, %v1937, 0.0
    %v1970 = vrot.slane %v1969, 4
    %v1971 = vadd.f32 %v1969, %v1970
    %v1972 = vrot.slane %v1971, 2
    %v1973 = vadd.f32 %v1971, %v1972
    %v1974 = vrot.slane %v1973, 1
    %v1975 = vadd.f32 %v1973, %v1974
    %v1976 = vsel %vm511, %v1938, 0.0
    %v1977 = vrot.slane %v1976, 4
    %v1978 = vadd.f32 %v1976, %v1977
    %v1979 = vrot.slane %v1978, 2
    %v1980 = vadd.f32 %v1978, %v1979
    %v1981 = vrot.slane %v1980, 1
    %v1982 = vadd.f32 %v1980, %v1981
    %v1983 = vsel %vm511, %v1939, 0.0
    %v1984 = vrot.slane %v1983, 4
    %v1985 = vadd.f32 %v1983, %v1984
    %v1986 = vrot.slane %v1985, 2
    %v1987 = vadd.f32 %v1985, %v1986
    %v1988 = vrot.slane %v1987, 1
    %v1989 = vadd.f32 %v1987, %v1988
    %v1990 = vsel %vm511, %v1940, 0.0
    %v1991 = vrot.slane %v1990, 4
    %v1992 = vadd.f32 %v1990, %v1991
    %v1993 = vrot.slane %v1992, 2
    %v1994 = vadd.f32 %v1992, %v1993
    %v1995 = vrot.slane %v1994, 1
    %v1996 = vadd.f32 %v1994, %v1995
    %v1997 = vmul.f32 %v1947, %v526
    %v1998 = vmul.f32 %v1954, %v526
    %v1999 = vmul.f32 %v1961, %v526
    %v2000 = vmul.f32 %v1968, %v526
    %v2001 = vmul.f32 %v1975, %v526
    %v2002 = vmul.f32 %v1982, %v526
    %v2003 = vmul.f32 %v1989, %v526
    %v2004 = vmul.f32 %v1996, %v526
    %v2005 = vadd.f32 %v1997, 1e-05
    %v2006 = vadd.f32 %v1998, 1e-05
    %v2007 = vadd.f32 %v1999, 1e-05
    %v2008 = vadd.f32 %v2000, 1e-05
    %v2009 = vadd.f32 %v2001, 1e-05
    %v2010 = vadd.f32 %v2002, 1e-05
    %v2011 = vadd.f32 %v2003, 1e-05
    %v2012 = vadd.f32 %v2004, 1e-05
    %v2013 = vrsqrt.pop %v2005
    %v2014 = vrsqrt.pop %v2006
    %v2015 = vrsqrt.pop %v2007
    %v2016 = vrsqrt.pop %v2008
    %v2017 = vrsqrt.pop %v2009
    %v2018 = vrsqrt.pop %v2010
    %v2019 = vrsqrt.pop %v2011
    %v2020 = vrsqrt.pop %v2012
    %v2021 = vmul.f32 %v1925, %v2013
    %v2022 = vmul.f32 %v1926, %v2014
    %v2023 = vmul.f32 %v1927, %v2015
    %v2024 = vmul.f32 %v1928, %v2016
    %v2025 = vmul.f32 %v1929, %v2017
    %v2026 = vmul.f32 %v1930, %v2018
    %v2027 = vmul.f32 %v1931, %v2019
    %v2028 = vmul.f32 %v1932, %v2020
    %v2030 = vlaneseq
    %v2031 = vshrl.u32 %v2030, 7
    %v2032 = vsub.s32 0, %v2031
    %v2033 = vrot.slane %v1859, %v2032
    %v2034 = vlaneseq
    %v2035 = vshrl.u32 %v2034, 7
    %v2036 = vsub.s32 1, %v2035
    %v2037 = vrot.slane %v1859, %v2036
    %v2038 = vlaneseq
    %v2039 = vshrl.u32 %v2038, 7
    %v2040 = vsub.s32 2, %v2039
    %v2041 = vrot.slane %v1859, %v2040
    %v2042 = vlaneseq
    %v2043 = vshrl.u32 %v2042, 7
    %v2044 = vsub.s32 3, %v2043
    %v2045 = vrot.slane %v1859, %v2044
    %v2046 = vlaneseq
    %v2047 = vshrl.u32 %v2046, 7
    %v2048 = vsub.s32 4, %v2047
    %v2049 = vrot.slane %v1859, %v2048
    %v2050 = vlaneseq
    %v2051 = vshrl.u32 %v2050, 7
    %v2052 = vsub.s32 5, %v2051
    %v2053 = vrot.slane %v1859, %v2052
    %v2054 = vlaneseq
    %v2055 = vshrl.u32 %v2054, 7
    %v2056 = vsub.s32 6, %v2055
    %v2057 = vrot.slane %v1859, %v2056
    %v2058 = vlaneseq
    %v2059 = vshrl.u32 %v2058, 7
    %v2060 = vsub.s32 7, %v2059
    %v2061 = vrot.slane %v1859, %v2060
    %v2070 = vmul.f32 %v2021, %v2033
    %v2071 = vmul.f32 %v2022, %v2037
    %v2072 = vmul.f32 %v2023, %v2041
    %v2073 = vmul.f32 %v2024, %v2045
    %v2074 = vmul.f32 %v2025, %v2049
    %v2075 = vmul.f32 %v2026, %v2053
    %v2076 = vmul.f32 %v2027, %v2057
    %v2077 = vmul.f32 %v2028, %v2061
    %v2079 = vlaneseq
    %v2080 = vshrl.u32 %v2079, 7
    %v2081 = vsub.s32 0, %v2080
    %v2082 = vrot.slane %v1860, %v2081
    %v2083 = vlaneseq
    %v2084 = vshrl.u32 %v2083, 7
    %v2085 = vsub.s32 1, %v2084
    %v2086 = vrot.slane %v1860, %v2085
    %v2087 = vlaneseq
    %v2088 = vshrl.u32 %v2087, 7
    %v2089 = vsub.s32 2, %v2088
    %v2090 = vrot.slane %v1860, %v2089
    %v2091 = vlaneseq
    %v2092 = vshrl.u32 %v2091, 7
    %v2093 = vsub.s32 3, %v2092
    %v2094 = vrot.slane %v1860, %v2093
    %v2095 = vlaneseq
    %v2096 = vshrl.u32 %v2095, 7
    %v2097 = vsub.s32 4, %v2096
    %v2098 = vrot.slane %v1860, %v2097
    %v2099 = vlaneseq
    %v2100 = vshrl.u32 %v2099, 7
    %v2101 = vsub.s32 5, %v2100
    %v2102 = vrot.slane %v1860, %v2101
    %v2103 = vlaneseq
    %v2104 = vshrl.u32 %v2103, 7
    %v2105 = vsub.s32 6, %v2104
    %v2106 = vrot.slane %v1860, %v2105
    %v2107 = vlaneseq
    %v2108 = vshrl.u32 %v2107, 7
    %v2109 = vsub.s32 7, %v2108
    %v2110 = vrot.slane %v1860, %v2109
    %v2119 = vadd.f32 %v2070, %v2082
    %v2120 = vadd.f32 %v2071, %v2086
    %v2121 = vadd.f32 %v2072, %v2090
    %v2122 = vadd.f32 %v2073, %v2094
    %v2123 = vadd.f32 %v2074, %v2098
    %v2124 = vadd.f32 %v2075, %v2102
    %v2125 = vadd.f32 %v2076, %v2106
    %v2126 = vadd.f32 %v2077, %v2110
    %vm2127 = vcmp.ge.f32.partialorder %v2119, 0.0
    %vm2128 = vcmp.ge.f32.partialorder %v2120, 0.0
    %vm2129 = vcmp.ge.f32.partialorder %v2121, 0.0
    %vm2130 = vcmp.ge.f32.partialorder %v2122, 0.0
    %vm2131 = vcmp.ge.f32.partialorder %v2123, 0.0
    %vm2132 = vcmp.ge.f32.partialorder %v2124, 0.0
    %vm2133 = vcmp.ge.f32.partialorder %v2125, 0.0
    %vm2134 = vcmp.ge.f32.partialorder %v2126, 0.0
    %v2135 = vmul.f32 %v2119, 0.2
    %v2136 = vmul.f32 %v2120, 0.2
    %v2137 = vmul.f32 %v2121, 0.2
    %v2138 = vmul.f32 %v2122, 0.2
    %v2139 = vmul.f32 %v2123, 0.2
    %v2140 = vmul.f32 %v2124, 0.2
    %v2141 = vmul.f32 %v2125, 0.2
    %v2142 = vmul.f32 %v2126, 0.2
    %v2143 = vsel %vm2127, %v2119, %v2135
    %v2144 = vsel %vm2128, %v2120, %v2136
    %v2145 = vsel %vm2129, %v2121, %v2137
    %v2146 = vsel %vm2130, %v2122, %v2138
    %v2147 = vsel %vm2131, %v2123, %v2139
    %v2148 = vsel %vm2132, %v2124, %v2140
    %v2149 = vsel %vm2133, %v2125, %v2141
    %v2150 = vsel %vm2134, %v2126, %v2142
    %s2151 = smul.u32 4, 128
    %s2152 = smul.u32 %s2151, 7
    %s2153 = sshll.u32 %s2152, 4
    %2154 = dma.done %s154, %s2153
    %v2155 = vld [vmem:[#allocation3] sm:$0xff]
    %v2156 = vld [vmem:[#allocation3 + $0x8] sm:$0xff]
    %v2157 = vld [vmem:[#allocation3 + $0x10] sm:$0xff]
    %v2158 = vld [vmem:[#allocation3 + $0x18] sm:$0xff]
    %v2159 = vld [vmem:[#allocation3 + $0x20] sm:$0xff]
    %v2160 = vld [vmem:[#allocation3 + $0x28] sm:$0xff]
    %v2161 = vld [vmem:[#allocation3 + $0x30] sm:$0xff]
    %v2162 = vld [vmem:[#allocation3 + $0x38] sm:$0xff]
    %v2163 = vld [vmem:[#allocation3 + $0x40] sm:$0xff]
    %v2164 = vld [vmem:[#allocation3 + $0x48] sm:$0xff]
    %v2165 = vld [vmem:[#allocation3 + $0x50] sm:$0xff]
    %v2166 = vld [vmem:[#allocation3 + $0x58] sm:$0xff]
    %v2167 = vld [vmem:[#allocation3 + $0x60] sm:$0xff]
    %v2168 = vld [vmem:[#allocation3 + $0x68] sm:$0xff]
    %v2169 = vld [vmem:[#allocation3 + $0x70] sm:$0xff]
    %v2170 = vld [vmem:[#allocation3 + $0x78] sm:$0xff]
    %v2171 = vld [vmem:[#allocation3 + $0x80] sm:$0xff]
    %v2172 = vld [vmem:[#allocation3 + $0x88] sm:$0xff]
    %v2173 = vld [vmem:[#allocation3 + $0x90] sm:$0xff]
    %v2174 = vld [vmem:[#allocation3 + $0x98] sm:$0xff]
    %v2175 = vld [vmem:[#allocation3 + $0xa0] sm:$0xff]
    %v2176 = vld [vmem:[#allocation3 + $0xa8] sm:$0xff]
    %v2177 = vld [vmem:[#allocation3 + $0xb0] sm:$0xff]
    %v2178 = vld [vmem:[#allocation3 + $0xb8] sm:$0xff]
    %v2179 = vld [vmem:[#allocation3 + $0xc0] sm:$0xff]
    %v2180 = vld [vmem:[#allocation3 + $0xc8] sm:$0xff]
    %v2181 = vld [vmem:[#allocation3 + $0xd0] sm:$0xff]
    %v2182 = vld [vmem:[#allocation3 + $0xd8] sm:$0xff]
    %v2183 = vld [vmem:[#allocation3 + $0xe0] sm:$0xff]
    %v2184 = vld [vmem:[#allocation3 + $0xe8] sm:$0xff]
    %v2185 = vld [vmem:[#allocation3 + $0xf0] sm:$0xff]
    %v2186 = vld [vmem:[#allocation3 + $0xf8] sm:$0xff]
    %v2187 = vld [vmem:[#allocation3 + $0x100] sm:$0xff]
    %v2188 = vld [vmem:[#allocation3 + $0x108] sm:$0xff]
    %v2189 = vld [vmem:[#allocation3 + $0x110] sm:$0xff]
    %v2190 = vld [vmem:[#allocation3 + $0x118] sm:$0xff]
    %v2191 = vld [vmem:[#allocation3 + $0x120] sm:$0xff]
    %v2192 = vld [vmem:[#allocation3 + $0x128] sm:$0xff]
    %v2193 = vld [vmem:[#allocation3 + $0x130] sm:$0xff]
    %v2194 = vld [vmem:[#allocation3 + $0x138] sm:$0xff]
    %v2195 = vld [vmem:[#allocation3 + $0x140] sm:$0xff]
    %v2196 = vld [vmem:[#allocation3 + $0x148] sm:$0xff]
    %v2197 = vld [vmem:[#allocation3 + $0x150] sm:$0xff]
    %v2198 = vld [vmem:[#allocation3 + $0x158] sm:$0xff]
    %v2199 = vld [vmem:[#allocation3 + $0x160] sm:$0xff]
    %v2200 = vld [vmem:[#allocation3 + $0x168] sm:$0xff]
    %v2201 = vld [vmem:[#allocation3 + $0x170] sm:$0xff]
    %v2202 = vld [vmem:[#allocation3 + $0x178] sm:$0xff]
    %v2203 = vld [vmem:[#allocation3 + $0x180] sm:$0xff]
    %v2204 = vld [vmem:[#allocation3 + $0x188] sm:$0xff]
    %v2205 = vld [vmem:[#allocation3 + $0x190] sm:$0xff]
    %v2206 = vld [vmem:[#allocation3 + $0x198] sm:$0xff]
    %v2207 = vld [vmem:[#allocation3 + $0x1a0] sm:$0xff]
    %v2208 = vld [vmem:[#allocation3 + $0x1a8] sm:$0xff]
    %v2209 = vld [vmem:[#allocation3 + $0x1b0] sm:$0xff]
    %v2210 = vld [vmem:[#allocation3 + $0x1b8] sm:$0xff]
    %v2211 = vld [vmem:[#allocation3 + $0x1c0] sm:$0xff]
    %v2212 = vld [vmem:[#allocation3 + $0x1c8] sm:$0xff]
    %v2213 = vld [vmem:[#allocation3 + $0x1d0] sm:$0xff]
    %v2214 = vld [vmem:[#allocation3 + $0x1d8] sm:$0xff]
    %v2215 = vld [vmem:[#allocation3 + $0x1e0] sm:$0xff]
    %v2216 = vld [vmem:[#allocation3 + $0x1e8] sm:$0xff]
    %v2217 = vld [vmem:[#allocation3 + $0x1f0] sm:$0xff]
    %v2218 = vld [vmem:[#allocation3 + $0x1f8] sm:$0xff]
    %v2219 = vld [vmem:[#allocation3 + $0x200] sm:$0xff]
    %v2220 = vld [vmem:[#allocation3 + $0x208] sm:$0xff]
    %v2221 = vld [vmem:[#allocation3 + $0x210] sm:$0xff]
    %v2222 = vld [vmem:[#allocation3 + $0x218] sm:$0xff]
    %v2223 = vld [vmem:[#allocation3 + $0x220] sm:$0xff]
    %v2224 = vld [vmem:[#allocation3 + $0x228] sm:$0xff]
    %v2225 = vld [vmem:[#allocation3 + $0x230] sm:$0xff]
    %v2226 = vld [vmem:[#allocation3 + $0x238] sm:$0xff]
    %v2227 = vld [vmem:[#allocation3 + $0x240] sm:$0xff]
    %v2228 = vld [vmem:[#allocation3 + $0x248] sm:$0xff]
    %v2229 = vld [vmem:[#allocation3 + $0x250] sm:$0xff]
    %v2230 = vld [vmem:[#allocation3 + $0x258] sm:$0xff]
    %v2231 = vld [vmem:[#allocation3 + $0x260] sm:$0xff]
    %v2232 = vld [vmem:[#allocation3 + $0x268] sm:$0xff]
    %v2233 = vld [vmem:[#allocation3 + $0x270] sm:$0xff]
    %v2234 = vld [vmem:[#allocation3 + $0x278] sm:$0xff]
    %v2235 = vld [vmem:[#allocation3 + $0x280] sm:$0xff]
    %v2236 = vld [vmem:[#allocation3 + $0x288] sm:$0xff]
    %v2237 = vld [vmem:[#allocation3 + $0x290] sm:$0xff]
    %v2238 = vld [vmem:[#allocation3 + $0x298] sm:$0xff]
    %v2239 = vld [vmem:[#allocation3 + $0x2a0] sm:$0xff]
    %v2240 = vld [vmem:[#allocation3 + $0x2a8] sm:$0xff]
    %v2241 = vld [vmem:[#allocation3 + $0x2b0] sm:$0xff]
    %v2242 = vld [vmem:[#allocation3 + $0x2b8] sm:$0xff]
    %v2243 = vld [vmem:[#allocation3 + $0x2c0] sm:$0xff]
    %v2244 = vld [vmem:[#allocation3 + $0x2c8] sm:$0xff]
    %v2245 = vld [vmem:[#allocation3 + $0x2d0] sm:$0xff]
    %v2246 = vld [vmem:[#allocation3 + $0x2d8] sm:$0xff]
    %v2247 = vld [vmem:[#allocation3 + $0x2e0] sm:$0xff]
    %v2248 = vld [vmem:[#allocation3 + $0x2e8] sm:$0xff]
    %v2249 = vld [vmem:[#allocation3 + $0x2f0] sm:$0xff]
    %v2250 = vld [vmem:[#allocation3 + $0x2f8] sm:$0xff]
    %v2251 = vld [vmem:[#allocation3 + $0x300] sm:$0xff]
    %v2252 = vld [vmem:[#allocation3 + $0x308] sm:$0xff]
    %v2253 = vld [vmem:[#allocation3 + $0x310] sm:$0xff]
    %v2254 = vld [vmem:[#allocation3 + $0x318] sm:$0xff]
    %v2255 = vld [vmem:[#allocation3 + $0x320] sm:$0xff]
    %v2256 = vld [vmem:[#allocation3 + $0x328] sm:$0xff]
    %v2257 = vld [vmem:[#allocation3 + $0x330] sm:$0xff]
    %v2258 = vld [vmem:[#allocation3 + $0x338] sm:$0xff]
    %v2259 = vld [vmem:[#allocation3 + $0x340] sm:$0xff]
    %v2260 = vld [vmem:[#allocation3 + $0x348] sm:$0xff]
    %v2261 = vld [vmem:[#allocation3 + $0x350] sm:$0xff]
    %v2262 = vld [vmem:[#allocation3 + $0x358] sm:$0xff]
    %v2263 = vld [vmem:[#allocation3 + $0x360] sm:$0xff]
    %v2264 = vld [vmem:[#allocation3 + $0x368] sm:$0xff]
    %v2265 = vld [vmem:[#allocation3 + $0x370] sm:$0xff]
    %v2266 = vld [vmem:[#allocation3 + $0x378] sm:$0xff]
    %v2267 = vld [vmem:[#allocation3 + $0x380] sm:$0xff]
    %v2268 = vld [vmem:[#allocation3 + $0x388] sm:$0xff]
    %v2269 = vld [vmem:[#allocation3 + $0x390] sm:$0xff]
    %v2270 = vld [vmem:[#allocation3 + $0x398] sm:$0xff]
    %v2271 = vld [vmem:[#allocation3 + $0x3a0] sm:$0xff]
    %v2272 = vld [vmem:[#allocation3 + $0x3a8] sm:$0xff]
    %v2273 = vld [vmem:[#allocation3 + $0x3b0] sm:$0xff]
    %v2274 = vld [vmem:[#allocation3 + $0x3b8] sm:$0xff]
    %v2275 = vld [vmem:[#allocation3 + $0x3c0] sm:$0xff]
    %v2276 = vld [vmem:[#allocation3 + $0x3c8] sm:$0xff]
    %v2277 = vld [vmem:[#allocation3 + $0x3d0] sm:$0xff]
    %v2278 = vld [vmem:[#allocation3 + $0x3d8] sm:$0xff]
    %v2279 = vld [vmem:[#allocation3 + $0x3e0] sm:$0xff]
    %v2280 = vld [vmem:[#allocation3 + $0x3e8] sm:$0xff]
    %v2281 = vld [vmem:[#allocation3 + $0x3f0] sm:$0xff]
    %v2282 = vld [vmem:[#allocation3 + $0x3f8] sm:$0xff]
    %v2283 = vld [vmem:[#allocation3 + $0x400] sm:$0xff]
    %v2284 = vld [vmem:[#allocation3 + $0x408] sm:$0xff]
    %v2285 = vld [vmem:[#allocation3 + $0x410] sm:$0xff]
    %v2286 = vld [vmem:[#allocation3 + $0x418] sm:$0xff]
    %v2287 = vld [vmem:[#allocation3 + $0x420] sm:$0xff]
    %v2288 = vld [vmem:[#allocation3 + $0x428] sm:$0xff]
    %v2289 = vld [vmem:[#allocation3 + $0x430] sm:$0xff]
    %v2290 = vld [vmem:[#allocation3 + $0x438] sm:$0xff]
    %v2291 = vld [vmem:[#allocation3 + $0x440] sm:$0xff]
    %v2292 = vld [vmem:[#allocation3 + $0x448] sm:$0xff]
    %v2293 = vld [vmem:[#allocation3 + $0x450] sm:$0xff]
    %v2294 = vld [vmem:[#allocation3 + $0x458] sm:$0xff]
    %v2295 = vld [vmem:[#allocation3 + $0x460] sm:$0xff]
    %v2296 = vld [vmem:[#allocation3 + $0x468] sm:$0xff]
    %v2297 = vld [vmem:[#allocation3 + $0x470] sm:$0xff]
    %v2298 = vld [vmem:[#allocation3 + $0x478] sm:$0xff]
    %v2299 = vld [vmem:[#allocation3 + $0x480] sm:$0xff]
    %v2300 = vld [vmem:[#allocation3 + $0x488] sm:$0xff]
    %v2301 = vld [vmem:[#allocation3 + $0x490] sm:$0xff]
    %v2302 = vld [vmem:[#allocation3 + $0x498] sm:$0xff]
    %v2303 = vld [vmem:[#allocation3 + $0x4a0] sm:$0xff]
    %v2304 = vld [vmem:[#allocation3 + $0x4a8] sm:$0xff]
    %v2305 = vld [vmem:[#allocation3 + $0x4b0] sm:$0xff]
    %v2306 = vld [vmem:[#allocation3 + $0x4b8] sm:$0xff]
    %v2307 = vld [vmem:[#allocation3 + $0x4c0] sm:$0xff]
    %v2308 = vld [vmem:[#allocation3 + $0x4c8] sm:$0xff]
    %v2309 = vld [vmem:[#allocation3 + $0x4d0] sm:$0xff]
    %v2310 = vld [vmem:[#allocation3 + $0x4d8] sm:$0xff]
    %v2311 = vld [vmem:[#allocation3 + $0x4e0] sm:$0xff]
    %v2312 = vld [vmem:[#allocation3 + $0x4e8] sm:$0xff]
    %v2313 = vld [vmem:[#allocation3 + $0x4f0] sm:$0xff]
    %v2314 = vld [vmem:[#allocation3 + $0x4f8] sm:$0xff]
    %v2315 = vld [vmem:[#allocation3 + $0x500] sm:$0xff]
    %v2316 = vld [vmem:[#allocation3 + $0x508] sm:$0xff]
    %v2317 = vld [vmem:[#allocation3 + $0x510] sm:$0xff]
    %v2318 = vld [vmem:[#allocation3 + $0x518] sm:$0xff]
    %v2319 = vld [vmem:[#allocation3 + $0x520] sm:$0xff]
    %v2320 = vld [vmem:[#allocation3 + $0x528] sm:$0xff]
    %v2321 = vld [vmem:[#allocation3 + $0x530] sm:$0xff]
    %v2322 = vld [vmem:[#allocation3 + $0x538] sm:$0xff]
    %v2323 = vld [vmem:[#allocation3 + $0x540] sm:$0xff]
    %v2324 = vld [vmem:[#allocation3 + $0x548] sm:$0xff]
    %v2325 = vld [vmem:[#allocation3 + $0x550] sm:$0xff]
    %v2326 = vld [vmem:[#allocation3 + $0x558] sm:$0xff]
    %v2327 = vld [vmem:[#allocation3 + $0x560] sm:$0xff]
    %v2328 = vld [vmem:[#allocation3 + $0x568] sm:$0xff]
    %v2329 = vld [vmem:[#allocation3 + $0x570] sm:$0xff]
    %v2330 = vld [vmem:[#allocation3 + $0x578] sm:$0xff]
    %v2331 = vld [vmem:[#allocation3 + $0x580] sm:$0xff]
    %v2332 = vld [vmem:[#allocation3 + $0x588] sm:$0xff]
    %v2333 = vld [vmem:[#allocation3 + $0x590] sm:$0xff]
    %v2334 = vld [vmem:[#allocation3 + $0x598] sm:$0xff]
    %v2335 = vld [vmem:[#allocation3 + $0x5a0] sm:$0xff]
    %v2336 = vld [vmem:[#allocation3 + $0x5a8] sm:$0xff]
    %v2337 = vld [vmem:[#allocation3 + $0x5b0] sm:$0xff]
    %v2338 = vld [vmem:[#allocation3 + $0x5b8] sm:$0xff]
    %v2339 = vld [vmem:[#allocation3 + $0x5c0] sm:$0xff]
    %v2340 = vld [vmem:[#allocation3 + $0x5c8] sm:$0xff]
    %v2341 = vld [vmem:[#allocation3 + $0x5d0] sm:$0xff]
    %v2342 = vld [vmem:[#allocation3 + $0x5d8] sm:$0xff]
    %v2343 = vld [vmem:[#allocation3 + $0x5e0] sm:$0xff]
    %v2344 = vld [vmem:[#allocation3 + $0x5e8] sm:$0xff]
    %v2345 = vld [vmem:[#allocation3 + $0x5f0] sm:$0xff]
    %v2346 = vld [vmem:[#allocation3 + $0x5f8] sm:$0xff]
    %v2347 = vld [vmem:[#allocation3 + $0x600] sm:$0xff]
    %v2348 = vld [vmem:[#allocation3 + $0x608] sm:$0xff]
    %v2349 = vld [vmem:[#allocation3 + $0x610] sm:$0xff]
    %v2350 = vld [vmem:[#allocation3 + $0x618] sm:$0xff]
    %v2351 = vld [vmem:[#allocation3 + $0x620] sm:$0xff]
    %v2352 = vld [vmem:[#allocation3 + $0x628] sm:$0xff]
    %v2353 = vld [vmem:[#allocation3 + $0x630] sm:$0xff]
    %v2354 = vld [vmem:[#allocation3 + $0x638] sm:$0xff]
    %v2355 = vld [vmem:[#allocation3 + $0x640] sm:$0xff]
    %v2356 = vld [vmem:[#allocation3 + $0x648] sm:$0xff]
    %v2357 = vld [vmem:[#allocation3 + $0x650] sm:$0xff]
    %v2358 = vld [vmem:[#allocation3 + $0x658] sm:$0xff]
    %v2359 = vld [vmem:[#allocation3 + $0x660] sm:$0xff]
    %v2360 = vld [vmem:[#allocation3 + $0x668] sm:$0xff]
    %v2361 = vld [vmem:[#allocation3 + $0x670] sm:$0xff]
    %v2362 = vld [vmem:[#allocation3 + $0x678] sm:$0xff]
    %v2363 = vld [vmem:[#allocation3 + $0x680] sm:$0xff]
    %v2364 = vld [vmem:[#allocation3 + $0x688] sm:$0xff]
    %v2365 = vld [vmem:[#allocation3 + $0x690] sm:$0xff]
    %v2366 = vld [vmem:[#allocation3 + $0x698] sm:$0xff]
    %v2367 = vld [vmem:[#allocation3 + $0x6a0] sm:$0xff]
    %v2368 = vld [vmem:[#allocation3 + $0x6a8] sm:$0xff]
    %v2369 = vld [vmem:[#allocation3 + $0x6b0] sm:$0xff]
    %v2370 = vld [vmem:[#allocation3 + $0x6b8] sm:$0xff]
    %v2371 = vld [vmem:[#allocation3 + $0x6c0] sm:$0xff]
    %v2372 = vld [vmem:[#allocation3 + $0x6c8] sm:$0xff]
    %v2373 = vld [vmem:[#allocation3 + $0x6d0] sm:$0xff]
    %v2374 = vld [vmem:[#allocation3 + $0x6d8] sm:$0xff]
    %v2375 = vld [vmem:[#allocation3 + $0x6e0] sm:$0xff]
    %v2376 = vld [vmem:[#allocation3 + $0x6e8] sm:$0xff]
    %v2377 = vld [vmem:[#allocation3 + $0x6f0] sm:$0xff]
    %v2378 = vld [vmem:[#allocation3 + $0x6f8] sm:$0xff]
    %v2379 = vld [vmem:[#allocation3 + $0x700] sm:$0xff]
    %v2380 = vld [vmem:[#allocation3 + $0x708] sm:$0xff]
    %v2381 = vld [vmem:[#allocation3 + $0x710] sm:$0xff]
    %v2382 = vld [vmem:[#allocation3 + $0x718] sm:$0xff]
    %v2383 = vld [vmem:[#allocation3 + $0x720] sm:$0xff]
    %v2384 = vld [vmem:[#allocation3 + $0x728] sm:$0xff]
    %v2385 = vld [vmem:[#allocation3 + $0x730] sm:$0xff]
    %v2386 = vld [vmem:[#allocation3 + $0x738] sm:$0xff]
    %v2387 = vld [vmem:[#allocation3 + $0x740] sm:$0xff]
    %v2388 = vld [vmem:[#allocation3 + $0x748] sm:$0xff]
    %v2389 = vld [vmem:[#allocation3 + $0x750] sm:$0xff]
    %v2390 = vld [vmem:[#allocation3 + $0x758] sm:$0xff]
    %v2391 = vld [vmem:[#allocation3 + $0x760] sm:$0xff]
    %v2392 = vld [vmem:[#allocation3 + $0x768] sm:$0xff]
    %v2393 = vld [vmem:[#allocation3 + $0x770] sm:$0xff]
    %v2394 = vld [vmem:[#allocation3 + $0x778] sm:$0xff]
    %v2395 = vld [vmem:[#allocation3 + $0x780] sm:$0xff]
    %v2396 = vld [vmem:[#allocation3 + $0x788] sm:$0xff]
    %v2397 = vld [vmem:[#allocation3 + $0x790] sm:$0xff]
    %v2398 = vld [vmem:[#allocation3 + $0x798] sm:$0xff]
    %v2399 = vld [vmem:[#allocation3 + $0x7a0] sm:$0xff]
    %v2400 = vld [vmem:[#allocation3 + $0x7a8] sm:$0xff]
    %v2401 = vld [vmem:[#allocation3 + $0x7b0] sm:$0xff]
    %v2402 = vld [vmem:[#allocation3 + $0x7b8] sm:$0xff]
    %v2403 = vld [vmem:[#allocation3 + $0x7c0] sm:$0xff]
    %v2404 = vld [vmem:[#allocation3 + $0x7c8] sm:$0xff]
    %v2405 = vld [vmem:[#allocation3 + $0x7d0] sm:$0xff]
    %v2406 = vld [vmem:[#allocation3 + $0x7d8] sm:$0xff]
    %v2407 = vld [vmem:[#allocation3 + $0x7e0] sm:$0xff]
    %v2408 = vld [vmem:[#allocation3 + $0x7e8] sm:$0xff]
    %v2409 = vld [vmem:[#allocation3 + $0x7f0] sm:$0xff]
    %v2410 = vld [vmem:[#allocation3 + $0x7f8] sm:$0xff]
    %v2411 = vld [vmem:[#allocation3 + $0x800] sm:$0xff]
    %v2412 = vld [vmem:[#allocation3 + $0x808] sm:$0xff]
    %v2413 = vld [vmem:[#allocation3 + $0x810] sm:$0xff]
    %v2414 = vld [vmem:[#allocation3 + $0x818] sm:$0xff]
    %v2415 = vld [vmem:[#allocation3 + $0x820] sm:$0xff]
    %v2416 = vld [vmem:[#allocation3 + $0x828] sm:$0xff]
    %v2417 = vld [vmem:[#allocation3 + $0x830] sm:$0xff]
    %v2418 = vld [vmem:[#allocation3 + $0x838] sm:$0xff]
    %v2419 = vld [vmem:[#allocation3 + $0x840] sm:$0xff]
    %v2420 = vld [vmem:[#allocation3 + $0x848] sm:$0xff]
    %v2421 = vld [vmem:[#allocation3 + $0x850] sm:$0xff]
    %v2422 = vld [vmem:[#allocation3 + $0x858] sm:$0xff]
    %v2423 = vld [vmem:[#allocation3 + $0x860] sm:$0xff]
    %v2424 = vld [vmem:[#allocation3 + $0x868] sm:$0xff]
    %v2425 = vld [vmem:[#allocation3 + $0x870] sm:$0xff]
    %v2426 = vld [vmem:[#allocation3 + $0x878] sm:$0xff]
    %v2427 = vld [vmem:[#allocation3 + $0x880] sm:$0xff]
    %v2428 = vld [vmem:[#allocation3 + $0x888] sm:$0xff]
    %v2429 = vld [vmem:[#allocation3 + $0x890] sm:$0xff]
    %v2430 = vld [vmem:[#allocation3 + $0x898] sm:$0xff]
    %v2431 = vld [vmem:[#allocation3 + $0x8a0] sm:$0xff]
    %v2432 = vld [vmem:[#allocation3 + $0x8a8] sm:$0xff]
    %v2433 = vld [vmem:[#allocation3 + $0x8b0] sm:$0xff]
    %v2434 = vld [vmem:[#allocation3 + $0x8b8] sm:$0xff]
    %v2435 = vld [vmem:[#allocation3 + $0x8c0] sm:$0xff]
    %v2436 = vld [vmem:[#allocation3 + $0x8c8] sm:$0xff]
    %v2437 = vld [vmem:[#allocation3 + $0x8d0] sm:$0xff]
    %v2438 = vld [vmem:[#allocation3 + $0x8d8] sm:$0xff]
    %v2439 = vld [vmem:[#allocation3 + $0x8e0] sm:$0xff]
    %v2440 = vld [vmem:[#allocation3 + $0x8e8] sm:$0xff]
    %v2441 = vld [vmem:[#allocation3 + $0x8f0] sm:$0xff]
    %v2442 = vld [vmem:[#allocation3 + $0x8f8] sm:$0xff]
    %v2443 = vld [vmem:[#allocation3 + $0x900] sm:$0xff]
    %v2444 = vld [vmem:[#allocation3 + $0x908] sm:$0xff]
    %v2445 = vld [vmem:[#allocation3 + $0x910] sm:$0xff]
    %v2446 = vld [vmem:[#allocation3 + $0x918] sm:$0xff]
    %v2447 = vld [vmem:[#allocation3 + $0x920] sm:$0xff]
    %v2448 = vld [vmem:[#allocation3 + $0x928] sm:$0xff]
    %v2449 = vld [vmem:[#allocation3 + $0x930] sm:$0xff]
    %v2450 = vld [vmem:[#allocation3 + $0x938] sm:$0xff]
    %v2451 = vld [vmem:[#allocation3 + $0x940] sm:$0xff]
    %v2452 = vld [vmem:[#allocation3 + $0x948] sm:$0xff]
    %v2453 = vld [vmem:[#allocation3 + $0x950] sm:$0xff]
    %v2454 = vld [vmem:[#allocation3 + $0x958] sm:$0xff]
    %v2455 = vld [vmem:[#allocation3 + $0x960] sm:$0xff]
    %v2456 = vld [vmem:[#allocation3 + $0x968] sm:$0xff]
    %v2457 = vld [vmem:[#allocation3 + $0x970] sm:$0xff]
    %v2458 = vld [vmem:[#allocation3 + $0x978] sm:$0xff]
    %v2459 = vld [vmem:[#allocation3 + $0x980] sm:$0xff]
    %v2460 = vld [vmem:[#allocation3 + $0x988] sm:$0xff]
    %v2461 = vld [vmem:[#allocation3 + $0x990] sm:$0xff]
    %v2462 = vld [vmem:[#allocation3 + $0x998] sm:$0xff]
    %v2463 = vld [vmem:[#allocation3 + $0x9a0] sm:$0xff]
    %v2464 = vld [vmem:[#allocation3 + $0x9a8] sm:$0xff]
    %v2465 = vld [vmem:[#allocation3 + $0x9b0] sm:$0xff]
    %v2466 = vld [vmem:[#allocation3 + $0x9b8] sm:$0xff]
    %v2467 = vld [vmem:[#allocation3 + $0x9c0] sm:$0xff]
    %v2468 = vld [vmem:[#allocation3 + $0x9c8] sm:$0xff]
    %v2469 = vld [vmem:[#allocation3 + $0x9d0] sm:$0xff]
    %v2470 = vld [vmem:[#allocation3 + $0x9d8] sm:$0xff]
    %v2471 = vld [vmem:[#allocation3 + $0x9e0] sm:$0xff]
    %v2472 = vld [vmem:[#allocation3 + $0x9e8] sm:$0xff]
    %v2473 = vld [vmem:[#allocation3 + $0x9f0] sm:$0xff]
    %v2474 = vld [vmem:[#allocation3 + $0x9f8] sm:$0xff]
    %v2475 = vld [vmem:[#allocation3 + $0xa00] sm:$0xff]
    %v2476 = vld [vmem:[#allocation3 + $0xa08] sm:$0xff]
    %v2477 = vld [vmem:[#allocation3 + $0xa10] sm:$0xff]
    %v2478 = vld [vmem:[#allocation3 + $0xa18] sm:$0xff]
    %v2479 = vld [vmem:[#allocation3 + $0xa20] sm:$0xff]
    %v2480 = vld [vmem:[#allocation3 + $0xa28] sm:$0xff]
    %v2481 = vld [vmem:[#allocation3 + $0xa30] sm:$0xff]
    %v2482 = vld [vmem:[#allocation3 + $0xa38] sm:$0xff]
    %v2483 = vld [vmem:[#allocation3 + $0xa40] sm:$0xff]
    %v2484 = vld [vmem:[#allocation3 + $0xa48] sm:$0xff]
    %v2485 = vld [vmem:[#allocation3 + $0xa50] sm:$0xff]
    %v2486 = vld [vmem:[#allocation3 + $0xa58] sm:$0xff]
    %v2487 = vld [vmem:[#allocation3 + $0xa60] sm:$0xff]
    %v2488 = vld [vmem:[#allocation3 + $0xa68] sm:$0xff]
    %v2489 = vld [vmem:[#allocation3 + $0xa70] sm:$0xff]
    %v2490 = vld [vmem:[#allocation3 + $0xa78] sm:$0xff]
    %v2491 = vld [vmem:[#allocation3 + $0xa80] sm:$0xff]
    %v2492 = vld [vmem:[#allocation3 + $0xa88] sm:$0xff]
    %v2493 = vld [vmem:[#allocation3 + $0xa90] sm:$0xff]
    %v2494 = vld [vmem:[#allocation3 + $0xa98] sm:$0xff]
    %v2495 = vld [vmem:[#allocation3 + $0xaa0] sm:$0xff]
    %v2496 = vld [vmem:[#allocation3 + $0xaa8] sm:$0xff]
    %v2497 = vld [vmem:[#allocation3 + $0xab0] sm:$0xff]
    %v2498 = vld [vmem:[#allocation3 + $0xab8] sm:$0xff]
    %v2499 = vld [vmem:[#allocation3 + $0xac0] sm:$0xff]
    %v2500 = vld [vmem:[#allocation3 + $0xac8] sm:$0xff]
    %v2501 = vld [vmem:[#allocation3 + $0xad0] sm:$0xff]
    %v2502 = vld [vmem:[#allocation3 + $0xad8] sm:$0xff]
    %v2503 = vld [vmem:[#allocation3 + $0xae0] sm:$0xff]
    %v2504 = vld [vmem:[#allocation3 + $0xae8] sm:$0xff]
    %v2505 = vld [vmem:[#allocation3 + $0xaf0] sm:$0xff]
    %v2506 = vld [vmem:[#allocation3 + $0xaf8] sm:$0xff]
    %v2507 = vld [vmem:[#allocation3 + $0xb00] sm:$0xff]
    %v2508 = vld [vmem:[#allocation3 + $0xb08] sm:$0xff]
    %v2509 = vld [vmem:[#allocation3 + $0xb10] sm:$0xff]
    %v2510 = vld [vmem:[#allocation3 + $0xb18] sm:$0xff]
    %v2511 = vld [vmem:[#allocation3 + $0xb20] sm:$0xff]
    %v2512 = vld [vmem:[#allocation3 + $0xb28] sm:$0xff]
    %v2513 = vld [vmem:[#allocation3 + $0xb30] sm:$0xff]
    %v2514 = vld [vmem:[#allocation3 + $0xb38] sm:$0xff]
    %v2515 = vld [vmem:[#allocation3 + $0xb40] sm:$0xff]
    %v2516 = vld [vmem:[#allocation3 + $0xb48] sm:$0xff]
    %v2517 = vld [vmem:[#allocation3 + $0xb50] sm:$0xff]
    %v2518 = vld [vmem:[#allocation3 + $0xb58] sm:$0xff]
    %v2519 = vld [vmem:[#allocation3 + $0xb60] sm:$0xff]
    %v2520 = vld [vmem:[#allocation3 + $0xb68] sm:$0xff]
    %v2521 = vld [vmem:[#allocation3 + $0xb70] sm:$0xff]
    %v2522 = vld [vmem:[#allocation3 + $0xb78] sm:$0xff]
    %v2523 = vld [vmem:[#allocation3 + $0xb80] sm:$0xff]
    %v2524 = vld [vmem:[#allocation3 + $0xb88] sm:$0xff]
    %v2525 = vld [vmem:[#allocation3 + $0xb90] sm:$0xff]
    %v2526 = vld [vmem:[#allocation3 + $0xb98] sm:$0xff]
    %v2527 = vld [vmem:[#allocation3 + $0xba0] sm:$0xff]
    %v2528 = vld [vmem:[#allocation3 + $0xba8] sm:$0xff]
    %v2529 = vld [vmem:[#allocation3 + $0xbb0] sm:$0xff]
    %v2530 = vld [vmem:[#allocation3 + $0xbb8] sm:$0xff]
    %v2531 = vld [vmem:[#allocation3 + $0xbc0] sm:$0xff]
    %v2532 = vld [vmem:[#allocation3 + $0xbc8] sm:$0xff]
    %v2533 = vld [vmem:[#allocation3 + $0xbd0] sm:$0xff]
    %v2534 = vld [vmem:[#allocation3 + $0xbd8] sm:$0xff]
    %v2535 = vld [vmem:[#allocation3 + $0xbe0] sm:$0xff]
    %v2536 = vld [vmem:[#allocation3 + $0xbe8] sm:$0xff]
    %v2537 = vld [vmem:[#allocation3 + $0xbf0] sm:$0xff]
    %v2538 = vld [vmem:[#allocation3 + $0xbf8] sm:$0xff]
    %v2539 = vld [vmem:[#allocation3 + $0xc00] sm:$0xff]
    %v2540 = vld [vmem:[#allocation3 + $0xc08] sm:$0xff]
    %v2541 = vld [vmem:[#allocation3 + $0xc10] sm:$0xff]
    %v2542 = vld [vmem:[#allocation3 + $0xc18] sm:$0xff]
    %v2543 = vld [vmem:[#allocation3 + $0xc20] sm:$0xff]
    %v2544 = vld [vmem:[#allocation3 + $0xc28] sm:$0xff]
    %v2545 = vld [vmem:[#allocation3 + $0xc30] sm:$0xff]
    %v2546 = vld [vmem:[#allocation3 + $0xc38] sm:$0xff]
    %v2547 = vld [vmem:[#allocation3 + $0xc40] sm:$0xff]
    %v2548 = vld [vmem:[#allocation3 + $0xc48] sm:$0xff]
    %v2549 = vld [vmem:[#allocation3 + $0xc50] sm:$0xff]
    %v2550 = vld [vmem:[#allocation3 + $0xc58] sm:$0xff]
    %v2551 = vld [vmem:[#allocation3 + $0xc60] sm:$0xff]
    %v2552 = vld [vmem:[#allocation3 + $0xc68] sm:$0xff]
    %v2553 = vld [vmem:[#allocation3 + $0xc70] sm:$0xff]
    %v2554 = vld [vmem:[#allocation3 + $0xc78] sm:$0xff]
    %v2555 = vld [vmem:[#allocation3 + $0xc80] sm:$0xff]
    %v2556 = vld [vmem:[#allocation3 + $0xc88] sm:$0xff]
    %v2557 = vld [vmem:[#allocation3 + $0xc90] sm:$0xff]
    %v2558 = vld [vmem:[#allocation3 + $0xc98] sm:$0xff]
    %v2559 = vld [vmem:[#allocation3 + $0xca0] sm:$0xff]
    %v2560 = vld [vmem:[#allocation3 + $0xca8] sm:$0xff]
    %v2561 = vld [vmem:[#allocation3 + $0xcb0] sm:$0xff]
    %v2562 = vld [vmem:[#allocation3 + $0xcb8] sm:$0xff]
    %v2563 = vld [vmem:[#allocation3 + $0xcc0] sm:$0xff]
    %v2564 = vld [vmem:[#allocation3 + $0xcc8] sm:$0xff]
    %v2565 = vld [vmem:[#allocation3 + $0xcd0] sm:$0xff]
    %v2566 = vld [vmem:[#allocation3 + $0xcd8] sm:$0xff]
    %v2567 = vld [vmem:[#allocation3 + $0xce0] sm:$0xff]
    %v2568 = vld [vmem:[#allocation3 + $0xce8] sm:$0xff]
    %v2569 = vld [vmem:[#allocation3 + $0xcf0] sm:$0xff]
    %v2570 = vld [vmem:[#allocation3 + $0xcf8] sm:$0xff]
    %v2571 = vld [vmem:[#allocation3 + $0xd00] sm:$0xff]
    %v2572 = vld [vmem:[#allocation3 + $0xd08] sm:$0xff]
    %v2573 = vld [vmem:[#allocation3 + $0xd10] sm:$0xff]
    %v2574 = vld [vmem:[#allocation3 + $0xd18] sm:$0xff]
    %v2575 = vld [vmem:[#allocation3 + $0xd20] sm:$0xff]
    %v2576 = vld [vmem:[#allocation3 + $0xd28] sm:$0xff]
    %v2577 = vld [vmem:[#allocation3 + $0xd30] sm:$0xff]
    %v2578 = vld [vmem:[#allocation3 + $0xd38] sm:$0xff]
    %v2579 = vld [vmem:[#allocation3 + $0xd40] sm:$0xff]
    %v2580 = vld [vmem:[#allocation3 + $0xd48] sm:$0xff]
    %v2581 = vld [vmem:[#allocation3 + $0xd50] sm:$0xff]
    %v2582 = vld [vmem:[#allocation3 + $0xd58] sm:$0xff]
    %v2583 = vld [vmem:[#allocation3 + $0xd60] sm:$0xff]
    %v2584 = vld [vmem:[#allocation3 + $0xd68] sm:$0xff]
    %v2585 = vld [vmem:[#allocation3 + $0xd70] sm:$0xff]
    %v2586 = vld [vmem:[#allocation3 + $0xd78] sm:$0xff]
    %v2587 = vld [vmem:[#allocation3 + $0xd80] sm:$0xff]
    %v2588 = vld [vmem:[#allocation3 + $0xd88] sm:$0xff]
    %v2589 = vld [vmem:[#allocation3 + $0xd90] sm:$0xff]
    %v2590 = vld [vmem:[#allocation3 + $0xd98] sm:$0xff]
    %v2591 = vld [vmem:[#allocation3 + $0xda0] sm:$0xff]
    %v2592 = vld [vmem:[#allocation3 + $0xda8] sm:$0xff]
    %v2593 = vld [vmem:[#allocation3 + $0xdb0] sm:$0xff]
    %v2594 = vld [vmem:[#allocation3 + $0xdb8] sm:$0xff]
    %v2595 = vld [vmem:[#allocation3 + $0xdc0] sm:$0xff]
    %v2596 = vld [vmem:[#allocation3 + $0xdc8] sm:$0xff]
    %v2597 = vld [vmem:[#allocation3 + $0xdd0] sm:$0xff]
    %v2598 = vld [vmem:[#allocation3 + $0xdd8] sm:$0xff]
    %v2599 = vld [vmem:[#allocation3 + $0xde0] sm:$0xff]
    %v2600 = vld [vmem:[#allocation3 + $0xde8] sm:$0xff]
    %v2601 = vld [vmem:[#allocation3 + $0xdf0] sm:$0xff]
    %v2602 = vld [vmem:[#allocation3 + $0xdf8] sm:$0xff]
    %v2603 = vpack.c.bf16 %v2143, %v2143
    %v2604 = vpack.c.bf16 %v2144, %v2144
    %v2605 = vpack.c.bf16 %v2145, %v2145
    %v2606 = vpack.c.bf16 %v2146, %v2146
    %v2607 = vpack.c.bf16 %v2147, %v2147
    %v2608 = vpack.c.bf16 %v2148, %v2148
    %v2609 = vpack.c.bf16 %v2149, %v2149
    %v2610 = vpack.c.bf16 %v2150, %v2150
    %v2611 = vld [vmem:[#allocation16 + $0x2b] sm:$0xff]
    %v2613 = vlaneseq
    %v2614 = vshrl.u32 %v2613, 7
    %v2615 = vsub.s32 0, %v2614
    %v2616 = vrot.slane %v2611, %v2615
    %v2617 = vlaneseq
    %v2618 = vshrl.u32 %v2617, 7
    %v2619 = vsub.s32 1, %v2618
    %v2620 = vrot.slane %v2611, %v2619
    %v2621 = vlaneseq
    %v2622 = vshrl.u32 %v2621, 7
    %v2623 = vsub.s32 2, %v2622
    %v2624 = vrot.slane %v2611, %v2623
    %v2625 = vlaneseq
    %v2626 = vshrl.u32 %v2625, 7
    %v2627 = vsub.s32 3, %v2626
    %v2628 = vrot.slane %v2611, %v2627
    %v2629 = vlaneseq
    %v2630 = vshrl.u32 %v2629, 7
    %v2631 = vsub.s32 4, %v2630
    %v2632 = vrot.slane %v2611, %v2631
    %v2633 = vlaneseq
    %v2634 = vshrl.u32 %v2633, 7
    %v2635 = vsub.s32 5, %v2634
    %v2636 = vrot.slane %v2611, %v2635
    %v2637 = vlaneseq
    %v2638 = vshrl.u32 %v2637, 7
    %v2639 = vsub.s32 6, %v2638
    %v2640 = vrot.slane %v2611, %v2639
    %2648 = vmatprep.subr.bf16.mxu0 %v2156
    %2649 = vmatpush1.bf16.msra.mxu0 %v2155
    %2650 = vmatprep.subr.bf16.mxu0 %v2163
    %2651 = vmatpush1.bf16.msra.mxu0 %v2162
    %2652 = vmatprep.subr.bf16.mxu0 %v2170
    %2653 = vmatpush1.bf16.msra.mxu0 %v2169
    %2654 = vmatprep.subr.bf16.mxu0 %v2177
    %2655 = vmatpush1.bf16.msra.mxu0 %v2176
    %2656 = vmatprep.subr.bf16.mxu0 %v2184
    %2657 = vmatpush1.bf16.msra.mxu0 %v2183
    %2658 = vmatprep.subr.bf16.mxu0 %v2191
    %2659 = vmatpush1.bf16.msra.mxu0 %v2190
    %2660 = vmatprep.subr.bf16.mxu0 %v2198
    %2661 = vmatpush1.bf16.msra.mxu0 %v2197
    %2662 = vmatprep.subr.bf16.mxu0 %v2205
    %2663 = vmatpush1.bf16.msra.mxu0 %v2204
    %2664 = vmatprep.subr.bf16.mxu0 %v2212
    %2665 = vmatpush1.bf16.msra.mxu0 %v2211
    %2666 = vmatprep.subr.bf16.mxu0 %v2219
    %2667 = vmatpush1.bf16.msra.mxu0 %v2218
    %2668 = vmatprep.subr.bf16.mxu0 %v2226
    %2669 = vmatpush1.bf16.msra.mxu0 %v2225
    %2670 = vmatprep.subr.bf16.mxu0 %v2233
    %2671 = vmatpush1.bf16.msra.mxu0 %v2232
    %2672 = vmatprep.subr.bf16.mxu0 %v2240
    %2673 = vmatpush1.bf16.msra.mxu0 %v2239
    %2674 = vmatprep.subr.bf16.mxu0 %v2247
    %2675 = vmatpush1.bf16.msra.mxu0 %v2246
    %2676 = vmatprep.subr.bf16.mxu0 %v2254
    %2677 = vmatpush1.bf16.msra.mxu0 %v2253
    %2678 = vmatprep.subr.bf16.mxu0 %v2261
    %2679 = vmatpush1.bf16.msra.mxu0 %v2260
    %2680 = vmatprep.mubr.bf16.mxu0 %v2604
    %2681 = vmatmul.mubr.bf16.gmra.mrb[0].mxu0 %v2603
    %v2682 = vpop.f32.mrb[0].mxu0
    %v2683 = vadd.f32 %v2616, %v2682
    %v2684 = vpop.f32.mrb[0].mxu0
    %v2685 = vadd.f32 %v2620, %v2684
    %v2686 = vpop.f32.mrb[0].mxu0
    %v2687 = vpop.f32.mrb[0].mxu0
    %2688 = vdwg.mxu0
    %2689 = vmatprep.subr.bf16.mxu0 %v2268
    %2690 = vmatpush1.bf16.msra.mxu0 %v2267
    %2691 = vmatprep.subr.bf16.mxu0 %v2275
    %2692 = vmatpush1.bf16.msra.mxu0 %v2274
    %2693 = vmatprep.subr.bf16.mxu0 %v2282
    %2694 = vmatpush1.bf16.msra.mxu0 %v2281
    %2695 = vmatprep.subr.bf16.mxu0 %v2289
    %2696 = vmatpush1.bf16.msra.mxu0 %v2288
    %2697 = vmatprep.subr.bf16.mxu0 %v2296
    %2698 = vmatpush1.bf16.msra.mxu0 %v2295
    %2699 = vmatprep.subr.bf16.mxu0 %v2303
    %2700 = vmatpush1.bf16.msra.mxu0 %v2302
    %2701 = vmatprep.subr.bf16.mxu0 %v2310
    %2702 = vmatpush1.bf16.msra.mxu0 %v2309
    %2703 = vmatprep.subr.bf16.mxu0 %v2317
    %2704 = vmatpush1.bf16.msra.mxu0 %v2316
    %2705 = vmatprep.subr.bf16.mxu0 %v2324
    %2706 = vmatpush1.bf16.msra.mxu0 %v2323
    %2707 = vmatprep.subr.bf16.mxu0 %v2331
    %2708 = vmatpush1.bf16.msra.mxu0 %v2330
    %2709 = vmatprep.subr.bf16.mxu0 %v2338
    %2710 = vmatpush1.bf16.msra.mxu0 %v2337
    %2711 = vmatprep.subr.bf16.mxu0 %v2345
    %2712 = vmatpush1.bf16.msra.mxu0 %v2344
    %2713 = vmatprep.subr.bf16.mxu0 %v2352
    %2714 = vmatpush1.bf16.msra.mxu0 %v2351
    %2715 = vmatprep.subr.bf16.mxu0 %v2359
    %2716 = vmatpush1.bf16.msra.mxu0 %v2358
    %2717 = vmatprep.subr.bf16.mxu0 %v2366
    %2718 = vmatpush1.bf16.msra.mxu0 %v2365
    %2719 = vmatprep.subr.bf16.mxu0 %v2373
    %2720 = vmatpush1.bf16.msra.mxu0 %v2372
    %2721 = vmatprep.mubr.bf16.mxu0 %v2606
    %2722 = vmatmul.mubr.bf16.gmra.mrb[0].mxu0 %v2605
    %v2723 = vpop.f32.mrb[0].mxu0
    %v2724 = vadd.f32 %v2683, %v2723
    %v2725 = vpop.f32.mrb[0].mxu0
    %v2726 = vadd.f32 %v2685, %v2725
    %v2727 = vpop.f32.mrb[0].mxu0
    %v2728 = vpop.f32.mrb[0].mxu0
    %2729 = vdwg.mxu0
    %2730 = vmatprep.subr.bf16.mxu0 %v2380
    %2731 = vmatpush1.bf16.msra.mxu0 %v2379
    %2732 = vmatprep.subr.bf16.mxu0 %v2387
    %2733 = vmatpush1.bf16.msra.mxu0 %v2386
    %2734 = vmatprep.subr.bf16.mxu0 %v2394
    %2735 = vmatpush1.bf16.msra.mxu0 %v2393
    %2736 = vmatprep.subr.bf16.mxu0 %v2401
    %2737 = vmatpush1.bf16.msra.mxu0 %v2400
    %2738 = vmatprep.subr.bf16.mxu0 %v2408
    %2739 = vmatpush1.bf16.msra.mxu0 %v2407
    %2740 = vmatprep.subr.bf16.mxu0 %v2415
    %2741 = vmatpush1.bf16.msra.mxu0 %v2414
    %2742 = vmatprep.subr.bf16.mxu0 %v2422
    %2743 = vmatpush1.bf16.msra.mxu0 %v2421
    %2744 = vmatprep.subr.bf16.mxu0 %v2429
    %2745 = vmatpush1.bf16.msra.mxu0 %v2428
    %2746 = vmatprep.subr.bf16.mxu0 %v2436
    %2747 = vmatpush1.bf16.msra.mxu0 %v2435
    %2748 = vmatprep.subr.bf16.mxu0 %v2443
    %2749 = vmatpush1.bf16.msra.mxu0 %v2442
    %2750 = vmatprep.subr.bf16.mxu0 %v2450
    %2751 = vmatpush1.bf16.msra.mxu0 %v2449
    %2752 = vmatprep.subr.bf16.mxu0 %v2457
    %2753 = vmatpush1.bf16.msra.mxu0 %v2456
    %2754 = vmatprep.subr.bf16.mxu0 %v2464
    %2755 = vmatpush1.bf16.msra.mxu0 %v2463
    %2756 = vmatprep.subr.bf16.mxu0 %v2471
    %2757 = vmatpush1.bf16.msra.mxu0 %v2470
    %2758 = vmatprep.subr.bf16.mxu0 %v2478
    %2759 = vmatpush1.bf16.msra.mxu0 %v2477
    %2760 = vmatprep.subr.bf16.mxu0 %v2485
    %2761 = vmatpush1.bf16.msra.mxu0 %v2484
    %2762 = vmatprep.mubr.bf16.mxu0 %v2608
    %2763 = vmatmul.mubr.bf16.gmra.mrb[0].mxu0 %v2607
    %v2764 = vpop.f32.mrb[0].mxu0
    %v2765 = vadd.f32 %v2724, %v2764
    %v2766 = vpop.f32.mrb[0].mxu0
    %v2767 = vadd.f32 %v2726, %v2766
    %v2768 = vpop.f32.mrb[0].mxu0
    %v2769 = vpop.f32.mrb[0].mxu0
    %2770 = vdwg.mxu0
    %2771 = vmatprep.subr.bf16.mxu0 %v2492
    %2772 = vmatpush1.bf16.msra.mxu0 %v2491
    %2773 = vmatprep.subr.bf16.mxu0 %v2499
    %2774 = vmatpush1.bf16.msra.mxu0 %v2498
    %2775 = vmatprep.subr.bf16.mxu0 %v2506
    %2776 = vmatpush1.bf16.msra.mxu0 %v2505
    %2777 = vmatprep.subr.bf16.mxu0 %v2513
    %2778 = vmatpush1.bf16.msra.mxu0 %v2512
    %2779 = vmatprep.subr.bf16.mxu0 %v2520
    %2780 = vmatpush1.bf16.msra.mxu0 %v2519
    %2781 = vmatprep.subr.bf16.mxu0 %v2527
    %2782 = vmatpush1.bf16.msra.mxu0 %v2526
    %2783 = vmatprep.subr.bf16.mxu0 %v2534
    %2784 = vmatpush1.bf16.msra.mxu0 %v2533
    %2785 = vmatprep.subr.bf16.mxu0 %v2541
    %2786 = vmatpush1.bf16.msra.mxu0 %v2540
    %2787 = vmatprep.subr.bf16.mxu0 %v2548
    %2788 = vmatpush1.bf16.msra.mxu0 %v2547
    %2789 = vmatprep.subr.bf16.mxu0 %v2555
    %2790 = vmatpush1.bf16.msra.mxu0 %v2554
    %2791 = vmatprep.subr.bf16.mxu0 %v2562
    %2792 = vmatpush1.bf16.msra.mxu0 %v2561
    %2793 = vmatprep.subr.bf16.mxu0 %v2569
    %2794 = vmatpush1.bf16.msra.mxu0 %v2568
    %2795 = vmatprep.subr.bf16.mxu0 %v2576
    %2796 = vmatpush1.bf16.msra.mxu0 %v2575
    %2797 = vmatprep.subr.bf16.mxu0 %v2583
    %2798 = vmatpush1.bf16.msra.mxu0 %v2582
    %2799 = vmatprep.subr.bf16.mxu0 %v2590
    %2800 = vmatpush1.bf16.msra.mxu0 %v2589
    %2801 = vmatprep.subr.bf16.mxu0 %v2597
    %2802 = vmatpush1.bf16.msra.mxu0 %v2596
    %2803 = vmatprep.mubr.bf16.mxu0 %v2610
    %2804 = vmatmul.mubr.bf16.gmra.mrb[0].mxu0 %v2609
    %v2805 = vpop.f32.mrb[0].mxu0
    %v2806 = vadd.f32 %v2765, %v2805
    %v2807 = vpop.f32.mrb[0].mxu0
    %v2808 = vadd.f32 %v2767, %v2807
    %v2809 = vpop.f32.mrb[0].mxu0
    %v2810 = vpop.f32.mrb[0].mxu0
    %2811 = vdwg.mxu0
    %2812 = vmatprep.subr.bf16.mxu0 %v2158
    %2813 = vmatpush1.bf16.msra.mxu0 %v2157
    %2814 = vmatprep.subr.bf16.mxu0 %v2165
    %2815 = vmatpush1.bf16.msra.mxu0 %v2164
    %2816 = vmatprep.subr.bf16.mxu0 %v2172
    %2817 = vmatpush1.bf16.msra.mxu0 %v2171
    %2818 = vmatprep.subr.bf16.mxu0 %v2179
    %2819 = vmatpush1.bf16.msra.mxu0 %v2178
    %2820 = vmatprep.subr.bf16.mxu0 %v2186
    %2821 = vmatpush1.bf16.msra.mxu0 %v2185
    %2822 = vmatprep.subr.bf16.mxu0 %v2193
    %2823 = vmatpush1.bf16.msra.mxu0 %v2192
    %2824 = vmatprep.subr.bf16.mxu0 %v2200
    %2825 = vmatpush1.bf16.msra.mxu0 %v2199
    %2826 = vmatprep.subr.bf16.mxu0 %v2207
    %2827 = vmatpush1.bf16.msra.mxu0 %v2206
    %2828 = vmatprep.subr.bf16.mxu0 %v2214
    %2829 = vmatpush1.bf16.msra.mxu0 %v2213
    %2830 = vmatprep.subr.bf16.mxu0 %v2221
    %2831 = vmatpush1.bf16.msra.mxu0 %v2220
    %2832 = vmatprep.subr.bf16.mxu0 %v2228
    %2833 = vmatpush1.bf16.msra.mxu0 %v2227
    %2834 = vmatprep.subr.bf16.mxu0 %v2235
    %2835 = vmatpush1.bf16.msra.mxu0 %v2234
    %2836 = vmatprep.subr.bf16.mxu0 %v2242
    %2837 = vmatpush1.bf16.msra.mxu0 %v2241
    %2838 = vmatprep.subr.bf16.mxu0 %v2249
    %2839 = vmatpush1.bf16.msra.mxu0 %v2248
    %2840 = vmatprep.subr.bf16.mxu0 %v2256
    %2841 = vmatpush1.bf16.msra.mxu0 %v2255
    %2842 = vmatprep.subr.bf16.mxu0 %v2263
    %2843 = vmatpush1.bf16.msra.mxu0 %v2262
    %2844 = vmatprep.mubr.bf16.mxu0 %v2604
    %2845 = vmatmul.mubr.bf16.gmra.mrb[0].mxu0 %v2603
    %v2846 = vpop.f32.mrb[0].mxu0
    %v2847 = vadd.f32 %v2624, %v2846
    %v2848 = vpop.f32.mrb[0].mxu0
    %v2849 = vadd.f32 %v2628, %v2848
    %v2850 = vpop.f32.mrb[0].mxu0
    %v2851 = vpop.f32.mrb[0].mxu0
    %2852 = vdwg.mxu0
    %2853 = vmatprep.subr.bf16.mxu0 %v2270
    %2854 = vmatpush1.bf16.msra.mxu0 %v2269
    %2855 = vmatprep.subr.bf16.mxu0 %v2277
    %2856 = vmatpush1.bf16.msra.mxu0 %v2276
    %2857 = vmatprep.subr.bf16.mxu0 %v2284
    %2858 = vmatpush1.bf16.msra.mxu0 %v2283
    %2859 = vmatprep.subr.bf16.mxu0 %v2291
    %2860 = vmatpush1.bf16.msra.mxu0 %v2290
    %2861 = vmatprep.subr.bf16.mxu0 %v2298
    %2862 = vmatpush1.bf16.msra.mxu0 %v2297
    %2863 = vmatprep.subr.bf16.mxu0 %v2305
    %2864 = vmatpush1.bf16.msra.mxu0 %v2304
    %2865 = vmatprep.subr.bf16.mxu0 %v2312
    %2866 = vmatpush1.bf16.msra.mxu0 %v2311
    %2867 = vmatprep.subr.bf16.mxu0 %v2319
    %2868 = vmatpush1.bf16.msra.mxu0 %v2318
    %2869 = vmatprep.subr.bf16.mxu0 %v2326
    %2870 = vmatpush1.bf16.msra.mxu0 %v2325
    %2871 = vmatprep.subr.bf16.mxu0 %v2333
    %2872 = vmatpush1.bf16.msra.mxu0 %v2332
    %2873 = vmatprep.subr.bf16.mxu0 %v2340
    %2874 = vmatpush1.bf16.msra.mxu0 %v2339
    %2875 = vmatprep.subr.bf16.mxu0 %v2347
    %2876 = vmatpush1.bf16.msra.mxu0 %v2346
    %2877 = vmatprep.subr.bf16.mxu0 %v2354
    %2878 = vmatpush1.bf16.msra.mxu0 %v2353
    %2879 = vmatprep.subr.bf16.mxu0 %v2361
    %2880 = vmatpush1.bf16.msra.mxu0 %v2360
    %2881 = vmatprep.subr.bf16.mxu0 %v2368
    %2882 = vmatpush1.bf16.msra.mxu0 %v2367
    %2883 = vmatprep.subr.bf16.mxu0 %v2375
    %2884 = vmatpush1.bf16.msra.mxu0 %v2374
    %2885 = vmatprep.mubr.bf16.mxu0 %v2606
    %2886 = vmatmul.mubr.bf16.gmra.mrb[0].mxu0 %v2605
    %v2887 = vpop.f32.mrb[0].mxu0
    %v2888 = vadd.f32 %v2847, %v2887
    %v2889 = vpop.f32.mrb[0].mxu0
    %v2890 = vadd.f32 %v2849, %v2889
    %v2891 = vpop.f32.mrb[0].mxu0
    %v2892 = vpop.f32.mrb[0].mxu0
    %2893 = vdwg.mxu0
    %2894 = vmatprep.subr.bf16.mxu0 %v2382
    %2895 = vmatpush1.bf16.msra.mxu0 %v2381
    %2896 = vmatprep.subr.bf16.mxu0 %v2389
    %2897 = vmatpush1.bf16.msra.mxu0 %v2388
    %2898 = vmatprep.subr.bf16.mxu0 %v2396
    %2899 = vmatpush1.bf16.msra.mxu0 %v2395
    %2900 = vmatprep.subr.bf16.mxu0 %v2403
    %2901 = vmatpush1.bf16.msra.mxu0 %v2402
    %2902 = vmatprep.subr.bf16.mxu0 %v2410
    %2903 = vmatpush1.bf16.msra.mxu0 %v2409
    %2904 = vmatprep.subr.bf16.mxu0 %v2417
    %2905 = vmatpush1.bf16.msra.mxu0 %v2416
    %2906 = vmatprep.subr.bf16.mxu0 %v2424
    %2907 = vmatpush1.bf16.msra.mxu0 %v2423
    %2908 = vmatprep.subr.bf16.mxu0 %v2431
    %2909 = vmatpush1.bf16.msra.mxu0 %v2430
    %2910 = vmatprep.subr.bf16.mxu0 %v2438
    %2911 = vmatpush1.bf16.msra.mxu0 %v2437
    %2912 = vmatprep.subr.bf16.mxu0 %v2445
    %2913 = vmatpush1.bf16.msra.mxu0 %v2444
    %2914 = vmatprep.subr.bf16.mxu0 %v2452
    %2915 = vmatpush1.bf16.msra.mxu0 %v2451
    %2916 = vmatprep.subr.bf16.mxu0 %v2459
    %2917 = vmatpush1.bf16.msra.mxu0 %v2458
    %2918 = vmatprep.subr.bf16.mxu0 %v2466
    %2919 = vmatpush1.bf16.msra.mxu0 %v2465
    %2920 = vmatprep.subr.bf16.mxu0 %v2473
    %2921 = vmatpush1.bf16.msra.mxu0 %v2472
    %2922 = vmatprep.subr.bf16.mxu0 %v2480
    %2923 = vmatpush1.bf16.msra.mxu0 %v2479
    %2924 = vmatprep.subr.bf16.mxu0 %v2487
    %2925 = vmatpush1.bf16.msra.mxu0 %v2486
    %2926 = vmatprep.mubr.bf16.mxu0 %v2608
    %2927 = vmatmul.mubr.bf16.gmra.mrb[0].mxu0 %v2607
    %v2928 = vpop.f32.mrb[0].mxu0
    %v2929 = vadd.f32 %v2888, %v2928
    %v2930 = vpop.f32.mrb[0].mxu0
    %v2931 = vadd.f32 %v2890, %v2930
    %v2932 = vpop.f32.mrb[0].mxu0
    %v2933 = vpop.f32.mrb[0].mxu0
    %2934 = vdwg.mxu0
    %2935 = vmatprep.subr.bf16.mxu0 %v2494
    %2936 = vmatpush1.bf16.msra.mxu0 %v2493
    %2937 = vmatprep.subr.bf16.mxu0 %v2501
    %2938 = vmatpush1.bf16.msra.mxu0 %v2500
    %2939 = vmatprep.subr.bf16.mxu0 %v2508
    %2940 = vmatpush1.bf16.msra.mxu0 %v2507
    %2941 = vmatprep.subr.bf16.mxu0 %v2515
    %2942 = vmatpush1.bf16.msra.mxu0 %v2514
    %2943 = vmatprep.subr.bf16.mxu0 %v2522
    %2944 = vmatpush1.bf16.msra.mxu0 %v2521
    %2945 = vmatprep.subr.bf16.mxu0 %v2529
    %2946 = vmatpush1.bf16.msra.mxu0 %v2528
    %2947 = vmatprep.subr.bf16.mxu0 %v2536
    %2948 = vmatpush1.bf16.msra.mxu0 %v2535
    %2949 = vmatprep.subr.bf16.mxu0 %v2543
    %2950 = vmatpush1.bf16.msra.mxu0 %v2542
    %2951 = vmatprep.subr.bf16.mxu0 %v2550
    %2952 = vmatpush1.bf16.msra.mxu0 %v2549
    %2953 = vmatprep.subr.bf16.mxu0 %v2557
    %2954 = vmatpush1.bf16.msra.mxu0 %v2556
    %2955 = vmatprep.subr.bf16.mxu0 %v2564
    %2956 = vmatpush1.bf16.msra.mxu0 %v2563
    %2957 = vmatprep.subr.bf16.mxu0 %v2571
    %2958 = vmatpush1.bf16.msra.mxu0 %v2570
    %2959 = vmatprep.subr.bf16.mxu0 %v2578
    %2960 = vmatpush1.bf16.msra.mxu0 %v2577
    %2961 = vmatprep.subr.bf16.mxu0 %v2585
    %2962 = vmatpush1.bf16.msra.mxu0 %v2584
    %2963 = vmatprep.subr.bf16.mxu0 %v2592
    %2964 = vmatpush1.bf16.msra.mxu0 %v2591
    %2965 = vmatprep.subr.bf16.mxu0 %v2599
    %2966 = vmatpush1.bf16.msra.mxu0 %v2598
    %2967 = vmatprep.mubr.bf16.mxu0 %v2610
    %2968 = vmatmul.mubr.bf16.gmra.mrb[0].mxu0 %v2609
    %v2969 = vpop.f32.mrb[0].mxu0
    %v2970 = vadd.f32 %v2929, %v2969
    %v2971 = vpop.f32.mrb[0].mxu0
    %v2972 = vadd.f32 %v2931, %v2971
    %v2973 = vpop.f32.mrb[0].mxu0
    %v2974 = vpop.f32.mrb[0].mxu0
    %2975 = vdwg.mxu0
    %2976 = vmatprep.subr.bf16.mxu0 %v2160
    %2977 = vmatpush1.bf16.msra.mxu0 %v2159
    %2978 = vmatprep.subr.bf16.mxu0 %v2167
    %2979 = vmatpush1.bf16.msra.mxu0 %v2166
    %2980 = vmatprep.subr.bf16.mxu0 %v2174
    %2981 = vmatpush1.bf16.msra.mxu0 %v2173
    %2982 = vmatprep.subr.bf16.mxu0 %v2181
    %2983 = vmatpush1.bf16.msra.mxu0 %v2180
    %2984 = vmatprep.subr.bf16.mxu0 %v2188
    %2985 = vmatpush1.bf16.msra.mxu0 %v2187
    %2986 = vmatprep.subr.bf16.mxu0 %v2195
    %2987 = vmatpush1.bf16.msra.mxu0 %v2194
    %2988 = vmatprep.subr.bf16.mxu0 %v2202
    %2989 = vmatpush1.bf16.msra.mxu0 %v2201
    %2990 = vmatprep.subr.bf16.mxu0 %v2209
    %2991 = vmatpush1.bf16.msra.mxu0 %v2208
    %2992 = vmatprep.subr.bf16.mxu0 %v2216
    %2993 = vmatpush1.bf16.msra.mxu0 %v2215
    %2994 = vmatprep.subr.bf16.mxu0 %v2223
    %2995 = vmatpush1.bf16.msra.mxu0 %v2222
    %2996 = vmatprep.subr.bf16.mxu0 %v2230
    %2997 = vmatpush1.bf16.msra.mxu0 %v2229
    %2998 = vmatprep.subr.bf16.mxu0 %v2237
    %2999 = vmatpush1.bf16.msra.mxu0 %v2236
    %3000 = vmatprep.subr.bf16.mxu0 %v2244
    %3001 = vmatpush1.bf16.msra.mxu0 %v2243
    %3002 = vmatprep.subr.bf16.mxu0 %v2251
    %3003 = vmatpush1.bf16.msra.mxu0 %v2250
    %3004 = vmatprep.subr.bf16.mxu0 %v2258
    %3005 = vmatpush1.bf16.msra.mxu0 %v2257
    %3006 = vmatprep.subr.bf16.mxu0 %v2265
    %3007 = vmatpush1.bf16.msra.mxu0 %v2264
    %3008 = vmatprep.mubr.bf16.mxu0 %v2604
    %3009 = vmatmul.mubr.bf16.gmra.mrb[0].mxu0 %v2603
    %v3010 = vpop.f32.mrb[0].mxu0
    %v3011 = vadd.f32 %v2632, %v3010
    %v3012 = vpop.f32.mrb[0].mxu0
    %v3013 = vadd.f32 %v2636, %v3012
    %v3014 = vpop.f32.mrb[0].mxu0
    %v3015 = vpop.f32.mrb[0].mxu0
    %3016 = vdwg.mxu0
    %3017 = vmatprep.subr.bf16.mxu0 %v2272
    %3018 = vmatpush1.bf16.msra.mxu0 %v2271
    %3019 = vmatprep.subr.bf16.mxu0 %v2279
    %3020 = vmatpush1.bf16.msra.mxu0 %v2278
    %3021 = vmatprep.subr.bf16.mxu0 %v2286
    %3022 = vmatpush1.bf16.msra.mxu0 %v2285
    %3023 = vmatprep.subr.bf16.mxu0 %v2293
    %3024 = vmatpush1.bf16.msra.mxu0 %v2292
    %3025 = vmatprep.subr.bf16.mxu0 %v2300
    %3026 = vmatpush1.bf16.msra.mxu0 %v2299
    %3027 = vmatprep.subr.bf16.mxu0 %v2307
    %3028 = vmatpush1.bf16.msra.mxu0 %v2306
    %3029 = vmatprep.subr.bf16.mxu0 %v2314
    %3030 = vmatpush1.bf16.msra.mxu0 %v2313
    %3031 = vmatprep.subr.bf16.mxu0 %v2321
    %3032 = vmatpush1.bf16.msra.mxu0 %v2320
    %3033 = vmatprep.subr.bf16.mxu0 %v2328
    %3034 = vmatpush1.bf16.msra.mxu0 %v2327
    %3035 = vmatprep.subr.bf16.mxu0 %v2335
    %3036 = vmatpush1.bf16.msra.mxu0 %v2334
    %3037 = vmatprep.subr.bf16.mxu0 %v2342
    %3038 = vmatpush1.bf16.msra.mxu0 %v2341
    %3039 = vmatprep.subr.bf16.mxu0 %v2349
    %3040 = vmatpush1.bf16.msra.mxu0 %v2348
    %3041 = vmatprep.subr.bf16.mxu0 %v2356
    %3042 = vmatpush1.bf16.msra.mxu0 %v2355
    %3043 = vmatprep.subr.bf16.mxu0 %v2363
    %3044 = vmatpush1.bf16.msra.mxu0 %v2362
    %3045 = vmatprep.subr.bf16.mxu0 %v2370
    %3046 = vmatpush1.bf16.msra.mxu0 %v2369
    %3047 = vmatprep.subr.bf16.mxu0 %v2377
    %3048 = vmatpush1.bf16.msra.mxu0 %v2376
    %3049 = vmatprep.mubr.bf16.mxu0 %v2606
    %3050 = vmatmul.mubr.bf16.gmra.mrb[0].mxu0 %v2605
    %v3051 = vpop.f32.mrb[0].mxu0
    %v3052 = vadd.f32 %v3011, %v3051
    %v3053 = vpop.f32.mrb[0].mxu0
    %v3054 = vadd.f32 %v3013, %v3053
    %v3055 = vpop.f32.mrb[0].mxu0
    %v3056 = vpop.f32.mrb[0].mxu0
    %3057 = vdwg.mxu0
    %3058 = vmatprep.subr.bf16.mxu0 %v2384
    %3059 = vmatpush1.bf16.msra.mxu0 %v2383
    %3060 = vmatprep.subr.bf16.mxu0 %v2391
    %3061 = vmatpush1.bf16.msra.mxu0 %v2390
    %3062 = vmatprep.subr.bf16.mxu0 %v2398
    %3063 = vmatpush1.bf16.msra.mxu0 %v2397
    %3064 = vmatprep.subr.bf16.mxu0 %v2405
    %3065 = vmatpush1.bf16.msra.mxu0 %v2404
    %3066 = vmatprep.subr.bf16.mxu0 %v2412
    %3067 = vmatpush1.bf16.msra.mxu0 %v2411
    %3068 = vmatprep.subr.bf16.mxu0 %v2419
    %3069 = vmatpush1.bf16.msra.mxu0 %v2418
    %3070 = vmatprep.subr.bf16.mxu0 %v2426
    %3071 = vmatpush1.bf16.msra.mxu0 %v2425
    %3072 = vmatprep.subr.bf16.mxu0 %v2433
    %3073 = vmatpush1.bf16.msra.mxu0 %v2432
    %3074 = vmatprep.subr.bf16.mxu0 %v2440
    %3075 = vmatpush1.bf16.msra.mxu0 %v2439
    %3076 = vmatprep.subr.bf16.mxu0 %v2447
    %3077 = vmatpush1.bf16.msra.mxu0 %v2446
    %3078 = vmatprep.subr.bf16.mxu0 %v2454
    %3079 = vmatpush1.bf16.msra.mxu0 %v2453
    %3080 = vmatprep.subr.bf16.mxu0 %v2461
    %3081 = vmatpush1.bf16.msra.mxu0 %v2460
    %3082 = vmatprep.subr.bf16.mxu0 %v2468
    %3083 = vmatpush1.bf16.msra.mxu0 %v2467
    %3084 = vmatprep.subr.bf16.mxu0 %v2475
    %3085 = vmatpush1.bf16.msra.mxu0 %v2474
    %3086 = vmatprep.subr.bf16.mxu0 %v2482
    %3087 = vmatpush1.bf16.msra.mxu0 %v2481
    %3088 = vmatprep.subr.bf16.mxu0 %v2489
    %3089 = vmatpush1.bf16.msra.mxu0 %v2488
    %3090 = vmatprep.mubr.bf16.mxu0 %v2608
    %3091 = vmatmul.mubr.bf16.gmra.mrb[0].mxu0 %v2607
    %v3092 = vpop.f32.mrb[0].mxu0
    %v3093 = vadd.f32 %v3052, %v3092
    %v3094 = vpop.f32.mrb[0].mxu0
    %v3095 = vadd.f32 %v3054, %v3094
    %v3096 = vpop.f32.mrb[0].mxu0
    %v3097 = vpop.f32.mrb[0].mxu0
    %3098 = vdwg.mxu0
    %3099 = vmatprep.subr.bf16.mxu0 %v2496
    %3100 = vmatpush1.bf16.msra.mxu0 %v2495
    %3101 = vmatprep.subr.bf16.mxu0 %v2503
    %3102 = vmatpush1.bf16.msra.mxu0 %v2502
    %3103 = vmatprep.subr.bf16.mxu0 %v2510
    %3104 = vmatpush1.bf16.msra.mxu0 %v2509
    %3105 = vmatprep.subr.bf16.mxu0 %v2517
    %3106 = vmatpush1.bf16.msra.mxu0 %v2516
    %3107 = vmatprep.subr.bf16.mxu0 %v2524
    %3108 = vmatpush1.bf16.msra.mxu0 %v2523
    %3109 = vmatprep.subr.bf16.mxu0 %v2531
    %3110 = vmatpush1.bf16.msra.mxu0 %v2530
    %3111 = vmatprep.subr.bf16.mxu0 %v2538
    %3112 = vmatpush1.bf16.msra.mxu0 %v2537
    %3113 = vmatprep.subr.bf16.mxu0 %v2545
    %3114 = vmatpush1.bf16.msra.mxu0 %v2544
    %3115 = vmatprep.subr.bf16.mxu0 %v2552
    %3116 = vmatpush1.bf16.msra.mxu0 %v2551
    %3117 = vmatprep.subr.bf16.mxu0 %v2559
    %3118 = vmatpush1.bf16.msra.mxu0 %v2558
    %3119 = vmatprep.subr.bf16.mxu0 %v2566
    %3120 = vmatpush1.bf16.msra.mxu0 %v2565
    %3121 = vmatprep.subr.bf16.mxu0 %v2573
    %3122 = vmatpush1.bf16.msra.mxu0 %v2572
    %3123 = vmatprep.subr.bf16.mxu0 %v2580
    %3124 = vmatpush1.bf16.msra.mxu0 %v2579
    %3125 = vmatprep.subr.bf16.mxu0 %v2587
    %3126 = vmatpush1.bf16.msra.mxu0 %v2586
    %3127 = vmatprep.subr.bf16.mxu0 %v2594
    %3128 = vmatpush1.bf16.msra.mxu0 %v2593
    %3129 = vmatprep.subr.bf16.mxu0 %v2601
    %3130 = vmatpush1.bf16.msra.mxu0 %v2600
    %3131 = vmatprep.mubr.bf16.mxu0 %v2610
    %3132 = vmatmul.mubr.bf16.gmra.mrb[0].mxu0 %v2609
    %v3133 = vpop.f32.mrb[0].mxu0
    %v3134 = vadd.f32 %v3093, %v3133
    %v3135 = vpop.f32.mrb[0].mxu0
    %v3136 = vadd.f32 %v3095, %v3135
    %v3137 = vpop.f32.mrb[0].mxu0
    %v3138 = vpop.f32.mrb[0].mxu0
    %3139 = vdwg.mxu0
    %3140 = vmatprep.subr.bf16.mxu0 0
    %3141 = vmatpush1.bf16.msra.mxu0 %v2161
    %3142 = vmatprep.subr.bf16.mxu0 0
    %3143 = vmatpush1.bf16.msra.mxu0 %v2168
    %3144 = vmatprep.subr.bf16.mxu0 0
    %3145 = vmatpush1.bf16.msra.mxu0 %v2175
    %3146 = vmatprep.subr.bf16.mxu0 0
    %3147 = vmatpush1.bf16.msra.mxu0 %v2182
    %3148 = vmatprep.subr.bf16.mxu0 0
    %3149 = vmatpush1.bf16.msra.mxu0 %v2189
    %3150 = vmatprep.subr.bf16.mxu0 0
    %3151 = vmatpush1.bf16.msra.mxu0 %v2196
    %3152 = vmatprep.subr.bf16.mxu0 0
    %3153 = vmatpush1.bf16.msra.mxu0 %v2203
    %3154 = vmatprep.subr.bf16.mxu0 0
    %3155 = vmatpush1.bf16.msra.mxu0 %v2210
    %3156 = vmatprep.subr.bf16.mxu0 0
    %3157 = vmatpush1.bf16.msra.mxu0 %v2217
    %3158 = vmatprep.subr.bf16.mxu0 0
    %3159 = vmatpush1.bf16.msra.mxu0 %v2224
    %3160 = vmatprep.subr.bf16.mxu0 0
    %3161 = vmatpush1.bf16.msra.mxu0 %v2231
    %3162 = vmatprep.subr.bf16.mxu0 0
    %3163 = vmatpush1.bf16.msra.mxu0 %v2238
    %3164 = vmatprep.subr.bf16.mxu0 0
    %3165 = vmatpush1.bf16.msra.mxu0 %v2245
    %3166 = vmatprep.subr.bf16.mxu0 0
    %3167 = vmatpush1.bf16.msra.mxu0 %v2252
    %3168 = vmatprep.subr.bf16.mxu0 0
    %3169 = vmatpush1.bf16.msra.mxu0 %v2259
    %3170 = vmatprep.subr.bf16.mxu0 0
    %3171 = vmatpush1.bf16.msra.mxu0 %v2266
    %3172 = vmatprep.mubr.bf16.mxu0 %v2604
    %3173 = vmatmul.mubr.bf16.gmra.mrb[0].mxu0 %v2603
    %v3174 = vpop.f32.mrb[0].mxu0
    %v3175 = vadd.f32 %v2640, %v3174
    %v3176 = vpop.f32.mrb[0].mxu0
    %v3177 = vpop.f32.mrb[0].mxu0
    %v3178 = vpop.f32.mrb[0].mxu0
    %3179 = vdwg.mxu0
    %3180 = vmatprep.subr.bf16.mxu0 0
    %3181 = vmatpush1.bf16.msra.mxu0 %v2273
    %3182 = vmatprep.subr.bf16.mxu0 0
    %3183 = vmatpush1.bf16.msra.mxu0 %v2280
    %3184 = vmatprep.subr.bf16.mxu0 0
    %3185 = vmatpush1.bf16.msra.mxu0 %v2287
    %3186 = vmatprep.subr.bf16.mxu0 0
    %3187 = vmatpush1.bf16.msra.mxu0 %v2294
    %3188 = vmatprep.subr.bf16.mxu0 0
    %3189 = vmatpush1.bf16.msra.mxu0 %v2301
    %3190 = vmatprep.subr.bf16.mxu0 0
    %3191 = vmatpush1.bf16.msra.mxu0 %v2308
    %3192 = vmatprep.subr.bf16.mxu0 0
    %3193 = vmatpush1.bf16.msra.mxu0 %v2315
    %3194 = vmatprep.subr.bf16.mxu0 0
    %3195 = vmatpush1.bf16.msra.mxu0 %v2322
    %3196 = vmatprep.subr.bf16.mxu0 0
    %3197 = vmatpush1.bf16.msra.mxu0 %v2329
    %3198 = vmatprep.subr.bf16.mxu0 0
    %3199 = vmatpush1.bf16.msra.mxu0 %v2336
    %3200 = vmatprep.subr.bf16.mxu0 0
    %3201 = vmatpush1.bf16.msra.mxu0 %v2343
    %3202 = vmatprep.subr.bf16.mxu0 0
    %3203 = vmatpush1.bf16.msra.mxu0 %v2350
    %3204 = vmatprep.subr.bf16.mxu0 0
    %3205 = vmatpush1.bf16.msra.mxu0 %v2357
    %3206 = vmatprep.subr.bf16.mxu0 0
    %3207 = vmatpush1.bf16.msra.mxu0 %v2364
    %3208 = vmatprep.subr.bf16.mxu0 0
    %3209 = vmatpush1.bf16.msra.mxu0 %v2371
    %3210 = vmatprep.subr.bf16.mxu0 0
    %3211 = vmatpush1.bf16.msra.mxu0 %v2378
    %3212 = vmatprep.mubr.bf16.mxu0 %v2606
    %3213 = vmatmul.mubr.bf16.gmra.mrb[0].mxu0 %v2605
    %v3214 = vpop.f32.mrb[0].mxu0
    %v3215 = vadd.f32 %v3175, %v3214
    %v3216 = vpop.f32.mrb[0].mxu0
    %v3217 = vpop.f32.mrb[0].mxu0
    %v3218 = vpop.f32.mrb[0].mxu0
    %3219 = vdwg.mxu0
    %3220 = vmatprep.subr.bf16.mxu0 0
    %3221 = vmatpush1.bf16.msra.mxu0 %v2385
    %3222 = vmatprep.subr.bf16.mxu0 0
    %3223 = vmatpush1.bf16.msra.mxu0 %v2392
    %3224 = vmatprep.subr.bf16.mxu0 0
    %3225 = vmatpush1.bf16.msra.mxu0 %v2399
    %3226 = vmatprep.subr.bf16.mxu0 0
    %3227 = vmatpush1.bf16.msra.mxu0 %v2406
    %3228 = vmatprep.subr.bf16.mxu0 0
    %3229 = vmatpush1.bf16.msra.mxu0 %v2413
    %3230 = vmatprep.subr.bf16.mxu0 0
    %3231 = vmatpush1.bf16.msra.mxu0 %v2420
    %3232 = vmatprep.subr.bf16.mxu0 0
    %3233 = vmatpush1.bf16.msra.mxu0 %v2427
    %3234 = vmatprep.subr.bf16.mxu0 0
    %3235 = vmatpush1.bf16.msra.mxu0 %v2434
    %3236 = vmatprep.subr.bf16.mxu0 0
    %3237 = vmatpush1.bf16.msra.mxu0 %v2441
    %3238 = vmatprep.subr.bf16.mxu0 0
    %3239 = vmatpush1.bf16.msra.mxu0 %v2448
    %3240 = vmatprep.subr.bf16.mxu0 0
    %3241 = vmatpush1.bf16.msra.mxu0 %v2455
    %3242 = vmatprep.subr.bf16.mxu0 0
    %3243 = vmatpush1.bf16.msra.mxu0 %v2462
    %3244 = vmatprep.subr.bf16.mxu0 0
    %3245 = vmatpush1.bf16.msra.mxu0 %v2469
    %3246 = vmatprep.subr.bf16.mxu0 0
    %3247 = vmatpush1.bf16.msra.mxu0 %v2476
    %3248 = vmatprep.subr.bf16.mxu0 0
    %3249 = vmatpush1.bf16.msra.mxu0 %v2483
    %3250 = vmatprep.subr.bf16.mxu0 0
    %3251 = vmatpush1.bf16.msra.mxu0 %v2490
    %3252 = vmatprep.mubr.bf16.mxu0 %v2608
    %3253 = vmatmul.mubr.bf16.gmra.mrb[0].mxu0 %v2607
    %v3254 = vpop.f32.mrb[0].mxu0
    %v3255 = vadd.f32 %v3215, %v3254
    %v3256 = vpop.f32.mrb[0].mxu0
    %v3257 = vpop.f32.mrb[0].mxu0
    %v3258 = vpop.f32.mrb[0].mxu0
    %3259 = vdwg.mxu0
    %3260 = vmatprep.subr.bf16.mxu0 0
    %3261 = vmatpush1.bf16.msra.mxu0 %v2497
    %3262 = vmatprep.subr.bf16.mxu0 0
    %3263 = vmatpush1.bf16.msra.mxu0 %v2504
    %3264 = vmatprep.subr.bf16.mxu0 0
    %3265 = vmatpush1.bf16.msra.mxu0 %v2511
    %3266 = vmatprep.subr.bf16.mxu0 0
    %3267 = vmatpush1.bf16.msra.mxu0 %v2518
    %3268 = vmatprep.subr.bf16.mxu0 0
    %3269 = vmatpush1.bf16.msra.mxu0 %v2525
    %3270 = vmatprep.subr.bf16.mxu0 0
    %3271 = vmatpush1.bf16.msra.mxu0 %v2532
    %3272 = vmatprep.subr.bf16.mxu0 0
    %3273 = vmatpush1.bf16.msra.mxu0 %v2539
    %3274 = vmatprep.subr.bf16.mxu0 0
    %3275 = vmatpush1.bf16.msra.mxu0 %v2546
    %3276 = vmatprep.subr.bf16.mxu0 0
    %3277 = vmatpush1.bf16.msra.mxu0 %v2553
    %3278 = vmatprep.subr.bf16.mxu0 0
    %3279 = vmatpush1.bf16.msra.mxu0 %v2560
    %3280 = vmatprep.subr.bf16.mxu0 0
    %3281 = vmatpush1.bf16.msra.mxu0 %v2567
    %3282 = vmatprep.subr.bf16.mxu0 0
    %3283 = vmatpush1.bf16.msra.mxu0 %v2574
    %3284 = vmatprep.subr.bf16.mxu0 0
    %3285 = vmatpush1.bf16.msra.mxu0 %v2581
    %3286 = vmatprep.subr.bf16.mxu0 0
    %3287 = vmatpush1.bf16.msra.mxu0 %v2588
    %3288 = vmatprep.subr.bf16.mxu0 0
    %3289 = vmatpush1.bf16.msra.mxu0 %v2595
    %3290 = vmatprep.subr.bf16.mxu0 0
    %3291 = vmatpush1.bf16.msra.mxu0 %v2602
    %3292 = vmatprep.mubr.bf16.mxu0 %v2610
    %3293 = vmatmul.mubr.bf16.gmra.mrb[0].mxu0 %v2609
    %v3294 = vpop.f32.mrb[0].mxu0
    %v3295 = vadd.f32 %v3255, %v3294
    %v3296 = vpop.f32.mrb[0].mxu0
    %v3297 = vpop.f32.mrb[0].mxu0
    %v3298 = vpop.f32.mrb[0].mxu0
    %3299 = vdwg.mxu0
    %v3300 = vtanh.pop %v2806
    %v3301 = vtanh.pop %v2808
    %v3302 = vtanh.pop %v2970
    %v3303 = vtanh.pop %v2972
    %v3304 = vtanh.pop %v3134
    %v3305 = vtanh.pop %v3136
    %v3306 = vtanh.pop %v3295
    %v3313 = vcombine.low %v3300, %v3301
    %v3314 = vcombine.low %v3302, %v3303
    %v3315 = vcombine.low %v3304, %v3305
    %3319 = vst [vmem:[#allocation17] sm:$0xff] %v3313
    %3320 = vst [vmem:[#allocation17 + $0x8] sm:$0xff] %v3314
    %3321 = vst [vmem:[#allocation17 + $0x10] sm:$0xff] %v3315
    %3322 = vst [vmem:[#allocation17 + $0x18] sm:$0xf] %v3306
    // Predicated region
    $region58: #{tpu_custom_call.1} parent=1 // pred_check
      _
    $region59: #{tpu_custom_call.1} parent=1 // pred_check_branch
      %3324 = sbr.rel (0) target = $region61
    $region60: #{tpu_custom_call.1} parent=1 // pred_region
      %s3326 = ssub.s32 448, 448
      %3327 = vsyncadd [#allocation7], %s3326
      %s3329 = sshll.u32 [#allocation17], 4
      %s3330 = int_to_ptr.vmem [resolvable:$true] %s3329
      %3332 = dma.vmem_to_hbm [thread:$0]  %s3330, 448, %s9, [#allocation7]
    $region61: #{tpu_custom_call.1} parent=1 // pred_fallthru
      _
    // Predicated region
    $region62: #{tpu_custom_call.1} parent=1 // pred_check
      _
    $region63: #{tpu_custom_call.1} parent=1 // pred_check_branch
      %3334 = sbr.rel (0) target = $region65
    $region64: #{tpu_custom_call.1} parent=1 // pred_region
      %3335 = dma.done [#allocation7], 448
    $region65: #{tpu_custom_call.1} parent=1 // pred_fallthru
      _
    %3336 = vsyncpa [#allocation6], 1
    %3337 = vsyncpa [#allocation9], 1
    %3338 = vsyncpa [#allocation12], 1
    %3339 = vsyncpa [#allocation15], 1
    %3340 = vsyncpa [#allocation7], 1
  %3341 = vsyncmov [#allocation4]
  %s3342 = vpop.sfrf %3341
  %p3343 = scmp.eq.s32.totalorder %s3342, 0
  %p3344 = pneg %p3343
  %3346 = shalt.err (%p3344)
  %s3347 = scalar_lea.sflag [#allocation4], 1
  %3348 = vsyncmov %s3347
  %s3349 = vpop.sfrf %3348
  %p3350 = scmp.eq.s32.totalorder %s3349, 0
  %p3351 = pneg %p3350
  %3353 = shalt.err (%p3351)

</llo_original>
